<compile_context>
chip_gen: v7x
topology: tpu7x:2x2x1
jax: 0.10.0
libtpu: 0.0.40
codegen_flags: <defaults>
</compile_context>

<pallas_src>
import math

import jax
import jax.numpy as jnp
from jax.experimental import pallas as pl
from jax.experimental.pallas import tpu as pltpu

# ----------------------- small config consistent with the module ------------------
B = 2            # batch
S = 8            # language sequence length
P = 4            # image patch tokens
D = 32           # config.d_tok
H = 4            # config.n_head
HD = D // H      # per-head dim
DHID = 64        # config.d_hid (transformer FFN)
NLAYERS = 2      # config.x_layers
L = 1 + S + P    # [overall CLS] + lang + image tokens = 13
LP = ((L + 7) // 8) * 8   # sequence padded to a sublane multiple (16)
NEG_INF = -1e9
EPS = 1e-5


def _layer_norm(x, g, b):
    mu = jnp.mean(x, axis=-1, keepdims=True)
    var = jnp.mean((x - mu) ** 2, axis=-1, keepdims=True)
    return (x - mu) * jax.lax.rsqrt(var + EPS) * g + b


# ----------------------------- the Pallas kernel -----------------------------------
def encoder_kernel(x_ref, bias_ref, wqkvo_ref, bqkvo_ref, w1_ref, b1_ref,
                   w2_ref, b2_ref, ln_ref, out_ref):
    """Full post-norm nn.TransformerEncoder stack, unrolled over NLAYERS."""
    h = x_ref[...]                    # (B*LP, D) f32 hidden state (flattened batch)
    bias = bias_ref[...]              # (B, LP)   additive key-padding bias
    ln = ln_ref[...]                  # (4*NLAYERS + 2, D) LayerNorm gammas / betas
    scale = 1.0 / math.sqrt(HD)

    for l in range(NLAYERS):          # static unroll (NLAYERS == 2)
        wqkvo = wqkvo_ref[l]          # (D, 4D) bf16  [Wq | Wk | Wv | Wo]
        bqkvo = bqkvo_ref[l]          # (1, 4D) f32

        # Fused Q|K|V projection: a single (B*LP, D) @ (D, 3D) MXU push.
        qkv = jnp.dot(h.astype(jnp.bfloat16), wqkvo[:, :3 * D],
                      preferred_element_type=jnp.float32) + bqkvo[:, :3 * D]

        # Attention on small, sublane-aligned 2-D tiles per (batch, head).
        ctx_rows = []
        for b in range(B):
            qkv_b = qkv[b * LP:(b + 1) * LP, :]            # (LP, 3D)
            bias_b = bias[b:b + 1, :]                      # (1, LP)
            head_ctx = []
            for hh in range(H):
                lo = hh * HD
                qh = qkv_b[:, lo:lo + HD]                  # (LP, HD)
                kh = qkv_b[:, D + lo:D + lo + HD]
                vh = qkv_b[:, 2 * D + lo:2 * D + lo + HD]
                s = jax.lax.dot_general(qh, kh, (((1,), (1,)), ((), ())),
                                        preferred_element_type=jnp.float32)
                s = s * scale + bias_b                     # key-padding mask
                s = s - jnp.max(s, axis=-1, keepdims=True)
                e = jnp.exp(s)
                p = e * pl.reciprocal(jnp.sum(e, axis=-1, keepdims=True) + 1e-20,
                                      approx=True)
                head_ctx.append(jnp.dot(p, vh, preferred_element_type=jnp.float32))
            ctx_rows.append(jnp.concatenate(head_ctx, axis=-1))        # (LP, D)
        ctx = jnp.concatenate(ctx_rows, axis=0)                        # (B*LP, D)

        # Single fused output projection (heads already concatenated).
        attn = jnp.dot(ctx.astype(jnp.bfloat16), wqkvo[:, 3 * D:],
                       preferred_element_type=jnp.float32) + bqkvo[:, 3 * D:]

        # post-norm residual 1
        h1 = _layer_norm(h + attn, ln[4 * l:4 * l + 1, :], ln[4 * l + 1:4 * l + 2, :])

        # FFN (tanh GELU -> EUP slot instead of erf VALU polynomial)
        ff = jnp.dot(h1.astype(jnp.bfloat16), w1_ref[l],
                     preferred_element_type=jnp.float32) + b1_ref[l]
        ff = jax.nn.gelu(ff, approximate=True)
        ff = jnp.dot(ff.astype(jnp.bfloat16), w2_ref[l],
                     preferred_element_type=jnp.float32) + b2_ref[l]

        # post-norm residual 2
        h = _layer_norm(h1 + ff, ln[4 * l + 2:4 * l + 3, :], ln[4 * l + 3:4 * l + 4, :])

    # final nn.TransformerEncoder LayerNorm
    out_ref[...] = _layer_norm(h, ln[4 * NLAYERS:4 * NLAYERS + 1, :],
                               ln[4 * NLAYERS + 1:4 * NLAYERS + 2, :])


def encoder_stack(x_flat, bias, params):
    vmem = pl.BlockSpec(memory_space=pltpu.MemorySpace.VMEM)
    return pl.pallas_call(
        encoder_kernel,
        out_shape=jax.ShapeDtypeStruct((B * LP, D), jnp.float32),
        in_specs=[vmem] * 9,
        out_specs=vmem,
    )(x_flat, bias,
      params['wqkvo'].astype(jnp.bfloat16), params['bqkvo'],
      params['w1'].astype(jnp.bfloat16), params['b1'],
      params['w2'].astype(jnp.bfloat16), params['b2'],
      params['ln'])


# ----------------------------- plain JAX glue ---------------------------------------
def sinusoidal_pe(length, dim):
    # TODO(synk): PositionalEncoding class not provided in the source; assuming the
    # standard sinusoidal encoding added over the sequence dim (eval: no dropout).
    pos = jnp.arange(length, dtype=jnp.float32)[:, None]
    div = jnp.exp(jnp.arange(0, dim, 2, dtype=jnp.float32) *
                  (-math.log(10000.0) / dim))
    pe = jnp.zeros((length, dim), jnp.float32)
    pe = pe.at[:, 0::2].set(jnp.sin(pos * div))
    pe = pe.at[:, 1::2].set(jnp.cos(pos * div))
    return pe


def build_inputs(params, lang_feats, lang_pad_mask, token_type_ids, visn_feats):
    cls = jnp.broadcast_to(params['cls'][None, None, :], (B, 1, D))
    unit = jnp.concatenate([cls, lang_feats, visn_feats], axis=1)       # (B, L, D)

    seg_ids = jnp.concatenate([
        jnp.zeros((B, 1), jnp.int32),
        token_type_ids.astype(jnp.int32),
        jnp.full((B, P), 2, jnp.int32)], axis=1)                        # (B, L)
    unit = unit + sinusoidal_pe(L, D)[None] + params['seg'][seg_ids]

    pad = jnp.logical_not(jnp.concatenate([
        jnp.ones((B, 1), bool),
        lang_pad_mask.astype(bool),
        jnp.ones((B, P), bool)], axis=1))                               # True = padded key
    bias = jnp.where(pad, NEG_INF, 0.0).astype(jnp.float32)             # (B, L)
    return unit.astype(jnp.float32), bias


def mm_encoder_forward(params, lang_feats, lang_pad_mask, token_type_ids, visn_feats):
    unit, bias = build_inputs(params, lang_feats, lang_pad_mask,
                              token_type_ids, visn_feats)
    # Pad the sequence to a sublane multiple; padded tokens are key-masked so the
    # real positions are numerically unaffected.
    x_p = jnp.pad(unit, ((0, 0), (0, LP - L), (0, 0)))
    bias_p = jnp.pad(bias, ((0, 0), (0, LP - L)), constant_values=NEG_INF)
    x_flat = x_p.reshape(B * LP, D)

    out_flat = encoder_stack(x_flat, bias_p, params)                    # (B*LP, D)
    output = out_flat.reshape(B, LP, D)[:, :L, :]                       # (B, L, D)

    lang_out = output[:, S - 1, :]     # matches module: output[:, seq_len - 1, :]
    visn_out = output[:, -1, :]
    att_lang_out = None                # use_attributes=False
    return lang_out, visn_out, output, att_lang_out


# ----------------------------- pure-JAX f32 reference --------------------------------
def reference_forward(params, lang_feats, lang_pad_mask, token_type_ids, visn_feats):
    x, bias = build_inputs(params, lang_feats, lang_pad_mask,
                           token_type_ids, visn_feats)
    bias3 = bias[:, None, :]
    scale = 1.0 / math.sqrt(HD)
    ln = params['ln']
    for l in range(NLAYERS):
        wqkvo, bqkvo = params['wqkvo'][l], params['bqkvo'][l]
        q = x @ wqkvo[:, :D] + bqkvo[:, :D]
        k = x @ wqkvo[:, D:2 * D] + bqkvo[:, D:2 * D]
        v = x @ wqkvo[:, 2 * D:3 * D] + bqkvo[:, 2 * D:3 * D]
        heads = []
        for hh in range(H):
            lo = hh * HD
            s = jnp.einsum('blk,bmk->blm', q[..., lo:lo + HD],
                           k[..., lo:lo + HD]) * scale + bias3
            p = jax.nn.softmax(s, axis=-1)
            heads.append(jnp.einsum('blm,bmk->blk', p, v[..., lo:lo + HD]))
        ctx = jnp.concatenate(heads, axis=-1)
        attn = ctx @ wqkvo[:, 3 * D:] + bqkvo[:, 3 * D:]
        h1 = _layer_norm(x + attn, ln[4 * l], ln[4 * l + 1])
        ff = jax.nn.gelu(h1 @ params['w1'][l] + params['b1'][l], approximate=False)
        ff = ff @ params['w2'][l] + params['b2'][l]
        x = _layer_norm(h1 + ff, ln[4 * l + 2], ln[4 * l + 3])
    out = _layer_norm(x, ln[4 * NLAYERS], ln[4 * NLAYERS + 1])
    return out[:, S - 1, :], out[:, -1, :], out


# ----------------------------- parameter init ----------------------------------------
def init_params(key):
    ks = iter(jax.random.split(key, 12))
    s = 0.05
    nrm = lambda shape: jax.random.normal(next(ks), shape, jnp.float32) * s
    p = {}
    p['cls'] = jax.random.normal(next(ks), (D,), jnp.float32)   # class_embedding
    seg = nrm((3, D))
    p['seg'] = seg.at[0].set(0.0)                               # Embedding(padding_idx=0)
    # per-layer transformer weights in fused slabs
    p['wqkvo'] = nrm((NLAYERS, D, 4 * D))      # [Wq | Wk | Wv | Wo]
    p['bqkvo'] = nrm((NLAYERS, 1, 4 * D))      # [bq | bk | bv | bo]
    p['w1'] = nrm((NLAYERS, D, DHID)); p['b1'] = nrm((NLAYERS, 1, DHID))
    p['w2'] = nrm((NLAYERS, DHID, D)); p['b2'] = nrm((NLAYERS, 1, D))
    # LayerNorm table: per layer rows [g1, be1, g2, be2], then final [gf, bf]
    ln = jnp.zeros((4 * NLAYERS + 2, D), jnp.float32)
    ones_rows = jnp.array([4 * l + i for l in range(NLAYERS) for i in (0, 2)]
                          + [4 * NLAYERS])
    p['ln'] = ln.at[ones_rows].set(1.0)
    return p


# ----------------------------------- main --------------------------------------------
if __name__ == "__main__":
    key = jax.random.PRNGKey(0)
    kp, k1, k2 = jax.random.split(key, 3)
    params = init_params(kp)

    lang_feats = jax.random.normal(k1, (B, S, D), jnp.float32) * 0.5
    visn_feats = jax.random.normal(k2, (B, P, D), jnp.float32) * 0.5
    token_type_ids = jnp.ones((B, S), jnp.int32)
    lang_pad_mask = jnp.array([[1] * S, [1] * (S - 2) + [0] * 2], jnp.float32)

    fwd = jax.jit(mm_encoder_forward)
    lang_out, visn_out, output, att_out = jax.block_until_ready(
        fwd(params, lang_feats, lang_pad_mask, token_type_ids, visn_feats))

    r_lang, r_visn, r_out = reference_forward(params, lang_feats, lang_pad_mask,
                                              token_type_ids, visn_feats)

    assert output.shape == (B, L, D)
    assert lang_out.shape == (B, D) and visn_out.shape == (B, D)
    assert att_out is None
    assert bool(jnp.all(jnp.isfinite(output)))
    assert bool(jnp.allclose(output, r_out, atol=2e-2, rtol=2e-2))
    assert bool(jnp.allclose(lang_out, r_lang, atol=2e-2, rtol=2e-2))
    assert bool(jnp.allclose(visn_out, r_visn, atol=2e-2, rtol=2e-2))
    print("KERNEL_OK")
</pallas_src>

<mosaic_0001>
module attributes {stable_mosaic.version = 11 : i64} {
  func.func @encoder_kernel(%arg0: memref<32x32xf32, #tpu.memory_space<vmem>>, %arg1: memref<2x16xf32, #tpu.memory_space<vmem>>, %arg2: memref<2x32x128xbf16, #tpu.memory_space<vmem>>, %arg3: memref<2x1x128xf32, #tpu.memory_space<vmem>>, %arg4: memref<2x32x64xbf16, #tpu.memory_space<vmem>>, %arg5: memref<2x1x64xf32, #tpu.memory_space<vmem>>, %arg6: memref<2x64x32xbf16, #tpu.memory_space<vmem>>, %arg7: memref<2x1x32xf32, #tpu.memory_space<vmem>>, %arg8: memref<10x32xf32, #tpu.memory_space<vmem>>, %arg9: memref<32x32xf32, #tpu.memory_space<vmem>>) attributes {dimension_semantics = [], scalar_prefetch = 0 : i64, scratch_operands = 0 : i64, tpu.core_type = #tpu.core_type<tc>} {
    %c0 = arith.constant 0 : index
    %c0_0 = arith.constant 0 : index
    %0 = vector.load %arg0[%c0, %c0_0] : memref<32x32xf32, #tpu.memory_space<vmem>>, vector<32x32xf32>
    %c0_1 = arith.constant 0 : index
    %c0_2 = arith.constant 0 : index
    %1 = vector.load %arg1[%c0_1, %c0_2] : memref<2x16xf32, #tpu.memory_space<vmem>>, vector<2x16xf32>
    %c0_3 = arith.constant 0 : index
    %c0_4 = arith.constant 0 : index
    %2 = vector.load %arg8[%c0_3, %c0_4] : memref<10x32xf32, #tpu.memory_space<vmem>>, vector<10x32xf32>
    %c0_5 = arith.constant 0 : index
    %c0_6 = arith.constant 0 : index
    %c0_7 = arith.constant 0 : index
    %3 = vector.load %arg2[%c0_5, %c0_6, %c0_7] : memref<2x32x128xbf16, #tpu.memory_space<vmem>>, vector<1x32x128xbf16>
    %4 = vector.shape_cast %3 : vector<1x32x128xbf16> to vector<32x128xbf16>
    %c0_8 = arith.constant 0 : index
    %c0_9 = arith.constant 0 : index
    %c0_10 = arith.constant 0 : index
    %5 = vector.load %arg3[%c0_8, %c0_9, %c0_10] : memref<2x1x128xf32, #tpu.memory_space<vmem>>, vector<1x1x128xf32>
    %6 = vector.shape_cast %5 : vector<1x1x128xf32> to vector<1x128xf32>
    %7 = arith.truncf %0 : vector<32x32xf32> to vector<32x32xbf16>
    %8 = vector.extract_strided_slice %4 {offsets = [0, 0], sizes = [32, 96], strides = [1, 1]} : vector<32x128xbf16> to vector<32x96xbf16>
    %cst = arith.constant dense<0.000000e+00> : vector<32x96xf32>
    %9 = tpu.matmul %7, %8, %cst {dimension_numbers = #tpu.dot_dimension_numbers<[1], [0], [0], [1], [0, 0, 1, 1], [], []>} : vector<32x32xbf16>, vector<32x96xbf16>, vector<32x96xf32> -> vector<32x96xf32>
    %10 = vector.extract_strided_slice %6 {offsets = [0, 0], sizes = [1, 96], strides = [1, 1]} : vector<1x128xf32> to vector<1x96xf32>
    %11 = vector.broadcast %10 : vector<1x96xf32> to vector<32x96xf32>
    %12 = arith.addf %9, %11 : vector<32x96xf32>
    %13 = vector.extract_strided_slice %12 {offsets = [0, 0], sizes = [16, 96], strides = [1, 1]} : vector<32x96xf32> to vector<16x96xf32>
    %14 = vector.extract_strided_slice %1 {offsets = [0, 0], sizes = [1, 16], strides = [1, 1]} : vector<2x16xf32> to vector<1x16xf32>
    %15 = vector.extract_strided_slice %13 {offsets = [0, 0], sizes = [16, 8], strides = [1, 1]} : vector<16x96xf32> to vector<16x8xf32>
    %16 = vector.extract_strided_slice %13 {offsets = [0, 32], sizes = [16, 8], strides = [1, 1]} : vector<16x96xf32> to vector<16x8xf32>
    %17 = vector.extract_strided_slice %13 {offsets = [0, 64], sizes = [16, 8], strides = [1, 1]} : vector<16x96xf32> to vector<16x8xf32>
    %cst_11 = arith.constant dense<0.000000e+00> : vector<16x16xf32>
    %18 = tpu.matmul %15, %16, %cst_11 {dimension_numbers = #tpu.dot_dimension_numbers<[1], [1], [0], [0], [0, 0, 1, 0], [], []>} : vector<16x8xf32>, vector<16x8xf32>, vector<16x16xf32> -> vector<16x16xf32>
    %cst_12 = arith.constant 0.353553385 : f32
    %19 = vector.broadcast %cst_12 : f32 to vector<16x16xf32>
    %20 = arith.mulf %18, %19 : vector<16x16xf32>
    %21 = vector.broadcast %14 : vector<1x16xf32> to vector<16x16xf32>
    %22 = arith.addf %20, %21 : vector<16x16xf32>
    %cst_13 = arith.constant dense<0xFF800000> : vector<16xf32>
    %23 = vector.multi_reduction <maximumf>, %22, %cst_13 [1] : vector<16x16xf32> to vector<16xf32>
    %24 = vector.shape_cast %23 : vector<16xf32> to vector<16x1xf32>
    %25 = vector.broadcast %24 : vector<16x1xf32> to vector<16x16xf32>
    %26 = arith.subf %22, %25 : vector<16x16xf32>
    %27 = math.exp %26 : vector<16x16xf32>
    %cst_14 = arith.constant dense<0.000000e+00> : vector<16xf32>
    %28 = vector.multi_reduction <add>, %27, %cst_14 [1] : vector<16x16xf32> to vector<16xf32>
    %29 = vector.shape_cast %28 : vector<16xf32> to vector<16x1xf32>
    %cst_15 = arith.constant 9.99999968E-21 : f32
    %30 = vector.broadcast %cst_15 : f32 to vector<16x1xf32>
    %31 = arith.addf %29, %30 : vector<16x1xf32>
    %32 = tpu.reciprocal %31 {approx = true} : vector<16x1xf32> -> vector<16x1xf32>
    %33 = vector.broadcast %32 : vector<16x1xf32> to vector<16x16xf32>
    %34 = arith.mulf %27, %33 : vector<16x16xf32>
    %cst_16 = arith.constant dense<0.000000e+00> : vector<16x8xf32>
    %35 = tpu.matmul %34, %17, %cst_16 {dimension_numbers = #tpu.dot_dimension_numbers<[1], [0], [0], [1], [0, 0, 1, 1], [], []>} : vector<16x16xf32>, vector<16x8xf32>, vector<16x8xf32> -> vector<16x8xf32>
    %36 = vector.extract_strided_slice %13 {offsets = [0, 8], sizes = [16, 8], strides = [1, 1]} : vector<16x96xf32> to vector<16x8xf32>
    %37 = vector.extract_strided_slice %13 {offsets = [0, 40], sizes = [16, 8], strides = [1, 1]} : vector<16x96xf32> to vector<16x8xf32>
    %38 = vector.extract_strided_slice %13 {offsets = [0, 72], sizes = [16, 8], strides = [1, 1]} : vector<16x96xf32> to vector<16x8xf32>
    %cst_17 = arith.constant dense<0.000000e+00> : vector<16x16xf32>
    %39 = tpu.matmul %36, %37, %cst_17 {dimension_numbers = #tpu.dot_dimension_numbers<[1], [1], [0], [0], [0, 0, 1, 0], [], []>} : vector<16x8xf32>, vector<16x8xf32>, vector<16x16xf32> -> vector<16x16xf32>
    %cst_18 = arith.constant 0.353553385 : f32
    %40 = vector.broadcast %cst_18 : f32 to vector<16x16xf32>
    %41 = arith.mulf %39, %40 : vector<16x16xf32>
    %42 = vector.broadcast %14 : vector<1x16xf32> to vector<16x16xf32>
    %43 = arith.addf %41, %42 : vector<16x16xf32>
    %cst_19 = arith.constant dense<0xFF800000> : vector<16xf32>
    %44 = vector.multi_reduction <maximumf>, %43, %cst_19 [1] : vector<16x16xf32> to vector<16xf32>
    %45 = vector.shape_cast %44 : vector<16xf32> to vector<16x1xf32>
    %46 = vector.broadcast %45 : vector<16x1xf32> to vector<16x16xf32>
    %47 = arith.subf %43, %46 : vector<16x16xf32>
    %48 = math.exp %47 : vector<16x16xf32>
    %cst_20 = arith.constant dense<0.000000e+00> : vector<16xf32>
    %49 = vector.multi_reduction <add>, %48, %cst_20 [1] : vector<16x16xf32> to vector<16xf32>
    %50 = vector.shape_cast %49 : vector<16xf32> to vector<16x1xf32>
    %cst_21 = arith.constant 9.99999968E-21 : f32
    %51 = vector.broadcast %cst_21 : f32 to vector<16x1xf32>
    %52 = arith.addf %50, %51 : vector<16x1xf32>
    %53 = tpu.reciprocal %52 {approx = true} : vector<16x1xf32> -> vector<16x1xf32>
    %54 = vector.broadcast %53 : vector<16x1xf32> to vector<16x16xf32>
    %55 = arith.mulf %48, %54 : vector<16x16xf32>
    %cst_22 = arith.constant dense<0.000000e+00> : vector<16x8xf32>
    %56 = tpu.matmul %55, %38, %cst_22 {dimension_numbers = #tpu.dot_dimension_numbers<[1], [0], [0], [1], [0, 0, 1, 1], [], []>} : vector<16x16xf32>, vector<16x8xf32>, vector<16x8xf32> -> vector<16x8xf32>
    %57 = vector.extract_strided_slice %13 {offsets = [0, 16], sizes = [16, 8], strides = [1, 1]} : vector<16x96xf32> to vector<16x8xf32>
    %58 = vector.extract_strided_slice %13 {offsets = [0, 48], sizes = [16, 8], strides = [1, 1]} : vector<16x96xf32> to vector<16x8xf32>
    %59 = vector.extract_strided_slice %13 {offsets = [0, 80], sizes = [16, 8], strides = [1, 1]} : vector<16x96xf32> to vector<16x8xf32>
    %cst_23 = arith.constant dense<0.000000e+00> : vector<16x16xf32>
    %60 = tpu.matmul %57, %58, %cst_23 {dimension_numbers = #tpu.dot_dimension_numbers<[1], [1], [0], [0], [0, 0, 1, 0], [], []>} : vector<16x8xf32>, vector<16x8xf32>, vector<16x16xf32> -> vector<16x16xf32>
    %cst_24 = arith.constant 0.353553385 : f32
    %61 = vector.broadcast %cst_24 : f32 to vector<16x16xf32>
    %62 = arith.mulf %60, %61 : vector<16x16xf32>
    %63 = vector.broadcast %14 : vector<1x16xf32> to vector<16x16xf32>
    %64 = arith.addf %62, %63 : vector<16x16xf32>
    %cst_25 = arith.constant dense<0xFF800000> : vector<16xf32>
    %65 = vector.multi_reduction <maximumf>, %64, %cst_25 [1] : vector<16x16xf32> to vector<16xf32>
    %66 = vector.shape_cast %65 : vector<16xf32> to vector<16x1xf32>
    %67 = vector.broadcast %66 : vector<16x1xf32> to vector<16x16xf32>
    %68 = arith.subf %64, %67 : vector<16x16xf32>
    %69 = math.exp %68 : vector<16x16xf32>
    %cst_26 = arith.constant dense<0.000000e+00> : vector<16xf32>
    %70 = vector.multi_reduction <add>, %69, %cst_26 [1] : vector<16x16xf32> to vector<16xf32>
    %71 = vector.shape_cast %70 : vector<16xf32> to vector<16x1xf32>
    %cst_27 = arith.constant 9.99999968E-21 : f32
    %72 = vector.broadcast %cst_27 : f32 to vector<16x1xf32>
    %73 = arith.addf %71, %72 : vector<16x1xf32>
    %74 = tpu.reciprocal %73 {approx = true} : vector<16x1xf32> -> vector<16x1xf32>
    %75 = vector.broadcast %74 : vector<16x1xf32> to vector<16x16xf32>
    %76 = arith.mulf %69, %75 : vector<16x16xf32>
    %cst_28 = arith.constant dense<0.000000e+00> : vector<16x8xf32>
    %77 = tpu.matmul %76, %59, %cst_28 {dimension_numbers = #tpu.dot_dimension_numbers<[1], [0], [0], [1], [0, 0, 1, 1], [], []>} : vector<16x16xf32>, vector<16x8xf32>, vector<16x8xf32> -> vector<16x8xf32>
    %78 = vector.extract_strided_slice %13 {offsets = [0, 24], sizes = [16, 8], strides = [1, 1]} : vector<16x96xf32> to vector<16x8xf32>
    %79 = vector.extract_strided_slice %13 {offsets = [0, 56], sizes = [16, 8], strides = [1, 1]} : vector<16x96xf32> to vector<16x8xf32>
    %80 = vector.extract_strided_slice %13 {offsets = [0, 88], sizes = [16, 8], strides = [1, 1]} : vector<16x96xf32> to vector<16x8xf32>
    %cst_29 = arith.constant dense<0.000000e+00> : vector<16x16xf32>
    %81 = tpu.matmul %78, %79, %cst_29 {dimension_numbers = #tpu.dot_dimension_numbers<[1], [1], [0], [0], [0, 0, 1, 0], [], []>} : vector<16x8xf32>, vector<16x8xf32>, vector<16x16xf32> -> vector<16x16xf32>
    %cst_30 = arith.constant 0.353553385 : f32
    %82 = vector.broadcast %cst_30 : f32 to vector<16x16xf32>
    %83 = arith.mulf %81, %82 : vector<16x16xf32>
    %84 = vector.broadcast %14 : vector<1x16xf32> to vector<16x16xf32>
    %85 = arith.addf %83, %84 : vector<16x16xf32>
    %cst_31 = arith.constant dense<0xFF800000> : vector<16xf32>
    %86 = vector.multi_reduction <maximumf>, %85, %cst_31 [1] : vector<16x16xf32> to vector<16xf32>
    %87 = vector.shape_cast %86 : vector<16xf32> to vector<16x1xf32>
    %88 = vector.broadcast %87 : vector<16x1xf32> to vector<16x16xf32>
    %89 = arith.subf %85, %88 : vector<16x16xf32>
    %90 = math.exp %89 : vector<16x16xf32>
    %cst_32 = arith.constant dense<0.000000e+00> : vector<16xf32>
    %91 = vector.multi_reduction <add>, %90, %cst_32 [1] : vector<16x16xf32> to vector<16xf32>
    %92 = vector.shape_cast %91 : vector<16xf32> to vector<16x1xf32>
    %cst_33 = arith.constant 9.99999968E-21 : f32
    %93 = vector.broadcast %cst_33 : f32 to vector<16x1xf32>
    %94 = arith.addf %92, %93 : vector<16x1xf32>
    %95 = tpu.reciprocal %94 {approx = true} : vector<16x1xf32> -> vector<16x1xf32>
    %96 = vector.broadcast %95 : vector<16x1xf32> to vector<16x16xf32>
    %97 = arith.mulf %90, %96 : vector<16x16xf32>
    %cst_34 = arith.constant dense<0.000000e+00> : vector<16x8xf32>
    %98 = tpu.matmul %97, %80, %cst_34 {dimension_numbers = #tpu.dot_dimension_numbers<[1], [0], [0], [1], [0, 0, 1, 1], [], []>} : vector<16x16xf32>, vector<16x8xf32>, vector<16x8xf32> -> vector<16x8xf32>
    %99 = tpu.concatenate %35, %56, %77, %98 in 1 : vector<16x8xf32>, vector<16x8xf32>, vector<16x8xf32>, vector<16x8xf32> -> vector<16x32xf32>
    %100 = vector.extract_strided_slice %12 {offsets = [16, 0], sizes = [16, 96], strides = [1, 1]} : vector<32x96xf32> to vector<16x96xf32>
    %101 = vector.extract_strided_slice %1 {offsets = [1, 0], sizes = [1, 16], strides = [1, 1]} : vector<2x16xf32> to vector<1x16xf32>
    %102 = vector.extract_strided_slice %100 {offsets = [0, 0], sizes = [16, 8], strides = [1, 1]} : vector<16x96xf32> to vector<16x8xf32>
    %103 = vector.extract_strided_slice %100 {offsets = [0, 32], sizes = [16, 8], strides = [1, 1]} : vector<16x96xf32> to vector<16x8xf32>
    %104 = vector.extract_strided_slice %100 {offsets = [0, 64], sizes = [16, 8], strides = [1, 1]} : vector<16x96xf32> to vector<16x8xf32>
    %cst_35 = arith.constant dense<0.000000e+00> : vector<16x16xf32>
    %105 = tpu.matmul %102, %103, %cst_35 {dimension_numbers = #tpu.dot_dimension_numbers<[1], [1], [0], [0], [0, 0, 1, 0], [], []>} : vector<16x8xf32>, vector<16x8xf32>, vector<16x16xf32> -> vector<16x16xf32>
    %cst_36 = arith.constant 0.353553385 : f32
    %106 = vector.broadcast %cst_36 : f32 to vector<16x16xf32>
    %107 = arith.mulf %105, %106 : vector<16x16xf32>
    %108 = vector.broadcast %101 : vector<1x16xf32> to vector<16x16xf32>
    %109 = arith.addf %107, %108 : vector<16x16xf32>
    %cst_37 = arith.constant dense<0xFF800000> : vector<16xf32>
    %110 = vector.multi_reduction <maximumf>, %109, %cst_37 [1] : vector<16x16xf32> to vector<16xf32>
    %111 = vector.shape_cast %110 : vector<16xf32> to vector<16x1xf32>
    %112 = vector.broadcast %111 : vector<16x1xf32> to vector<16x16xf32>
    %113 = arith.subf %109, %112 : vector<16x16xf32>
    %114 = math.exp %113 : vector<16x16xf32>
    %cst_38 = arith.constant dense<0.000000e+00> : vector<16xf32>
    %115 = vector.multi_reduction <add>, %114, %cst_38 [1] : vector<16x16xf32> to vector<16xf32>
    %116 = vector.shape_cast %115 : vector<16xf32> to vector<16x1xf32>
    %cst_39 = arith.constant 9.99999968E-21 : f32
    %117 = vector.broadcast %cst_39 : f32 to vector<16x1xf32>
    %118 = arith.addf %116, %117 : vector<16x1xf32>
    %119 = tpu.reciprocal %118 {approx = true} : vector<16x1xf32> -> vector<16x1xf32>
    %120 = vector.broadcast %119 : vector<16x1xf32> to vector<16x16xf32>
    %121 = arith.mulf %114, %120 : vector<16x16xf32>
    %cst_40 = arith.constant dense<0.000000e+00> : vector<16x8xf32>
    %122 = tpu.matmul %121, %104, %cst_40 {dimension_numbers = #tpu.dot_dimension_numbers<[1], [0], [0], [1], [0, 0, 1, 1], [], []>} : vector<16x16xf32>, vector<16x8xf32>, vector<16x8xf32> -> vector<16x8xf32>
    %123 = vector.extract_strided_slice %100 {offsets = [0, 8], sizes = [16, 8], strides = [1, 1]} : vector<16x96xf32> to vector<16x8xf32>
    %124 = vector.extract_strided_slice %100 {offsets = [0, 40], sizes = [16, 8], strides = [1, 1]} : vector<16x96xf32> to vector<16x8xf32>
    %125 = vector.extract_strided_slice %100 {offsets = [0, 72], sizes = [16, 8], strides = [1, 1]} : vector<16x96xf32> to vector<16x8xf32>
    %cst_41 = arith.constant dense<0.000000e+00> : vector<16x16xf32>
    %126 = tpu.matmul %123, %124, %cst_41 {dimension_numbers = #tpu.dot_dimension_numbers<[1], [1], [0], [0], [0, 0, 1, 0], [], []>} : vector<16x8xf32>, vector<16x8xf32>, vector<16x16xf32> -> vector<16x16xf32>
    %cst_42 = arith.constant 0.353553385 : f32
    %127 = vector.broadcast %cst_42 : f32 to vector<16x16xf32>
    %128 = arith.mulf %126, %127 : vector<16x16xf32>
    %129 = vector.broadcast %101 : vector<1x16xf32> to vector<16x16xf32>
    %130 = arith.addf %128, %129 : vector<16x16xf32>
    %cst_43 = arith.constant dense<0xFF800000> : vector<16xf32>
    %131 = vector.multi_reduction <maximumf>, %130, %cst_43 [1] : vector<16x16xf32> to vector<16xf32>
    %132 = vector.shape_cast %131 : vector<16xf32> to vector<16x1xf32>
    %133 = vector.broadcast %132 : vector<16x1xf32> to vector<16x16xf32>
    %134 = arith.subf %130, %133 : vector<16x16xf32>
    %135 = math.exp %134 : vector<16x16xf32>
    %cst_44 = arith.constant dense<0.000000e+00> : vector<16xf32>
    %136 = vector.multi_reduction <add>, %135, %cst_44 [1] : vector<16x16xf32> to vector<16xf32>
    %137 = vector.shape_cast %136 : vector<16xf32> to vector<16x1xf32>
    %cst_45 = arith.constant 9.99999968E-21 : f32
    %138 = vector.broadcast %cst_45 : f32 to vector<16x1xf32>
    %139 = arith.addf %137, %138 : vector<16x1xf32>
    %140 = tpu.reciprocal %139 {approx = true} : vector<16x1xf32> -> vector<16x1xf32>
    %141 = vector.broadcast %140 : vector<16x1xf32> to vector<16x16xf32>
    %142 = arith.mulf %135, %141 : vector<16x16xf32>
    %cst_46 = arith.constant dense<0.000000e+00> : vector<16x8xf32>
    %143 = tpu.matmul %142, %125, %cst_46 {dimension_numbers = #tpu.dot_dimension_numbers<[1], [0], [0], [1], [0, 0, 1, 1], [], []>} : vector<16x16xf32>, vector<16x8xf32>, vector<16x8xf32> -> vector<16x8xf32>
    %144 = vector.extract_strided_slice %100 {offsets = [0, 16], sizes = [16, 8], strides = [1, 1]} : vector<16x96xf32> to vector<16x8xf32>
    %145 = vector.extract_strided_slice %100 {offsets = [0, 48], sizes = [16, 8], strides = [1, 1]} : vector<16x96xf32> to vector<16x8xf32>
    %146 = vector.extract_strided_slice %100 {offsets = [0, 80], sizes = [16, 8], strides = [1, 1]} : vector<16x96xf32> to vector<16x8xf32>
    %cst_47 = arith.constant dense<0.000000e+00> : vector<16x16xf32>
    %147 = tpu.matmul %144, %145, %cst_47 {dimension_numbers = #tpu.dot_dimension_numbers<[1], [1], [0], [0], [0, 0, 1, 0], [], []>} : vector<16x8xf32>, vector<16x8xf32>, vector<16x16xf32> -> vector<16x16xf32>
    %cst_48 = arith.constant 0.353553385 : f32
    %148 = vector.broadcast %cst_48 : f32 to vector<16x16xf32>
    %149 = arith.mulf %147, %148 : vector<16x16xf32>
    %150 = vector.broadcast %101 : vector<1x16xf32> to vector<16x16xf32>
    %151 = arith.addf %149, %150 : vector<16x16xf32>
    %cst_49 = arith.constant dense<0xFF800000> : vector<16xf32>
    %152 = vector.multi_reduction <maximumf>, %151, %cst_49 [1] : vector<16x16xf32> to vector<16xf32>
    %153 = vector.shape_cast %152 : vector<16xf32> to vector<16x1xf32>
    %154 = vector.broadcast %153 : vector<16x1xf32> to vector<16x16xf32>
    %155 = arith.subf %151, %154 : vector<16x16xf32>
    %156 = math.exp %155 : vector<16x16xf32>
    %cst_50 = arith.constant dense<0.000000e+00> : vector<16xf32>
    %157 = vector.multi_reduction <add>, %156, %cst_50 [1] : vector<16x16xf32> to vector<16xf32>
    %158 = vector.shape_cast %157 : vector<16xf32> to vector<16x1xf32>
    %cst_51 = arith.constant 9.99999968E-21 : f32
    %159 = vector.broadcast %cst_51 : f32 to vector<16x1xf32>
    %160 = arith.addf %158, %159 : vector<16x1xf32>
    %161 = tpu.reciprocal %160 {approx = true} : vector<16x1xf32> -> vector<16x1xf32>
    %162 = vector.broadcast %161 : vector<16x1xf32> to vector<16x16xf32>
    %163 = arith.mulf %156, %162 : vector<16x16xf32>
    %cst_52 = arith.constant dense<0.000000e+00> : vector<16x8xf32>
    %164 = tpu.matmul %163, %146, %cst_52 {dimension_numbers = #tpu.dot_dimension_numbers<[1], [0], [0], [1], [0, 0, 1, 1], [], []>} : vector<16x16xf32>, vector<16x8xf32>, vector<16x8xf32> -> vector<16x8xf32>
    %165 = vector.extract_strided_slice %100 {offsets = [0, 24], sizes = [16, 8], strides = [1, 1]} : vector<16x96xf32> to vector<16x8xf32>
    %166 = vector.extract_strided_slice %100 {offsets = [0, 56], sizes = [16, 8], strides = [1, 1]} : vector<16x96xf32> to vector<16x8xf32>
    %167 = vector.extract_strided_slice %100 {offsets = [0, 88], sizes = [16, 8], strides = [1, 1]} : vector<16x96xf32> to vector<16x8xf32>
    %cst_53 = arith.constant dense<0.000000e+00> : vector<16x16xf32>
    %168 = tpu.matmul %165, %166, %cst_53 {dimension_numbers = #tpu.dot_dimension_numbers<[1], [1], [0], [0], [0, 0, 1, 0], [], []>} : vector<16x8xf32>, vector<16x8xf32>, vector<16x16xf32> -> vector<16x16xf32>
    %cst_54 = arith.constant 0.353553385 : f32
    %169 = vector.broadcast %cst_54 : f32 to vector<16x16xf32>
    %170 = arith.mulf %168, %169 : vector<16x16xf32>
    %171 = vector.broadcast %101 : vector<1x16xf32> to vector<16x16xf32>
    %172 = arith.addf %170, %171 : vector<16x16xf32>
    %cst_55 = arith.constant dense<0xFF800000> : vector<16xf32>
    %173 = vector.multi_reduction <maximumf>, %172, %cst_55 [1] : vector<16x16xf32> to vector<16xf32>
    %174 = vector.shape_cast %173 : vector<16xf32> to vector<16x1xf32>
    %175 = vector.broadcast %174 : vector<16x1xf32> to vector<16x16xf32>
    %176 = arith.subf %172, %175 : vector<16x16xf32>
    %177 = math.exp %176 : vector<16x16xf32>
    %cst_56 = arith.constant dense<0.000000e+00> : vector<16xf32>
    %178 = vector.multi_reduction <add>, %177, %cst_56 [1] : vector<16x16xf32> to vector<16xf32>
    %179 = vector.shape_cast %178 : vector<16xf32> to vector<16x1xf32>
    %cst_57 = arith.constant 9.99999968E-21 : f32
    %180 = vector.broadcast %cst_57 : f32 to vector<16x1xf32>
    %181 = arith.addf %179, %180 : vector<16x1xf32>
    %182 = tpu.reciprocal %181 {approx = true} : vector<16x1xf32> -> vector<16x1xf32>
    %183 = vector.broadcast %182 : vector<16x1xf32> to vector<16x16xf32>
    %184 = arith.mulf %177, %183 : vector<16x16xf32>
    %cst_58 = arith.constant dense<0.000000e+00> : vector<16x8xf32>
    %185 = tpu.matmul %184, %167, %cst_58 {dimension_numbers = #tpu.dot_dimension_numbers<[1], [0], [0], [1], [0, 0, 1, 1], [], []>} : vector<16x16xf32>, vector<16x8xf32>, vector<16x8xf32> -> vector<16x8xf32>
    %186 = tpu.concatenate %122, %143, %164, %185 in 1 : vector<16x8xf32>, vector<16x8xf32>, vector<16x8xf32>, vector<16x8xf32> -> vector<16x32xf32>
    %187 = tpu.concatenate %99, %186 in 0 : vector<16x32xf32>, vector<16x32xf32> -> vector<32x32xf32>
    %188 = arith.truncf %187 : vector<32x32xf32> to vector<32x32xbf16>
    %189 = vector.extract_strided_slice %4 {offsets = [0, 96], sizes = [32, 32], strides = [1, 1]} : vector<32x128xbf16> to vector<32x32xbf16>
    %cst_59 = arith.constant dense<0.000000e+00> : vector<32x32xf32>
    %190 = tpu.matmul %188, %189, %cst_59 {dimension_numbers = #tpu.dot_dimension_numbers<[1], [0], [0], [1], [0, 0, 1, 1], [], []>} : vector<32x32xbf16>, vector<32x32xbf16>, vector<32x32xf32> -> vector<32x32xf32>
    %191 = vector.extract_strided_slice %6 {offsets = [0, 96], sizes = [1, 32], strides = [1, 1]} : vector<1x128xf32> to vector<1x32xf32>
    %192 = vector.broadcast %191 : vector<1x32xf32> to vector<32x32xf32>
    %193 = arith.addf %190, %192 : vector<32x32xf32>
    %194 = arith.addf %0, %193 : vector<32x32xf32>
    %195 = vector.extract_strided_slice %2 {offsets = [0, 0], sizes = [1, 32], strides = [1, 1]} : vector<10x32xf32> to vector<1x32xf32>
    %196 = vector.extract_strided_slice %2 {offsets = [1, 0], sizes = [1, 32], strides = [1, 1]} : vector<10x32xf32> to vector<1x32xf32>
    %cst_60 = arith.constant dense<0.000000e+00> : vector<32xf32>
    %197 = vector.multi_reduction <add>, %194, %cst_60 [1] : vector<32x32xf32> to vector<32xf32>
    %198 = vector.shape_cast %197 : vector<32xf32> to vector<32x1xf32>
    %cst_61 = arith.constant 3.200000e+01 : f32
    %199 = vector.broadcast %cst_61 : f32 to vector<32x1xf32>
    %200 = arith.divf %198, %199 : vector<32x1xf32>
    %201 = vector.broadcast %200 : vector<32x1xf32> to vector<32x32xf32>
    %202 = arith.subf %194, %201 : vector<32x32xf32>
    %203 = arith.mulf %202, %202 : vector<32x32xf32>
    %cst_62 = arith.constant dense<0.000000e+00> : vector<32xf32>
    %204 = vector.multi_reduction <add>, %203, %cst_62 [1] : vector<32x32xf32> to vector<32xf32>
    %205 = vector.shape_cast %204 : vector<32xf32> to vector<32x1xf32>
    %cst_63 = arith.constant 3.200000e+01 : f32
    %206 = vector.broadcast %cst_63 : f32 to vector<32x1xf32>
    %207 = arith.divf %205, %206 : vector<32x1xf32>
    %208 = vector.broadcast %200 : vector<32x1xf32> to vector<32x32xf32>
    %209 = arith.subf %194, %208 : vector<32x32xf32>
    %cst_64 = arith.constant 9.99999974E-6 : f32
    %210 = vector.broadcast %cst_64 : f32 to vector<32x1xf32>
    %211 = arith.addf %207, %210 : vector<32x1xf32>
    %212 = math.rsqrt %211 : vector<32x1xf32>
    %213 = vector.broadcast %212 : vector<32x1xf32> to vector<32x32xf32>
    %214 = arith.mulf %209, %213 : vector<32x32xf32>
    %215 = vector.broadcast %195 : vector<1x32xf32> to vector<32x32xf32>
    %216 = arith.mulf %214, %215 : vector<32x32xf32>
    %217 = vector.broadcast %196 : vector<1x32xf32> to vector<32x32xf32>
    %218 = arith.addf %216, %217 : vector<32x32xf32>
    %219 = arith.truncf %218 : vector<32x32xf32> to vector<32x32xbf16>
    %c0_65 = arith.constant 0 : index
    %c0_66 = arith.constant 0 : index
    %c0_67 = arith.constant 0 : index
    %220 = vector.load %arg4[%c0_65, %c0_66, %c0_67] : memref<2x32x64xbf16, #tpu.memory_space<vmem>>, vector<1x32x64xbf16>
    %221 = vector.shape_cast %220 : vector<1x32x64xbf16> to vector<32x64xbf16>
    %cst_68 = arith.constant dense<0.000000e+00> : vector<32x64xf32>
    %222 = tpu.matmul %219, %221, %cst_68 {dimension_numbers = #tpu.dot_dimension_numbers<[1], [0], [0], [1], [0, 0, 1, 1], [], []>} : vector<32x32xbf16>, vector<32x64xbf16>, vector<32x64xf32> -> vector<32x64xf32>
    %c0_69 = arith.constant 0 : index
    %c0_70 = arith.constant 0 : index
    %c0_71 = arith.constant 0 : index
    %223 = vector.load %arg5[%c0_69, %c0_70, %c0_71] : memref<2x1x64xf32, #tpu.memory_space<vmem>>, vector<1x1x64xf32>
    %224 = vector.shape_cast %223 : vector<1x1x64xf32> to vector<1x64xf32>
    %225 = vector.broadcast %224 : vector<1x64xf32> to vector<32x64xf32>
    %226 = arith.addf %222, %225 : vector<32x64xf32>
    %227 = arith.mulf %226, %226 : vector<32x64xf32>
    %228 = arith.mulf %226, %227 : vector<32x64xf32>
    %cst_72 = arith.constant 4.471500e-02 : f32
    %229 = vector.broadcast %cst_72 : f32 to vector<32x64xf32>
    %230 = arith.mulf %229, %228 : vector<32x64xf32>
    %231 = arith.addf %226, %230 : vector<32x64xf32>
    %cst_73 = arith.constant 0.797884583 : f32
    %232 = vector.broadcast %cst_73 : f32 to vector<32x64xf32>
    %233 = arith.mulf %232, %231 : vector<32x64xf32>
    %234 = math.tanh %233 : vector<32x64xf32>
    %cst_74 = arith.constant 1.000000e+00 : f32
    %235 = vector.broadcast %cst_74 : f32 to vector<32x64xf32>
    %236 = arith.addf %235, %234 : vector<32x64xf32>
    %cst_75 = arith.constant 5.000000e-01 : f32
    %237 = vector.broadcast %cst_75 : f32 to vector<32x64xf32>
    %238 = arith.mulf %237, %236 : vector<32x64xf32>
    %239 = arith.mulf %226, %238 : vector<32x64xf32>
    %240 = arith.truncf %239 : vector<32x64xf32> to vector<32x64xbf16>
    %c0_76 = arith.constant 0 : index
    %c0_77 = arith.constant 0 : index
    %c0_78 = arith.constant 0 : index
    %241 = vector.load %arg6[%c0_76, %c0_77, %c0_78] : memref<2x64x32xbf16, #tpu.memory_space<vmem>>, vector<1x64x32xbf16>
    %242 = vector.shape_cast %241 : vector<1x64x32xbf16> to vector<64x32xbf16>
    %cst_79 = arith.constant dense<0.000000e+00> : vector<32x32xf32>
    %243 = tpu.matmul %240, %242, %cst_79 {dimension_numbers = #tpu.dot_dimension_numbers<[1], [0], [0], [1], [0, 0, 1, 1], [], []>} : vector<32x64xbf16>, vector<64x32xbf16>, vector<32x32xf32> -> vector<32x32xf32>
    %c0_80 = arith.constant 0 : index
    %c0_81 = arith.constant 0 : index
    %c0_82 = arith.constant 0 : index
    %244 = vector.load %arg7[%c0_80, %c0_81, %c0_82] : memref<2x1x32xf32, #tpu.memory_space<vmem>>, vector<1x1x32xf32>
    %245 = vector.shape_cast %244 : vector<1x1x32xf32> to vector<1x32xf32>
    %246 = vector.broadcast %245 : vector<1x32xf32> to vector<32x32xf32>
    %247 = arith.addf %243, %246 : vector<32x32xf32>
    %248 = arith.addf %218, %247 : vector<32x32xf32>
    %249 = vector.extract_strided_slice %2 {offsets = [2, 0], sizes = [1, 32], strides = [1, 1]} : vector<10x32xf32> to vector<1x32xf32>
    %250 = vector.extract_strided_slice %2 {offsets = [3, 0], sizes = [1, 32], strides = [1, 1]} : vector<10x32xf32> to vector<1x32xf32>
    %cst_83 = arith.constant dense<0.000000e+00> : vector<32xf32>
    %251 = vector.multi_reduction <add>, %248, %cst_83 [1] : vector<32x32xf32> to vector<32xf32>
    %252 = vector.shape_cast %251 : vector<32xf32> to vector<32x1xf32>
    %cst_84 = arith.constant 3.200000e+01 : f32
    %253 = vector.broadcast %cst_84 : f32 to vector<32x1xf32>
    %254 = arith.divf %252, %253 : vector<32x1xf32>
    %255 = vector.broadcast %254 : vector<32x1xf32> to vector<32x32xf32>
    %256 = arith.subf %248, %255 : vector<32x32xf32>
    %257 = arith.mulf %256, %256 : vector<32x32xf32>
    %cst_85 = arith.constant dense<0.000000e+00> : vector<32xf32>
    %258 = vector.multi_reduction <add>, %257, %cst_85 [1] : vector<32x32xf32> to vector<32xf32>
    %259 = vector.shape_cast %258 : vector<32xf32> to vector<32x1xf32>
    %cst_86 = arith.constant 3.200000e+01 : f32
    %260 = vector.broadcast %cst_86 : f32 to vector<32x1xf32>
    %261 = arith.divf %259, %260 : vector<32x1xf32>
    %262 = vector.broadcast %254 : vector<32x1xf32> to vector<32x32xf32>
    %263 = arith.subf %248, %262 : vector<32x32xf32>
    %cst_87 = arith.constant 9.99999974E-6 : f32
    %264 = vector.broadcast %cst_87 : f32 to vector<32x1xf32>
    %265 = arith.addf %261, %264 : vector<32x1xf32>
    %266 = math.rsqrt %265 : vector<32x1xf32>
    %267 = vector.broadcast %266 : vector<32x1xf32> to vector<32x32xf32>
    %268 = arith.mulf %263, %267 : vector<32x32xf32>
    %269 = vector.broadcast %249 : vector<1x32xf32> to vector<32x32xf32>
    %270 = arith.mulf %268, %269 : vector<32x32xf32>
    %271 = vector.broadcast %250 : vector<1x32xf32> to vector<32x32xf32>
    %272 = arith.addf %270, %271 : vector<32x32xf32>
    %c1 = arith.constant 1 : index
    %c0_88 = arith.constant 0 : index
    %c0_89 = arith.constant 0 : index
    %273 = vector.load %arg2[%c1, %c0_88, %c0_89] : memref<2x32x128xbf16, #tpu.memory_space<vmem>>, vector<1x32x128xbf16>
    %274 = vector.shape_cast %273 : vector<1x32x128xbf16> to vector<32x128xbf16>
    %c1_90 = arith.constant 1 : index
    %c0_91 = arith.constant 0 : index
    %c0_92 = arith.constant 0 : index
    %275 = vector.load %arg3[%c1_90, %c0_91, %c0_92] : memref<2x1x128xf32, #tpu.memory_space<vmem>>, vector<1x1x128xf32>
    %276 = vector.shape_cast %275 : vector<1x1x128xf32> to vector<1x128xf32>
    %277 = arith.truncf %272 : vector<32x32xf32> to vector<32x32xbf16>
    %278 = vector.extract_strided_slice %274 {offsets = [0, 0], sizes = [32, 96], strides = [1, 1]} : vector<32x128xbf16> to vector<32x96xbf16>
    %cst_93 = arith.constant dense<0.000000e+00> : vector<32x96xf32>
    %279 = tpu.matmul %277, %278, %cst_93 {dimension_numbers = #tpu.dot_dimension_numbers<[1], [0], [0], [1], [0, 0, 1, 1], [], []>} : vector<32x32xbf16>, vector<32x96xbf16>, vector<32x96xf32> -> vector<32x96xf32>
    %280 = vector.extract_strided_slice %276 {offsets = [0, 0], sizes = [1, 96], strides = [1, 1]} : vector<1x128xf32> to vector<1x96xf32>
    %281 = vector.broadcast %280 : vector<1x96xf32> to vector<32x96xf32>
    %282 = arith.addf %279, %281 : vector<32x96xf32>
    %283 = vector.extract_strided_slice %282 {offsets = [0, 0], sizes = [16, 96], strides = [1, 1]} : vector<32x96xf32> to vector<16x96xf32>
    %284 = vector.extract_strided_slice %1 {offsets = [0, 0], sizes = [1, 16], strides = [1, 1]} : vector<2x16xf32> to vector<1x16xf32>
    %285 = vector.extract_strided_slice %283 {offsets = [0, 0], sizes = [16, 8], strides = [1, 1]} : vector<16x96xf32> to vector<16x8xf32>
    %286 = vector.extract_strided_slice %283 {offsets = [0, 32], sizes = [16, 8], strides = [1, 1]} : vector<16x96xf32> to vector<16x8xf32>
    %287 = vector.extract_strided_slice %283 {offsets = [0, 64], sizes = [16, 8], strides = [1, 1]} : vector<16x96xf32> to vector<16x8xf32>
    %cst_94 = arith.constant dense<0.000000e+00> : vector<16x16xf32>
    %288 = tpu.matmul %285, %286, %cst_94 {dimension_numbers = #tpu.dot_dimension_numbers<[1], [1], [0], [0], [0, 0, 1, 0], [], []>} : vector<16x8xf32>, vector<16x8xf32>, vector<16x16xf32> -> vector<16x16xf32>
    %cst_95 = arith.constant 0.353553385 : f32
    %289 = vector.broadcast %cst_95 : f32 to vector<16x16xf32>
    %290 = arith.mulf %288, %289 : vector<16x16xf32>
    %291 = vector.broadcast %284 : vector<1x16xf32> to vector<16x16xf32>
    %292 = arith.addf %290, %291 : vector<16x16xf32>
    %cst_96 = arith.constant dense<0xFF800000> : vector<16xf32>
    %293 = vector.multi_reduction <maximumf>, %292, %cst_96 [1] : vector<16x16xf32> to vector<16xf32>
    %294 = vector.shape_cast %293 : vector<16xf32> to vector<16x1xf32>
    %295 = vector.broadcast %294 : vector<16x1xf32> to vector<16x16xf32>
    %296 = arith.subf %292, %295 : vector<16x16xf32>
    %297 = math.exp %296 : vector<16x16xf32>
    %cst_97 = arith.constant dense<0.000000e+00> : vector<16xf32>
    %298 = vector.multi_reduction <add>, %297, %cst_97 [1] : vector<16x16xf32> to vector<16xf32>
    %299 = vector.shape_cast %298 : vector<16xf32> to vector<16x1xf32>
    %cst_98 = arith.constant 9.99999968E-21 : f32
    %300 = vector.broadcast %cst_98 : f32 to vector<16x1xf32>
    %301 = arith.addf %299, %300 : vector<16x1xf32>
    %302 = tpu.reciprocal %301 {approx = true} : vector<16x1xf32> -> vector<16x1xf32>
    %303 = vector.broadcast %302 : vector<16x1xf32> to vector<16x16xf32>
    %304 = arith.mulf %297, %303 : vector<16x16xf32>
    %cst_99 = arith.constant dense<0.000000e+00> : vector<16x8xf32>
    %305 = tpu.matmul %304, %287, %cst_99 {dimension_numbers = #tpu.dot_dimension_numbers<[1], [0], [0], [1], [0, 0, 1, 1], [], []>} : vector<16x16xf32>, vector<16x8xf32>, vector<16x8xf32> -> vector<16x8xf32>
    %306 = vector.extract_strided_slice %283 {offsets = [0, 8], sizes = [16, 8], strides = [1, 1]} : vector<16x96xf32> to vector<16x8xf32>
    %307 = vector.extract_strided_slice %283 {offsets = [0, 40], sizes = [16, 8], strides = [1, 1]} : vector<16x96xf32> to vector<16x8xf32>
    %308 = vector.extract_strided_slice %283 {offsets = [0, 72], sizes = [16, 8], strides = [1, 1]} : vector<16x96xf32> to vector<16x8xf32>
    %cst_100 = arith.constant dense<0.000000e+00> : vector<16x16xf32>
    %309 = tpu.matmul %306, %307, %cst_100 {dimension_numbers = #tpu.dot_dimension_numbers<[1], [1], [0], [0], [0, 0, 1, 0], [], []>} : vector<16x8xf32>, vector<16x8xf32>, vector<16x16xf32> -> vector<16x16xf32>
    %cst_101 = arith.constant 0.353553385 : f32
    %310 = vector.broadcast %cst_101 : f32 to vector<16x16xf32>
    %311 = arith.mulf %309, %310 : vector<16x16xf32>
    %312 = vector.broadcast %284 : vector<1x16xf32> to vector<16x16xf32>
    %313 = arith.addf %311, %312 : vector<16x16xf32>
    %cst_102 = arith.constant dense<0xFF800000> : vector<16xf32>
    %314 = vector.multi_reduction <maximumf>, %313, %cst_102 [1] : vector<16x16xf32> to vector<16xf32>
    %315 = vector.shape_cast %314 : vector<16xf32> to vector<16x1xf32>
    %316 = vector.broadcast %315 : vector<16x1xf32> to vector<16x16xf32>
    %317 = arith.subf %313, %316 : vector<16x16xf32>
    %318 = math.exp %317 : vector<16x16xf32>
    %cst_103 = arith.constant dense<0.000000e+00> : vector<16xf32>
    %319 = vector.multi_reduction <add>, %318, %cst_103 [1] : vector<16x16xf32> to vector<16xf32>
    %320 = vector.shape_cast %319 : vector<16xf32> to vector<16x1xf32>
    %cst_104 = arith.constant 9.99999968E-21 : f32
    %321 = vector.broadcast %cst_104 : f32 to vector<16x1xf32>
    %322 = arith.addf %320, %321 : vector<16x1xf32>
    %323 = tpu.reciprocal %322 {approx = true} : vector<16x1xf32> -> vector<16x1xf32>
    %324 = vector.broadcast %323 : vector<16x1xf32> to vector<16x16xf32>
    %325 = arith.mulf %318, %324 : vector<16x16xf32>
    %cst_105 = arith.constant dense<0.000000e+00> : vector<16x8xf32>
    %326 = tpu.matmul %325, %308, %cst_105 {dimension_numbers = #tpu.dot_dimension_numbers<[1], [0], [0], [1], [0, 0, 1, 1], [], []>} : vector<16x16xf32>, vector<16x8xf32>, vector<16x8xf32> -> vector<16x8xf32>
    %327 = vector.extract_strided_slice %283 {offsets = [0, 16], sizes = [16, 8], strides = [1, 1]} : vector<16x96xf32> to vector<16x8xf32>
    %328 = vector.extract_strided_slice %283 {offsets = [0, 48], sizes = [16, 8], strides = [1, 1]} : vector<16x96xf32> to vector<16x8xf32>
    %329 = vector.extract_strided_slice %283 {offsets = [0, 80], sizes = [16, 8], strides = [1, 1]} : vector<16x96xf32> to vector<16x8xf32>
    %cst_106 = arith.constant dense<0.000000e+00> : vector<16x16xf32>
    %330 = tpu.matmul %327, %328, %cst_106 {dimension_numbers = #tpu.dot_dimension_numbers<[1], [1], [0], [0], [0, 0, 1, 0], [], []>} : vector<16x8xf32>, vector<16x8xf32>, vector<16x16xf32> -> vector<16x16xf32>
    %cst_107 = arith.constant 0.353553385 : f32
    %331 = vector.broadcast %cst_107 : f32 to vector<16x16xf32>
    %332 = arith.mulf %330, %331 : vector<16x16xf32>
    %333 = vector.broadcast %284 : vector<1x16xf32> to vector<16x16xf32>
    %334 = arith.addf %332, %333 : vector<16x16xf32>
    %cst_108 = arith.constant dense<0xFF800000> : vector<16xf32>
    %335 = vector.multi_reduction <maximumf>, %334, %cst_108 [1] : vector<16x16xf32> to vector<16xf32>
    %336 = vector.shape_cast %335 : vector<16xf32> to vector<16x1xf32>
    %337 = vector.broadcast %336 : vector<16x1xf32> to vector<16x16xf32>
    %338 = arith.subf %334, %337 : vector<16x16xf32>
    %339 = math.exp %338 : vector<16x16xf32>
    %cst_109 = arith.constant dense<0.000000e+00> : vector<16xf32>
    %340 = vector.multi_reduction <add>, %339, %cst_109 [1] : vector<16x16xf32> to vector<16xf32>
    %341 = vector.shape_cast %340 : vector<16xf32> to vector<16x1xf32>
    %cst_110 = arith.constant 9.99999968E-21 : f32
    %342 = vector.broadcast %cst_110 : f32 to vector<16x1xf32>
    %343 = arith.addf %341, %342 : vector<16x1xf32>
    %344 = tpu.reciprocal %343 {approx = true} : vector<16x1xf32> -> vector<16x1xf32>
    %345 = vector.broadcast %344 : vector<16x1xf32> to vector<16x16xf32>
    %346 = arith.mulf %339, %345 : vector<16x16xf32>
    %cst_111 = arith.constant dense<0.000000e+00> : vector<16x8xf32>
    %347 = tpu.matmul %346, %329, %cst_111 {dimension_numbers = #tpu.dot_dimension_numbers<[1], [0], [0], [1], [0, 0, 1, 1], [], []>} : vector<16x16xf32>, vector<16x8xf32>, vector<16x8xf32> -> vector<16x8xf32>
    %348 = vector.extract_strided_slice %283 {offsets = [0, 24], sizes = [16, 8], strides = [1, 1]} : vector<16x96xf32> to vector<16x8xf32>
    %349 = vector.extract_strided_slice %283 {offsets = [0, 56], sizes = [16, 8], strides = [1, 1]} : vector<16x96xf32> to vector<16x8xf32>
    %350 = vector.extract_strided_slice %283 {offsets = [0, 88], sizes = [16, 8], strides = [1, 1]} : vector<16x96xf32> to vector<16x8xf32>
    %cst_112 = arith.constant dense<0.000000e+00> : vector<16x16xf32>
    %351 = tpu.matmul %348, %349, %cst_112 {dimension_numbers = #tpu.dot_dimension_numbers<[1], [1], [0], [0], [0, 0, 1, 0], [], []>} : vector<16x8xf32>, vector<16x8xf32>, vector<16x16xf32> -> vector<16x16xf32>
    %cst_113 = arith.constant 0.353553385 : f32
    %352 = vector.broadcast %cst_113 : f32 to vector<16x16xf32>
    %353 = arith.mulf %351, %352 : vector<16x16xf32>
    %354 = vector.broadcast %284 : vector<1x16xf32> to vector<16x16xf32>
    %355 = arith.addf %353, %354 : vector<16x16xf32>
    %cst_114 = arith.constant dense<0xFF800000> : vector<16xf32>
    %356 = vector.multi_reduction <maximumf>, %355, %cst_114 [1] : vector<16x16xf32> to vector<16xf32>
    %357 = vector.shape_cast %356 : vector<16xf32> to vector<16x1xf32>
    %358 = vector.broadcast %357 : vector<16x1xf32> to vector<16x16xf32>
    %359 = arith.subf %355, %358 : vector<16x16xf32>
    %360 = math.exp %359 : vector<16x16xf32>
    %cst_115 = arith.constant dense<0.000000e+00> : vector<16xf32>
    %361 = vector.multi_reduction <add>, %360, %cst_115 [1] : vector<16x16xf32> to vector<16xf32>
    %362 = vector.shape_cast %361 : vector<16xf32> to vector<16x1xf32>
    %cst_116 = arith.constant 9.99999968E-21 : f32
    %363 = vector.broadcast %cst_116 : f32 to vector<16x1xf32>
    %364 = arith.addf %362, %363 : vector<16x1xf32>
    %365 = tpu.reciprocal %364 {approx = true} : vector<16x1xf32> -> vector<16x1xf32>
    %366 = vector.broadcast %365 : vector<16x1xf32> to vector<16x16xf32>
    %367 = arith.mulf %360, %366 : vector<16x16xf32>
    %cst_117 = arith.constant dense<0.000000e+00> : vector<16x8xf32>
    %368 = tpu.matmul %367, %350, %cst_117 {dimension_numbers = #tpu.dot_dimension_numbers<[1], [0], [0], [1], [0, 0, 1, 1], [], []>} : vector<16x16xf32>, vector<16x8xf32>, vector<16x8xf32> -> vector<16x8xf32>
    %369 = tpu.concatenate %305, %326, %347, %368 in 1 : vector<16x8xf32>, vector<16x8xf32>, vector<16x8xf32>, vector<16x8xf32> -> vector<16x32xf32>
    %370 = vector.extract_strided_slice %282 {offsets = [16, 0], sizes = [16, 96], strides = [1, 1]} : vector<32x96xf32> to vector<16x96xf32>
    %371 = vector.extract_strided_slice %1 {offsets = [1, 0], sizes = [1, 16], strides = [1, 1]} : vector<2x16xf32> to vector<1x16xf32>
    %372 = vector.extract_strided_slice %370 {offsets = [0, 0], sizes = [16, 8], strides = [1, 1]} : vector<16x96xf32> to vector<16x8xf32>
    %373 = vector.extract_strided_slice %370 {offsets = [0, 32], sizes = [16, 8], strides = [1, 1]} : vector<16x96xf32> to vector<16x8xf32>
    %374 = vector.extract_strided_slice %370 {offsets = [0, 64], sizes = [16, 8], strides = [1, 1]} : vector<16x96xf32> to vector<16x8xf32>
    %cst_118 = arith.constant dense<0.000000e+00> : vector<16x16xf32>
    %375 = tpu.matmul %372, %373, %cst_118 {dimension_numbers = #tpu.dot_dimension_numbers<[1], [1], [0], [0], [0, 0, 1, 0], [], []>} : vector<16x8xf32>, vector<16x8xf32>, vector<16x16xf32> -> vector<16x16xf32>
    %cst_119 = arith.constant 0.353553385 : f32
    %376 = vector.broadcast %cst_119 : f32 to vector<16x16xf32>
    %377 = arith.mulf %375, %376 : vector<16x16xf32>
    %378 = vector.broadcast %371 : vector<1x16xf32> to vector<16x16xf32>
    %379 = arith.addf %377, %378 : vector<16x16xf32>
    %cst_120 = arith.constant dense<0xFF800000> : vector<16xf32>
    %380 = vector.multi_reduction <maximumf>, %379, %cst_120 [1] : vector<16x16xf32> to vector<16xf32>
    %381 = vector.shape_cast %380 : vector<16xf32> to vector<16x1xf32>
    %382 = vector.broadcast %381 : vector<16x1xf32> to vector<16x16xf32>
    %383 = arith.subf %379, %382 : vector<16x16xf32>
    %384 = math.exp %383 : vector<16x16xf32>
    %cst_121 = arith.constant dense<0.000000e+00> : vector<16xf32>
    %385 = vector.multi_reduction <add>, %384, %cst_121 [1] : vector<16x16xf32> to vector<16xf32>
    %386 = vector.shape_cast %385 : vector<16xf32> to vector<16x1xf32>
    %cst_122 = arith.constant 9.99999968E-21 : f32
    %387 = vector.broadcast %cst_122 : f32 to vector<16x1xf32>
    %388 = arith.addf %386, %387 : vector<16x1xf32>
    %389 = tpu.reciprocal %388 {approx = true} : vector<16x1xf32> -> vector<16x1xf32>
    %390 = vector.broadcast %389 : vector<16x1xf32> to vector<16x16xf32>
    %391 = arith.mulf %384, %390 : vector<16x16xf32>
    %cst_123 = arith.constant dense<0.000000e+00> : vector<16x8xf32>
    %392 = tpu.matmul %391, %374, %cst_123 {dimension_numbers = #tpu.dot_dimension_numbers<[1], [0], [0], [1], [0, 0, 1, 1], [], []>} : vector<16x16xf32>, vector<16x8xf32>, vector<16x8xf32> -> vector<16x8xf32>
    %393 = vector.extract_strided_slice %370 {offsets = [0, 8], sizes = [16, 8], strides = [1, 1]} : vector<16x96xf32> to vector<16x8xf32>
    %394 = vector.extract_strided_slice %370 {offsets = [0, 40], sizes = [16, 8], strides = [1, 1]} : vector<16x96xf32> to vector<16x8xf32>
    %395 = vector.extract_strided_slice %370 {offsets = [0, 72], sizes = [16, 8], strides = [1, 1]} : vector<16x96xf32> to vector<16x8xf32>
    %cst_124 = arith.constant dense<0.000000e+00> : vector<16x16xf32>
    %396 = tpu.matmul %393, %394, %cst_124 {dimension_numbers = #tpu.dot_dimension_numbers<[1], [1], [0], [0], [0, 0, 1, 0], [], []>} : vector<16x8xf32>, vector<16x8xf32>, vector<16x16xf32> -> vector<16x16xf32>
    %cst_125 = arith.constant 0.353553385 : f32
    %397 = vector.broadcast %cst_125 : f32 to vector<16x16xf32>
    %398 = arith.mulf %396, %397 : vector<16x16xf32>
    %399 = vector.broadcast %371 : vector<1x16xf32> to vector<16x16xf32>
    %400 = arith.addf %398, %399 : vector<16x16xf32>
    %cst_126 = arith.constant dense<0xFF800000> : vector<16xf32>
    %401 = vector.multi_reduction <maximumf>, %400, %cst_126 [1] : vector<16x16xf32> to vector<16xf32>
    %402 = vector.shape_cast %401 : vector<16xf32> to vector<16x1xf32>
    %403 = vector.broadcast %402 : vector<16x1xf32> to vector<16x16xf32>
    %404 = arith.subf %400, %403 : vector<16x16xf32>
    %405 = math.exp %404 : vector<16x16xf32>
    %cst_127 = arith.constant dense<0.000000e+00> : vector<16xf32>
    %406 = vector.multi_reduction <add>, %405, %cst_127 [1] : vector<16x16xf32> to vector<16xf32>
    %407 = vector.shape_cast %406 : vector<16xf32> to vector<16x1xf32>
    %cst_128 = arith.constant 9.99999968E-21 : f32
    %408 = vector.broadcast %cst_128 : f32 to vector<16x1xf32>
    %409 = arith.addf %407, %408 : vector<16x1xf32>
    %410 = tpu.reciprocal %409 {approx = true} : vector<16x1xf32> -> vector<16x1xf32>
    %411 = vector.broadcast %410 : vector<16x1xf32> to vector<16x16xf32>
    %412 = arith.mulf %405, %411 : vector<16x16xf32>
    %cst_129 = arith.constant dense<0.000000e+00> : vector<16x8xf32>
    %413 = tpu.matmul %412, %395, %cst_129 {dimension_numbers = #tpu.dot_dimension_numbers<[1], [0], [0], [1], [0, 0, 1, 1], [], []>} : vector<16x16xf32>, vector<16x8xf32>, vector<16x8xf32> -> vector<16x8xf32>
    %414 = vector.extract_strided_slice %370 {offsets = [0, 16], sizes = [16, 8], strides = [1, 1]} : vector<16x96xf32> to vector<16x8xf32>
    %415 = vector.extract_strided_slice %370 {offsets = [0, 48], sizes = [16, 8], strides = [1, 1]} : vector<16x96xf32> to vector<16x8xf32>
    %416 = vector.extract_strided_slice %370 {offsets = [0, 80], sizes = [16, 8], strides = [1, 1]} : vector<16x96xf32> to vector<16x8xf32>
    %cst_130 = arith.constant dense<0.000000e+00> : vector<16x16xf32>
    %417 = tpu.matmul %414, %415, %cst_130 {dimension_numbers = #tpu.dot_dimension_numbers<[1], [1], [0], [0], [0, 0, 1, 0], [], []>} : vector<16x8xf32>, vector<16x8xf32>, vector<16x16xf32> -> vector<16x16xf32>
    %cst_131 = arith.constant 0.353553385 : f32
    %418 = vector.broadcast %cst_131 : f32 to vector<16x16xf32>
    %419 = arith.mulf %417, %418 : vector<16x16xf32>
    %420 = vector.broadcast %371 : vector<1x16xf32> to vector<16x16xf32>
    %421 = arith.addf %419, %420 : vector<16x16xf32>
    %cst_132 = arith.constant dense<0xFF800000> : vector<16xf32>
    %422 = vector.multi_reduction <maximumf>, %421, %cst_132 [1] : vector<16x16xf32> to vector<16xf32>
    %423 = vector.shape_cast %422 : vector<16xf32> to vector<16x1xf32>
    %424 = vector.broadcast %423 : vector<16x1xf32> to vector<16x16xf32>
    %425 = arith.subf %421, %424 : vector<16x16xf32>
    %426 = math.exp %425 : vector<16x16xf32>
    %cst_133 = arith.constant dense<0.000000e+00> : vector<16xf32>
    %427 = vector.multi_reduction <add>, %426, %cst_133 [1] : vector<16x16xf32> to vector<16xf32>
    %428 = vector.shape_cast %427 : vector<16xf32> to vector<16x1xf32>
    %cst_134 = arith.constant 9.99999968E-21 : f32
    %429 = vector.broadcast %cst_134 : f32 to vector<16x1xf32>
    %430 = arith.addf %428, %429 : vector<16x1xf32>
    %431 = tpu.reciprocal %430 {approx = true} : vector<16x1xf32> -> vector<16x1xf32>
    %432 = vector.broadcast %431 : vector<16x1xf32> to vector<16x16xf32>
    %433 = arith.mulf %426, %432 : vector<16x16xf32>
    %cst_135 = arith.constant dense<0.000000e+00> : vector<16x8xf32>
    %434 = tpu.matmul %433, %416, %cst_135 {dimension_numbers = #tpu.dot_dimension_numbers<[1], [0], [0], [1], [0, 0, 1, 1], [], []>} : vector<16x16xf32>, vector<16x8xf32>, vector<16x8xf32> -> vector<16x8xf32>
    %435 = vector.extract_strided_slice %370 {offsets = [0, 24], sizes = [16, 8], strides = [1, 1]} : vector<16x96xf32> to vector<16x8xf32>
    %436 = vector.extract_strided_slice %370 {offsets = [0, 56], sizes = [16, 8], strides = [1, 1]} : vector<16x96xf32> to vector<16x8xf32>
    %437 = vector.extract_strided_slice %370 {offsets = [0, 88], sizes = [16, 8], strides = [1, 1]} : vector<16x96xf32> to vector<16x8xf32>
    %cst_136 = arith.constant dense<0.000000e+00> : vector<16x16xf32>
    %438 = tpu.matmul %435, %436, %cst_136 {dimension_numbers = #tpu.dot_dimension_numbers<[1], [1], [0], [0], [0, 0, 1, 0], [], []>} : vector<16x8xf32>, vector<16x8xf32>, vector<16x16xf32> -> vector<16x16xf32>
    %cst_137 = arith.constant 0.353553385 : f32
    %439 = vector.broadcast %cst_137 : f32 to vector<16x16xf32>
    %440 = arith.mulf %438, %439 : vector<16x16xf32>
    %441 = vector.broadcast %371 : vector<1x16xf32> to vector<16x16xf32>
    %442 = arith.addf %440, %441 : vector<16x16xf32>
    %cst_138 = arith.constant dense<0xFF800000> : vector<16xf32>
    %443 = vector.multi_reduction <maximumf>, %442, %cst_138 [1] : vector<16x16xf32> to vector<16xf32>
    %444 = vector.shape_cast %443 : vector<16xf32> to vector<16x1xf32>
    %445 = vector.broadcast %444 : vector<16x1xf32> to vector<16x16xf32>
    %446 = arith.subf %442, %445 : vector<16x16xf32>
    %447 = math.exp %446 : vector<16x16xf32>
    %cst_139 = arith.constant dense<0.000000e+00> : vector<16xf32>
    %448 = vector.multi_reduction <add>, %447, %cst_139 [1] : vector<16x16xf32> to vector<16xf32>
    %449 = vector.shape_cast %448 : vector<16xf32> to vector<16x1xf32>
    %cst_140 = arith.constant 9.99999968E-21 : f32
    %450 = vector.broadcast %cst_140 : f32 to vector<16x1xf32>
    %451 = arith.addf %449, %450 : vector<16x1xf32>
    %452 = tpu.reciprocal %451 {approx = true} : vector<16x1xf32> -> vector<16x1xf32>
    %453 = vector.broadcast %452 : vector<16x1xf32> to vector<16x16xf32>
    %454 = arith.mulf %447, %453 : vector<16x16xf32>
    %cst_141 = arith.constant dense<0.000000e+00> : vector<16x8xf32>
    %455 = tpu.matmul %454, %437, %cst_141 {dimension_numbers = #tpu.dot_dimension_numbers<[1], [0], [0], [1], [0, 0, 1, 1], [], []>} : vector<16x16xf32>, vector<16x8xf32>, vector<16x8xf32> -> vector<16x8xf32>
    %456 = tpu.concatenate %392, %413, %434, %455 in 1 : vector<16x8xf32>, vector<16x8xf32>, vector<16x8xf32>, vector<16x8xf32> -> vector<16x32xf32>
    %457 = tpu.concatenate %369, %456 in 0 : vector<16x32xf32>, vector<16x32xf32> -> vector<32x32xf32>
    %458 = arith.truncf %457 : vector<32x32xf32> to vector<32x32xbf16>
    %459 = vector.extract_strided_slice %274 {offsets = [0, 96], sizes = [32, 32], strides = [1, 1]} : vector<32x128xbf16> to vector<32x32xbf16>
    %cst_142 = arith.constant dense<0.000000e+00> : vector<32x32xf32>
    %460 = tpu.matmul %458, %459, %cst_142 {dimension_numbers = #tpu.dot_dimension_numbers<[1], [0], [0], [1], [0, 0, 1, 1], [], []>} : vector<32x32xbf16>, vector<32x32xbf16>, vector<32x32xf32> -> vector<32x32xf32>
    %461 = vector.extract_strided_slice %276 {offsets = [0, 96], sizes = [1, 32], strides = [1, 1]} : vector<1x128xf32> to vector<1x32xf32>
    %462 = vector.broadcast %461 : vector<1x32xf32> to vector<32x32xf32>
    %463 = arith.addf %460, %462 : vector<32x32xf32>
    %464 = arith.addf %272, %463 : vector<32x32xf32>
    %465 = vector.extract_strided_slice %2 {offsets = [4, 0], sizes = [1, 32], strides = [1, 1]} : vector<10x32xf32> to vector<1x32xf32>
    %466 = vector.extract_strided_slice %2 {offsets = [5, 0], sizes = [1, 32], strides = [1, 1]} : vector<10x32xf32> to vector<1x32xf32>
    %cst_143 = arith.constant dense<0.000000e+00> : vector<32xf32>
    %467 = vector.multi_reduction <add>, %464, %cst_143 [1] : vector<32x32xf32> to vector<32xf32>
    %468 = vector.shape_cast %467 : vector<32xf32> to vector<32x1xf32>
    %cst_144 = arith.constant 3.200000e+01 : f32
    %469 = vector.broadcast %cst_144 : f32 to vector<32x1xf32>
    %470 = arith.divf %468, %469 : vector<32x1xf32>
    %471 = vector.broadcast %470 : vector<32x1xf32> to vector<32x32xf32>
    %472 = arith.subf %464, %471 : vector<32x32xf32>
    %473 = arith.mulf %472, %472 : vector<32x32xf32>
    %cst_145 = arith.constant dense<0.000000e+00> : vector<32xf32>
    %474 = vector.multi_reduction <add>, %473, %cst_145 [1] : vector<32x32xf32> to vector<32xf32>
    %475 = vector.shape_cast %474 : vector<32xf32> to vector<32x1xf32>
    %cst_146 = arith.constant 3.200000e+01 : f32
    %476 = vector.broadcast %cst_146 : f32 to vector<32x1xf32>
    %477 = arith.divf %475, %476 : vector<32x1xf32>
    %478 = vector.broadcast %470 : vector<32x1xf32> to vector<32x32xf32>
    %479 = arith.subf %464, %478 : vector<32x32xf32>
    %cst_147 = arith.constant 9.99999974E-6 : f32
    %480 = vector.broadcast %cst_147 : f32 to vector<32x1xf32>
    %481 = arith.addf %477, %480 : vector<32x1xf32>
    %482 = math.rsqrt %481 : vector<32x1xf32>
    %483 = vector.broadcast %482 : vector<32x1xf32> to vector<32x32xf32>
    %484 = arith.mulf %479, %483 : vector<32x32xf32>
    %485 = vector.broadcast %465 : vector<1x32xf32> to vector<32x32xf32>
    %486 = arith.mulf %484, %485 : vector<32x32xf32>
    %487 = vector.broadcast %466 : vector<1x32xf32> to vector<32x32xf32>
    %488 = arith.addf %486, %487 : vector<32x32xf32>
    %489 = arith.truncf %488 : vector<32x32xf32> to vector<32x32xbf16>
    %c1_148 = arith.constant 1 : index
    %c0_149 = arith.constant 0 : index
    %c0_150 = arith.constant 0 : index
    %490 = vector.load %arg4[%c1_148, %c0_149, %c0_150] : memref<2x32x64xbf16, #tpu.memory_space<vmem>>, vector<1x32x64xbf16>
    %491 = vector.shape_cast %490 : vector<1x32x64xbf16> to vector<32x64xbf16>
    %cst_151 = arith.constant dense<0.000000e+00> : vector<32x64xf32>
    %492 = tpu.matmul %489, %491, %cst_151 {dimension_numbers = #tpu.dot_dimension_numbers<[1], [0], [0], [1], [0, 0, 1, 1], [], []>} : vector<32x32xbf16>, vector<32x64xbf16>, vector<32x64xf32> -> vector<32x64xf32>
    %c1_152 = arith.constant 1 : index
    %c0_153 = arith.constant 0 : index
    %c0_154 = arith.constant 0 : index
    %493 = vector.load %arg5[%c1_152, %c0_153, %c0_154] : memref<2x1x64xf32, #tpu.memory_space<vmem>>, vector<1x1x64xf32>
    %494 = vector.shape_cast %493 : vector<1x1x64xf32> to vector<1x64xf32>
    %495 = vector.broadcast %494 : vector<1x64xf32> to vector<32x64xf32>
    %496 = arith.addf %492, %495 : vector<32x64xf32>
    %497 = arith.mulf %496, %496 : vector<32x64xf32>
    %498 = arith.mulf %496, %497 : vector<32x64xf32>
    %cst_155 = arith.constant 4.471500e-02 : f32
    %499 = vector.broadcast %cst_155 : f32 to vector<32x64xf32>
    %500 = arith.mulf %499, %498 : vector<32x64xf32>
    %501 = arith.addf %496, %500 : vector<32x64xf32>
    %cst_156 = arith.constant 0.797884583 : f32
    %502 = vector.broadcast %cst_156 : f32 to vector<32x64xf32>
    %503 = arith.mulf %502, %501 : vector<32x64xf32>
    %504 = math.tanh %503 : vector<32x64xf32>
    %cst_157 = arith.constant 1.000000e+00 : f32
    %505 = vector.broadcast %cst_157 : f32 to vector<32x64xf32>
    %506 = arith.addf %505, %504 : vector<32x64xf32>
    %cst_158 = arith.constant 5.000000e-01 : f32
    %507 = vector.broadcast %cst_158 : f32 to vector<32x64xf32>
    %508 = arith.mulf %507, %506 : vector<32x64xf32>
    %509 = arith.mulf %496, %508 : vector<32x64xf32>
    %510 = arith.truncf %509 : vector<32x64xf32> to vector<32x64xbf16>
    %c1_159 = arith.constant 1 : index
    %c0_160 = arith.constant 0 : index
    %c0_161 = arith.constant 0 : index
    %511 = vector.load %arg6[%c1_159, %c0_160, %c0_161] : memref<2x64x32xbf16, #tpu.memory_space<vmem>>, vector<1x64x32xbf16>
    %512 = vector.shape_cast %511 : vector<1x64x32xbf16> to vector<64x32xbf16>
    %cst_162 = arith.constant dense<0.000000e+00> : vector<32x32xf32>
    %513 = tpu.matmul %510, %512, %cst_162 {dimension_numbers = #tpu.dot_dimension_numbers<[1], [0], [0], [1], [0, 0, 1, 1], [], []>} : vector<32x64xbf16>, vector<64x32xbf16>, vector<32x32xf32> -> vector<32x32xf32>
    %c1_163 = arith.constant 1 : index
    %c0_164 = arith.constant 0 : index
    %c0_165 = arith.constant 0 : index
    %514 = vector.load %arg7[%c1_163, %c0_164, %c0_165] : memref<2x1x32xf32, #tpu.memory_space<vmem>>, vector<1x1x32xf32>
    %515 = vector.shape_cast %514 : vector<1x1x32xf32> to vector<1x32xf32>
    %516 = vector.broadcast %515 : vector<1x32xf32> to vector<32x32xf32>
    %517 = arith.addf %513, %516 : vector<32x32xf32>
    %518 = arith.addf %488, %517 : vector<32x32xf32>
    %519 = vector.extract_strided_slice %2 {offsets = [6, 0], sizes = [1, 32], strides = [1, 1]} : vector<10x32xf32> to vector<1x32xf32>
    %520 = vector.extract_strided_slice %2 {offsets = [7, 0], sizes = [1, 32], strides = [1, 1]} : vector<10x32xf32> to vector<1x32xf32>
    %cst_166 = arith.constant dense<0.000000e+00> : vector<32xf32>
    %521 = vector.multi_reduction <add>, %518, %cst_166 [1] : vector<32x32xf32> to vector<32xf32>
    %522 = vector.shape_cast %521 : vector<32xf32> to vector<32x1xf32>
    %cst_167 = arith.constant 3.200000e+01 : f32
    %523 = vector.broadcast %cst_167 : f32 to vector<32x1xf32>
    %524 = arith.divf %522, %523 : vector<32x1xf32>
    %525 = vector.broadcast %524 : vector<32x1xf32> to vector<32x32xf32>
    %526 = arith.subf %518, %525 : vector<32x32xf32>
    %527 = arith.mulf %526, %526 : vector<32x32xf32>
    %cst_168 = arith.constant dense<0.000000e+00> : vector<32xf32>
    %528 = vector.multi_reduction <add>, %527, %cst_168 [1] : vector<32x32xf32> to vector<32xf32>
    %529 = vector.shape_cast %528 : vector<32xf32> to vector<32x1xf32>
    %cst_169 = arith.constant 3.200000e+01 : f32
    %530 = vector.broadcast %cst_169 : f32 to vector<32x1xf32>
    %531 = arith.divf %529, %530 : vector<32x1xf32>
    %532 = vector.broadcast %524 : vector<32x1xf32> to vector<32x32xf32>
    %533 = arith.subf %518, %532 : vector<32x32xf32>
    %cst_170 = arith.constant 9.99999974E-6 : f32
    %534 = vector.broadcast %cst_170 : f32 to vector<32x1xf32>
    %535 = arith.addf %531, %534 : vector<32x1xf32>
    %536 = math.rsqrt %535 : vector<32x1xf32>
    %537 = vector.broadcast %536 : vector<32x1xf32> to vector<32x32xf32>
    %538 = arith.mulf %533, %537 : vector<32x32xf32>
    %539 = vector.broadcast %519 : vector<1x32xf32> to vector<32x32xf32>
    %540 = arith.mulf %538, %539 : vector<32x32xf32>
    %541 = vector.broadcast %520 : vector<1x32xf32> to vector<32x32xf32>
    %542 = arith.addf %540, %541 : vector<32x32xf32>
    %543 = vector.extract_strided_slice %2 {offsets = [8, 0], sizes = [1, 32], strides = [1, 1]} : vector<10x32xf32> to vector<1x32xf32>
    %544 = vector.extract_strided_slice %2 {offsets = [9, 0], sizes = [1, 32], strides = [1, 1]} : vector<10x32xf32> to vector<1x32xf32>
    %cst_171 = arith.constant dense<0.000000e+00> : vector<32xf32>
    %545 = vector.multi_reduction <add>, %542, %cst_171 [1] : vector<32x32xf32> to vector<32xf32>
    %546 = vector.shape_cast %545 : vector<32xf32> to vector<32x1xf32>
    %cst_172 = arith.constant 3.200000e+01 : f32
    %547 = vector.broadcast %cst_172 : f32 to vector<32x1xf32>
    %548 = arith.divf %546, %547 : vector<32x1xf32>
    %549 = vector.broadcast %548 : vector<32x1xf32> to vector<32x32xf32>
    %550 = arith.subf %542, %549 : vector<32x32xf32>
    %551 = arith.mulf %550, %550 : vector<32x32xf32>
    %cst_173 = arith.constant dense<0.000000e+00> : vector<32xf32>
    %552 = vector.multi_reduction <add>, %551, %cst_173 [1] : vector<32x32xf32> to vector<32xf32>
    %553 = vector.shape_cast %552 : vector<32xf32> to vector<32x1xf32>
    %cst_174 = arith.constant 3.200000e+01 : f32
    %554 = vector.broadcast %cst_174 : f32 to vector<32x1xf32>
    %555 = arith.divf %553, %554 : vector<32x1xf32>
    %556 = vector.broadcast %548 : vector<32x1xf32> to vector<32x32xf32>
    %557 = arith.subf %542, %556 : vector<32x32xf32>
    %cst_175 = arith.constant 9.99999974E-6 : f32
    %558 = vector.broadcast %cst_175 : f32 to vector<32x1xf32>
    %559 = arith.addf %555, %558 : vector<32x1xf32>
    %560 = math.rsqrt %559 : vector<32x1xf32>
    %561 = vector.broadcast %560 : vector<32x1xf32> to vector<32x32xf32>
    %562 = arith.mulf %557, %561 : vector<32x32xf32>
    %563 = vector.broadcast %543 : vector<1x32xf32> to vector<32x32xf32>
    %564 = arith.mulf %562, %563 : vector<32x32xf32>
    %565 = vector.broadcast %544 : vector<1x32xf32> to vector<32x32xf32>
    %566 = arith.addf %564, %565 : vector<32x32xf32>
    %c0_176 = arith.constant 0 : index
    %c0_177 = arith.constant 0 : index
    %567 = vector.load %arg9[%c0_176, %c0_177] : memref<32x32xf32, #tpu.memory_space<vmem>>, vector<32x32xf32>
    tpu.vector_store %arg9[%c0_176, %c0_177], %566 {strides = array<i32>} : memref<32x32xf32, #tpu.memory_space<vmem>>, vector<32x32xf32>,
    return
  }
}

</mosaic_0001>

<llo_original>
// kernel: mm_encoder_forward.1
$region0: #{mm_encoder_forward.1}
  #allocation0 [shape = 'u32[]', space=smem, size = 0x4, offset = 0x4, fixed_abs, tag = 'smem constant byte address 0x4 - core index']
  #allocation1 [shape = 'u32[144,128]{1,0:T(1,128)}', space=vmem, size = 0x12000, scoped, tag = 'internal scratch']
  %s0 = inlined_call_operand.vmem [shape: f32[32,32], index: 0, kind: input, shape index: {}]
  %s1 = inlined_call_operand.vmem [shape: f32[2,16], index: 1, kind: input, shape index: {}]
  %s2 = inlined_call_operand.vmem [shape: bf16[2,32,128], index: 2, kind: input, shape index: {}]
  %s3 = inlined_call_operand.vmem [shape: f32[2,1,128], index: 3, kind: input, shape index: {}]
  %s4 = inlined_call_operand.vmem [shape: bf16[2,32,64], index: 4, kind: input, shape index: {}]
  %s5 = inlined_call_operand.vmem [shape: f32[2,1,64], index: 5, kind: input, shape index: {}]
  %s6 = inlined_call_operand.vmem [shape: bf16[2,64,32], index: 6, kind: input, shape index: {}]
  %s7 = inlined_call_operand.vmem [shape: f32[2,1,32], index: 7, kind: input, shape index: {}]
  %s8 = inlined_call_operand.vmem [shape: f32[10,32], index: 8, kind: input, shape index: {}]
  %s9 = inlined_call_operand.vmem [shape: f32[32,32], index: 9, kind: output, shape index: {}]
  %s10 = sld [smem:[#allocation0]]
  $region46: #{mm_encoder_forward.1} parent=0
    _
  %s12 = ssub.s32 1, %s10
  %s13 = scalar_select 0, %s12, %s10
  // Predicated region
  $region2: #{mm_encoder_forward.1} parent=0 // pred_check
    _
  $region3: #{mm_encoder_forward.1} parent=0 // pred_check_branch
    %15 = sbr.rel (0) target = $region5
  $region4: #{mm_encoder_forward.1} parent=0 // pred_region
    _
  $region5: #{mm_encoder_forward.1} parent=0 // pred_fallthru
    _
  // Predicated region
  $region6: #{mm_encoder_forward.1} parent=0 // pred_check
    _
  $region7: #{mm_encoder_forward.1} parent=0 // pred_check_branch
    %17 = sbr.rel (0) target = $region9
  $region8: #{mm_encoder_forward.1} parent=0 // pred_region
    _
  $region9: #{mm_encoder_forward.1} parent=0 // pred_fallthru
    _
  // Predicated region
  $region10: #{mm_encoder_forward.1} parent=0 // pred_check
    _
  $region11: #{mm_encoder_forward.1} parent=0 // pred_check_branch
    %19 = sbr.rel (0) target = $region13
  $region12: #{mm_encoder_forward.1} parent=0 // pred_region
    _
  $region13: #{mm_encoder_forward.1} parent=0 // pred_fallthru
    _
  // Predicated region
  $region14: #{mm_encoder_forward.1} parent=0 // pred_check
    _
  $region15: #{mm_encoder_forward.1} parent=0 // pred_check_branch
    %21 = sbr.rel (0) target = $region17
  $region16: #{mm_encoder_forward.1} parent=0 // pred_region
    _
  $region17: #{mm_encoder_forward.1} parent=0 // pred_fallthru
    _
  // Predicated region
  $region18: #{mm_encoder_forward.1} parent=0 // pred_check
    _
  $region19: #{mm_encoder_forward.1} parent=0 // pred_check_branch
    %23 = sbr.rel (0) target = $region21
  $region20: #{mm_encoder_forward.1} parent=0 // pred_region
    _
  $region21: #{mm_encoder_forward.1} parent=0 // pred_fallthru
    _
  // Predicated region
  $region22: #{mm_encoder_forward.1} parent=0 // pred_check
    _
  $region23: #{mm_encoder_forward.1} parent=0 // pred_check_branch
    %25 = sbr.rel (0) target = $region25
  $region24: #{mm_encoder_forward.1} parent=0 // pred_region
    _
  $region25: #{mm_encoder_forward.1} parent=0 // pred_fallthru
    _
  // Predicated region
  $region26: #{mm_encoder_forward.1} parent=0 // pred_check
    _
  $region27: #{mm_encoder_forward.1} parent=0 // pred_check_branch
    %27 = sbr.rel (0) target = $region29
  $region28: #{mm_encoder_forward.1} parent=0 // pred_region
    _
  $region29: #{mm_encoder_forward.1} parent=0 // pred_fallthru
    _
  // Predicated region
  $region30: #{mm_encoder_forward.1} parent=0 // pred_check
    _
  $region31: #{mm_encoder_forward.1} parent=0 // pred_check_branch
    %29 = sbr.rel (0) target = $region33
  $region32: #{mm_encoder_forward.1} parent=0 // pred_region
    _
  $region33: #{mm_encoder_forward.1} parent=0 // pred_fallthru
    _
  // Predicated region
  $region34: #{mm_encoder_forward.1} parent=0 // pred_check
    _
  $region35: #{mm_encoder_forward.1} parent=0 // pred_check_branch
    %31 = sbr.rel (0) target = $region37
  $region36: #{mm_encoder_forward.1} parent=0 // pred_region
    _
  $region37: #{mm_encoder_forward.1} parent=0 // pred_fallthru
    _
  %v33 = vld [vmem:[%s0] sm:$0xff]
  %v34 = vld [vmem:[%s0 + $0x8] sm:$0xff]
  %v35 = vld [vmem:[%s0 + $0x10] sm:$0xff]
  %v36 = vld [vmem:[%s0 + $0x18] sm:$0xff]
  %v37 = vld [vmem:[%s1] sm:$0x3]
  %v38 = vld [vmem:[%s8] sm:$0xff]
  %v39 = vld [vmem:[%s8 + $0x8] sm:$0x3]
  %v40 = vld [vmem:[%s2] sm:$0xf]
  %v41 = vld [vmem:[%s2 + $0x4] sm:$0xf]
  %v42 = vld [vmem:[%s2 + $0x8] sm:$0xf]
  %v43 = vld [vmem:[%s2 + $0xc] sm:$0xf]
  %v44 = vld [vmem:[%s3] sm:$0x1]
  %v45 = vpack.c.bf16 %v34, %v33
  %v46 = vpack.c.bf16 %v36, %v35
  %v48 = vlaneseq
  %v49 = vshrl.u32 %v48, 7
  %v50 = vsub.s32 0, %v49
  %v51 = vrot.slane %v44, %v50
  %v57 = vunpack.c.l.b16 %v40
  %v58 = vunpack.c.l.b16 %v41
  %v59 = vunpack.c.l.b16 %v42
  %v60 = vunpack.c.l.b16 %v43
  %v61 = vpack.c.b16 %v58, %v57
  %v62 = vpack.c.b16 %v60, %v59
  %vm65 = vcmask 261120
  %v67 = vsel %vm65, %v45, 0
  %v70 = vsel %vm65, %v46, 0
  %72 = vmatprep.subr.bf16.mxu0 0
  %73 = vmatpush1.bf16.msra.mxu0 %v61
  %74 = vmatprep.subr.bf16.mxu0 0
  %75 = vmatpush1.bf16.msra.mxu0 %v62
  %76 = vmatprep.subr.bf16.mxu0 0
  %77 = vmatpush1.bf16.msra.mxu0 0
  %78 = vmatprep.subr.bf16.mxu0 0
  %79 = vmatpush1.bf16.msra.mxu0 0
  %80 = vmatprep.subr.bf16.mxu0 0
  %81 = vmatpush1.bf16.msra.mxu0 0
  %82 = vmatprep.subr.bf16.mxu0 0
  %83 = vmatpush1.bf16.msra.mxu0 0
  %84 = vmatprep.subr.bf16.mxu0 0
  %85 = vmatpush1.bf16.msra.mxu0 0
  %86 = vmatprep.subr.bf16.mxu0 0
  %87 = vmatpush1.bf16.msra.mxu0 0
  %88 = vmatprep.subr.bf16.mxu0 0
  %89 = vmatpush1.bf16.msra.mxu0 0
  %90 = vmatprep.subr.bf16.mxu0 0
  %91 = vmatpush1.bf16.msra.mxu0 0
  %92 = vmatprep.subr.bf16.mxu0 0
  %93 = vmatpush1.bf16.msra.mxu0 0
  %94 = vmatprep.subr.bf16.mxu0 0
  %95 = vmatpush1.bf16.msra.mxu0 0
  %96 = vmatprep.subr.bf16.mxu0 0
  %97 = vmatpush1.bf16.msra.mxu0 0
  %98 = vmatprep.subr.bf16.mxu0 0
  %99 = vmatpush1.bf16.msra.mxu0 0
  %100 = vmatprep.subr.bf16.mxu0 0
  %101 = vmatpush1.bf16.msra.mxu0 0
  %102 = vmatprep.subr.bf16.mxu0 0
  %103 = vmatpush1.bf16.msra.mxu0 0
  %104 = vmatprep.mubr.bf16.mxu0 0
  %105 = vmatmul.mubr.bf16.gmra.mrb[0].mxu0 %v67
  %v106 = vpop.f32.mrb[0].mxu0
  %v107 = vadd.f32 %v51, %v106
  %v108 = vpop.f32.mrb[0].mxu0
  %v109 = vpop.f32.mrb[0].mxu0
  %v110 = vadd.f32 %v51, %v109
  %v111 = vpop.f32.mrb[0].mxu0
  %112 = vmatprep.mubr.bf16.mxu0 0
  %113 = vmatmul.mubr.bf16.gmra.mrb[0].mxu0 %v70
  %v114 = vpop.f32.mrb[0].mxu0
  %v115 = vadd.f32 %v51, %v114
  %v116 = vpop.f32.mrb[0].mxu0
  %v117 = vpop.f32.mrb[0].mxu0
  %v118 = vadd.f32 %v51, %v117
  %v119 = vpop.f32.mrb[0].mxu0
  %120 = vdwg.mxu0
  %123 = vrot.lane.b32.xlu0 %v107, 96
  %v124 = vpop.permute.xlu0 %123
  %125 = vrot.lane.b32.xlu0 %v110, 96
  %v126 = vpop.permute.xlu0 %125
  %vm127 = vcmask 64512
  %v128 = vsel %vm127, %v107, 0
  %v130 = vsel %vm127, %v110, 0
  %v132 = vsel %vm127, %v124, 0
  %v134 = vsel %vm127, %v126, 0
  %136 = vmatprep.subr.mxu0 0.0
  %137 = vmatpush1.xpose.msra.mxu0 %v132
  %138 = vmatprep.subr.mxu0 0.0
  %139 = vmatpush1.xpose.msra.mxu0 %v134
  %140 = vmatprep.subr.mxu0 0.0
  %141 = vmatpush1.xpose.msra.mxu0 0.0
  %142 = vmatprep.subr.mxu0 0.0
  %143 = vmatpush1.xpose.msra.mxu0 0.0
  %144 = vmatprep.subr.mxu0 0.0
  %145 = vmatpush1.xpose.msra.mxu0 0.0
  %146 = vmatprep.subr.mxu0 0.0
  %147 = vmatpush1.xpose.msra.mxu0 0.0
  %148 = vmatprep.subr.mxu0 0.0
  %149 = vmatpush1.xpose.msra.mxu0 0.0
  %150 = vmatprep.subr.mxu0 0.0
  %151 = vmatpush1.xpose.msra.mxu0 0.0
  %152 = vmatprep.subr.mxu0 0.0
  %153 = vmatpush1.xpose.msra.mxu0 0.0
  %154 = vmatprep.subr.mxu0 0.0
  %155 = vmatpush1.xpose.msra.mxu0 0.0
  %156 = vmatprep.subr.mxu0 0.0
  %157 = vmatpush1.xpose.msra.mxu0 0.0
  %158 = vmatprep.subr.mxu0 0.0
  %159 = vmatpush1.xpose.msra.mxu0 0.0
  %160 = vmatprep.subr.mxu0 0.0
  %161 = vmatpush1.xpose.msra.mxu0 0.0
  %162 = vmatprep.subr.mxu0 0.0
  %163 = vmatpush1.xpose.msra.mxu0 0.0
  %164 = vmatprep.subr.mxu0 0.0
  %165 = vmatpush1.xpose.msra.mxu0 0.0
  %166 = vmatprep.subr.mxu0 0.0
  %167 = vmatpush1.xpose.msra.mxu0 0.0
  %168 = vmatprep.subr.mxu0 0.0
  %169 = vmatpush1.xpose.msra.mxu0 0.0
  %170 = vmatprep.subr.mxu0 0.0
  %171 = vmatpush1.xpose.msra.mxu0 0.0
  %172 = vmatprep.subr.mxu0 0.0
  %173 = vmatpush1.xpose.msra.mxu0 0.0
  %174 = vmatprep.subr.mxu0 0.0
  %175 = vmatpush1.xpose.msra.mxu0 0.0
  %176 = vmatprep.subr.mxu0 0.0
  %177 = vmatpush1.xpose.msra.mxu0 0.0
  %178 = vmatprep.subr.mxu0 0.0
  %179 = vmatpush1.xpose.msra.mxu0 0.0
  %180 = vmatprep.subr.mxu0 0.0
  %181 = vmatpush1.xpose.msra.mxu0 0.0
  %182 = vmatprep.subr.mxu0 0.0
  %183 = vmatpush1.xpose.msra.mxu0 0.0
  %184 = vmatprep.subr.mxu0 0.0
  %185 = vmatpush1.xpose.msra.mxu0 0.0
  %186 = vmatprep.subr.mxu0 0.0
  %187 = vmatpush1.xpose.msra.mxu0 0.0
  %188 = vmatprep.subr.mxu0 0.0
  %189 = vmatpush1.xpose.msra.mxu0 0.0
  %190 = vmatprep.subr.mxu0 0.0
  %191 = vmatpush1.xpose.msra.mxu0 0.0
  %192 = vmatprep.subr.mxu0 0.0
  %193 = vmatpush1.xpose.msra.mxu0 0.0
  %194 = vmatprep.subr.mxu0 0.0
  %195 = vmatpush1.xpose.msra.mxu0 0.0
  %196 = vmatprep.subr.mxu0 0.0
  %197 = vmatpush1.xpose.msra.mxu0 0.0
  %198 = vmatprep.subr.mxu0 0.0
  %199 = vmatpush1.xpose.msra.mxu0 0.0
  %200 = vmatprep.mubr.f32.mxu0 0.0
  %201 = vmatmul.mubr.f32.gmra.mrb[0].mxu0 %v128
  %v202 = vpop.f32.mrb[0].mxu0
  %v203 = vadd.f32 0.0, %v202
  %v204 = vpop.f32.mrb[0].mxu0
  %205 = vmatprep.mubr.f32.mxu0 0.0
  %206 = vmatmul.mubr.f32.gmra.mrb[0].mxu0 %v130
  %v207 = vpop.f32.mrb[0].mxu0
  %v208 = vadd.f32 0.0, %v207
  %v209 = vpop.f32.mrb[0].mxu0
  %210 = vdwg.mxu0
  %v211 = vmul.f32 %v203, 0.35355338
  %v212 = vmul.f32 %v208, 0.35355338
  %v213 = vlaneseq
  %v214 = vshrl.u32 %v213, 7
  %v215 = vsub.s32 0, %v214
  %v216 = vrot.slane %v37, %v215
  %v217 = vadd.f32 %v211, %v216
  %v218 = vadd.f32 %v212, %v216
  %vm219 = vcmask 130048
  %v220 = vsel %vm219, %v217, -inf
  %221 = vmax.xlane.f32.xlu0 %v220
  %v222 = vpop.xlane.xlu0 %221
  %v223 = vsel %vm219, %v218, -inf
  %224 = vmax.xlane.f32.xlu0 %v223
  %v225 = vpop.xlane.xlu0 %224
  %v226 = vsub.f32 %v217, %v222
  %v227 = vsub.f32 %v218, %v225
  %v228 = vmul.f32 %v226, 1.442695
  %v229 = vpow.pop %v228
  %v230 = vmul.f32 %v227, 1.442695
  %v231 = vpow.pop %v230
  %v232 = vsel %vm219, %v229, 0.0
  %233 = vadd.xlane.f32.xlu0 %v232
  %v234 = vpop.xlane.xlu0 %233
  %v235 = vsel %vm219, %v231, 0.0
  %236 = vadd.xlane.f32.xlu0 %v235
  %v237 = vpop.xlane.xlu0 %236
  %v238 = vadd.f32 %v234, 1e-20
  %v239 = vadd.f32 %v237, 1e-20
  %v240 = vrcp.pop %v238
  %v241 = vrcp.pop %v239
  %v242 = vmul.f32 %v229, %v240
  %v243 = vmul.f32 %v231, %v241
  %244 = vrot.lane.b32.xlu0 %v107, 64
  %v245 = vpop.permute.xlu0 %244
  %246 = vrot.lane.b32.xlu0 %v110, 64
  %v247 = vpop.permute.xlu0 %246
  %v251 = vsel %vm219, %v242, 0
  %v254 = vsel %vm219, %v243, 0
  %256 = vmatprep.subr.mxu0 0.0
  %257 = vmatpush1.msra.mxu0 %v245
  %258 = vmatprep.subr.mxu0 0.0
  %259 = vmatpush1.msra.mxu0 %v247
  %260 = vmatprep.subr.mxu0 0.0
  %261 = vmatpush1.msra.mxu0 0.0
  %262 = vmatprep.subr.mxu0 0.0
  %263 = vmatpush1.msra.mxu0 0.0
  %264 = vmatprep.subr.mxu0 0.0
  %265 = vmatpush1.msra.mxu0 0.0
  %266 = vmatprep.subr.mxu0 0.0
  %267 = vmatpush1.msra.mxu0 0.0
  %268 = vmatprep.subr.mxu0 0.0
  %269 = vmatpush1.msra.mxu0 0.0
  %270 = vmatprep.subr.mxu0 0.0
  %271 = vmatpush1.msra.mxu0 0.0
  %272 = vmatprep.subr.mxu0 0.0
  %273 = vmatpush1.msra.mxu0 0.0
  %274 = vmatprep.subr.mxu0 0.0
  %275 = vmatpush1.msra.mxu0 0.0
  %276 = vmatprep.subr.mxu0 0.0
  %277 = vmatpush1.msra.mxu0 0.0
  %278 = vmatprep.subr.mxu0 0.0
  %279 = vmatpush1.msra.mxu0 0.0
  %280 = vmatprep.subr.mxu0 0.0
  %281 = vmatpush1.msra.mxu0 0.0
  %282 = vmatprep.subr.mxu0 0.0
  %283 = vmatpush1.msra.mxu0 0.0
  %284 = vmatprep.subr.mxu0 0.0
  %285 = vmatpush1.msra.mxu0 0.0
  %286 = vmatprep.subr.mxu0 0.0
  %287 = vmatpush1.msra.mxu0 0.0
  %288 = vmatprep.subr.mxu0 0.0
  %289 = vmatpush1.msra.mxu0 0.0
  %290 = vmatprep.subr.mxu0 0.0
  %291 = vmatpush1.msra.mxu0 0.0
  %292 = vmatprep.subr.mxu0 0.0
  %293 = vmatpush1.msra.mxu0 0.0
  %294 = vmatprep.subr.mxu0 0.0
  %295 = vmatpush1.msra.mxu0 0.0
  %296 = vmatprep.subr.mxu0 0.0
  %297 = vmatpush1.msra.mxu0 0.0
  %298 = vmatprep.subr.mxu0 0.0
  %299 = vmatpush1.msra.mxu0 0.0
  %300 = vmatprep.subr.mxu0 0.0
  %301 = vmatpush1.msra.mxu0 0.0
  %302 = vmatprep.subr.mxu0 0.0
  %303 = vmatpush1.msra.mxu0 0.0
  %304 = vmatprep.subr.mxu0 0.0
  %305 = vmatpush1.msra.mxu0 0.0
  %306 = vmatprep.subr.mxu0 0.0
  %307 = vmatpush1.msra.mxu0 0.0
  %308 = vmatprep.subr.mxu0 0.0
  %309 = vmatpush1.msra.mxu0 0.0
  %310 = vmatprep.subr.mxu0 0.0
  %311 = vmatpush1.msra.mxu0 0.0
  %312 = vmatprep.subr.mxu0 0.0
  %313 = vmatpush1.msra.mxu0 0.0
  %314 = vmatprep.subr.mxu0 0.0
  %315 = vmatpush1.msra.mxu0 0.0
  %316 = vmatprep.subr.mxu0 0.0
  %317 = vmatpush1.msra.mxu0 0.0
  %318 = vmatprep.subr.mxu0 0.0
  %319 = vmatpush1.msra.mxu0 0.0
  %320 = vmatprep.mubr.f32.mxu0 0.0
  %321 = vmatmul.mubr.f32.gmra.mrb[0].mxu0 %v251
  %v322 = vpop.f32.mrb[0].mxu0
  %v323 = vadd.f32 0.0, %v322
  %v324 = vpop.f32.mrb[0].mxu0
  %325 = vmatprep.mubr.f32.mxu0 0.0
  %326 = vmatmul.mubr.f32.gmra.mrb[0].mxu0 %v254
  %v327 = vpop.f32.mrb[0].mxu0
  %v328 = vadd.f32 0.0, %v327
  %v329 = vpop.f32.mrb[0].mxu0
  %330 = vdwg.mxu0
  %331 = vrot.lane.b32.xlu0 %v107, 120
  %v332 = vpop.permute.xlu0 %331
  %333 = vrot.lane.b32.xlu0 %v110, 120
  %v334 = vpop.permute.xlu0 %333
  %335 = vrot.lane.b32.xlu0 %v107, 88
  %v336 = vpop.permute.xlu0 %335
  %337 = vrot.lane.b32.xlu0 %v110, 88
  %v338 = vpop.permute.xlu0 %337
  %v339 = vsel %vm127, %v332, 0
  %v341 = vsel %vm127, %v334, 0
  %v343 = vsel %vm127, %v336, 0
  %v345 = vsel %vm127, %v338, 0
  %347 = vmatprep.subr.mxu0 0.0
  %348 = vmatpush1.xpose.msra.mxu0 %v343
  %349 = vmatprep.subr.mxu0 0.0
  %350 = vmatpush1.xpose.msra.mxu0 %v345
  %351 = vmatprep.subr.mxu0 0.0
  %352 = vmatpush1.xpose.msra.mxu0 0.0
  %353 = vmatprep.subr.mxu0 0.0
  %354 = vmatpush1.xpose.msra.mxu0 0.0
  %355 = vmatprep.subr.mxu0 0.0
  %356 = vmatpush1.xpose.msra.mxu0 0.0
  %357 = vmatprep.subr.mxu0 0.0
  %358 = vmatpush1.xpose.msra.mxu0 0.0
  %359 = vmatprep.subr.mxu0 0.0
  %360 = vmatpush1.xpose.msra.mxu0 0.0
  %361 = vmatprep.subr.mxu0 0.0
  %362 = vmatpush1.xpose.msra.mxu0 0.0
  %363 = vmatprep.subr.mxu0 0.0
  %364 = vmatpush1.xpose.msra.mxu0 0.0
  %365 = vmatprep.subr.mxu0 0.0
  %366 = vmatpush1.xpose.msra.mxu0 0.0
  %367 = vmatprep.subr.mxu0 0.0
  %368 = vmatpush1.xpose.msra.mxu0 0.0
  %369 = vmatprep.subr.mxu0 0.0
  %370 = vmatpush1.xpose.msra.mxu0 0.0
  %371 = vmatprep.subr.mxu0 0.0
  %372 = vmatpush1.xpose.msra.mxu0 0.0
  %373 = vmatprep.subr.mxu0 0.0
  %374 = vmatpush1.xpose.msra.mxu0 0.0
  %375 = vmatprep.subr.mxu0 0.0
  %376 = vmatpush1.xpose.msra.mxu0 0.0
  %377 = vmatprep.subr.mxu0 0.0
  %378 = vmatpush1.xpose.msra.mxu0 0.0
  %379 = vmatprep.subr.mxu0 0.0
  %380 = vmatpush1.xpose.msra.mxu0 0.0
  %381 = vmatprep.subr.mxu0 0.0
  %382 = vmatpush1.xpose.msra.mxu0 0.0
  %383 = vmatprep.subr.mxu0 0.0
  %384 = vmatpush1.xpose.msra.mxu0 0.0
  %385 = vmatprep.subr.mxu0 0.0
  %386 = vmatpush1.xpose.msra.mxu0 0.0
  %387 = vmatprep.subr.mxu0 0.0
  %388 = vmatpush1.xpose.msra.mxu0 0.0
  %389 = vmatprep.subr.mxu0 0.0
  %390 = vmatpush1.xpose.msra.mxu0 0.0
  %391 = vmatprep.subr.mxu0 0.0
  %392 = vmatpush1.xpose.msra.mxu0 0.0
  %393 = vmatprep.subr.mxu0 0.0
  %394 = vmatpush1.xpose.msra.mxu0 0.0
  %395 = vmatprep.subr.mxu0 0.0
  %396 = vmatpush1.xpose.msra.mxu0 0.0
  %397 = vmatprep.subr.mxu0 0.0
  %398 = vmatpush1.xpose.msra.mxu0 0.0
  %399 = vmatprep.subr.mxu0 0.0
  %400 = vmatpush1.xpose.msra.mxu0 0.0
  %401 = vmatprep.subr.mxu0 0.0
  %402 = vmatpush1.xpose.msra.mxu0 0.0
  %403 = vmatprep.subr.mxu0 0.0
  %404 = vmatpush1.xpose.msra.mxu0 0.0
  %405 = vmatprep.subr.mxu0 0.0
  %406 = vmatpush1.xpose.msra.mxu0 0.0
  %407 = vmatprep.subr.mxu0 0.0
  %408 = vmatpush1.xpose.msra.mxu0 0.0
  %409 = vmatprep.subr.mxu0 0.0
  %410 = vmatpush1.xpose.msra.mxu0 0.0
  %411 = vmatprep.mubr.f32.mxu0 0.0
  %412 = vmatmul.mubr.f32.gmra.mrb[0].mxu0 %v339
  %v413 = vpop.f32.mrb[0].mxu0
  %v414 = vadd.f32 0.0, %v413
  %v415 = vpop.f32.mrb[0].mxu0
  %416 = vmatprep.mubr.f32.mxu0 0.0
  %417 = vmatmul.mubr.f32.gmra.mrb[0].mxu0 %v341
  %v418 = vpop.f32.mrb[0].mxu0
  %v419 = vadd.f32 0.0, %v418
  %v420 = vpop.f32.mrb[0].mxu0
  %421 = vdwg.mxu0
  %v422 = vmul.f32 %v414, 0.35355338
  %v423 = vmul.f32 %v419, 0.35355338
  %v424 = vadd.f32 %v422, %v216
  %v425 = vadd.f32 %v423, %v216
  %v426 = vsel %vm219, %v424, -inf
  %427 = vmax.xlane.f32.xlu0 %v426
  %v428 = vpop.xlane.xlu0 %427
  %v429 = vsel %vm219, %v425, -inf
  %430 = vmax.xlane.f32.xlu0 %v429
  %v431 = vpop.xlane.xlu0 %430
  %v432 = vsub.f32 %v424, %v428
  %v433 = vsub.f32 %v425, %v431
  %v434 = vmul.f32 %v432, 1.442695
  %v435 = vpow.pop %v434
  %v436 = vmul.f32 %v433, 1.442695
  %v437 = vpow.pop %v436
  %v438 = vsel %vm219, %v435, 0.0
  %439 = vadd.xlane.f32.xlu0 %v438
  %v440 = vpop.xlane.xlu0 %439
  %v441 = vsel %vm219, %v437, 0.0
  %442 = vadd.xlane.f32.xlu0 %v441
  %v443 = vpop.xlane.xlu0 %442
  %v444 = vadd.f32 %v440, 1e-20
  %v445 = vadd.f32 %v443, 1e-20
  %v446 = vrcp.pop %v444
  %v447 = vrcp.pop %v445
  %v448 = vmul.f32 %v435, %v446
  %v449 = vmul.f32 %v437, %v447
  %450 = vrot.lane.b32.xlu0 %v107, 56
  %v451 = vpop.permute.xlu0 %450
  %452 = vrot.lane.b32.xlu0 %v110, 56
  %v453 = vpop.permute.xlu0 %452
  %v457 = vsel %vm219, %v448, 0
  %v460 = vsel %vm219, %v449, 0
  %462 = vmatprep.subr.mxu0 0.0
  %463 = vmatpush1.msra.mxu0 %v451
  %464 = vmatprep.subr.mxu0 0.0
  %465 = vmatpush1.msra.mxu0 %v453
  %466 = vmatprep.subr.mxu0 0.0
  %467 = vmatpush1.msra.mxu0 0.0
  %468 = vmatprep.subr.mxu0 0.0
  %469 = vmatpush1.msra.mxu0 0.0
  %470 = vmatprep.subr.mxu0 0.0
  %471 = vmatpush1.msra.mxu0 0.0
  %472 = vmatprep.subr.mxu0 0.0
  %473 = vmatpush1.msra.mxu0 0.0
  %474 = vmatprep.subr.mxu0 0.0
  %475 = vmatpush1.msra.mxu0 0.0
  %476 = vmatprep.subr.mxu0 0.0
  %477 = vmatpush1.msra.mxu0 0.0
  %478 = vmatprep.subr.mxu0 0.0
  %479 = vmatpush1.msra.mxu0 0.0
  %480 = vmatprep.subr.mxu0 0.0
  %481 = vmatpush1.msra.mxu0 0.0
  %482 = vmatprep.subr.mxu0 0.0
  %483 = vmatpush1.msra.mxu0 0.0
  %484 = vmatprep.subr.mxu0 0.0
  %485 = vmatpush1.msra.mxu0 0.0
  %486 = vmatprep.subr.mxu0 0.0
  %487 = vmatpush1.msra.mxu0 0.0
  %488 = vmatprep.subr.mxu0 0.0
  %489 = vmatpush1.msra.mxu0 0.0
  %490 = vmatprep.subr.mxu0 0.0
  %491 = vmatpush1.msra.mxu0 0.0
  %492 = vmatprep.subr.mxu0 0.0
  %493 = vmatpush1.msra.mxu0 0.0
  %494 = vmatprep.subr.mxu0 0.0
  %495 = vmatpush1.msra.mxu0 0.0
  %496 = vmatprep.subr.mxu0 0.0
  %497 = vmatpush1.msra.mxu0 0.0
  %498 = vmatprep.subr.mxu0 0.0
  %499 = vmatpush1.msra.mxu0 0.0
  %500 = vmatprep.subr.mxu0 0.0
  %501 = vmatpush1.msra.mxu0 0.0
  %502 = vmatprep.subr.mxu0 0.0
  %503 = vmatpush1.msra.mxu0 0.0
  %504 = vmatprep.subr.mxu0 0.0
  %505 = vmatpush1.msra.mxu0 0.0
  %506 = vmatprep.subr.mxu0 0.0
  %507 = vmatpush1.msra.mxu0 0.0
  %508 = vmatprep.subr.mxu0 0.0
  %509 = vmatpush1.msra.mxu0 0.0
  %510 = vmatprep.subr.mxu0 0.0
  %511 = vmatpush1.msra.mxu0 0.0
  %512 = vmatprep.subr.mxu0 0.0
  %513 = vmatpush1.msra.mxu0 0.0
  %514 = vmatprep.subr.mxu0 0.0
  %515 = vmatpush1.msra.mxu0 0.0
  %516 = vmatprep.subr.mxu0 0.0
  %517 = vmatpush1.msra.mxu0 0.0
  %518 = vmatprep.subr.mxu0 0.0
  %519 = vmatpush1.msra.mxu0 0.0
  %520 = vmatprep.subr.mxu0 0.0
  %521 = vmatpush1.msra.mxu0 0.0
  %522 = vmatprep.subr.mxu0 0.0
  %523 = vmatpush1.msra.mxu0 0.0
  %524 = vmatprep.subr.mxu0 0.0
  %525 = vmatpush1.msra.mxu0 0.0
  %526 = vmatprep.mubr.f32.mxu0 0.0
  %527 = vmatmul.mubr.f32.gmra.mrb[0].mxu0 %v457
  %v528 = vpop.f32.mrb[0].mxu0
  %v529 = vadd.f32 0.0, %v528
  %v530 = vpop.f32.mrb[0].mxu0
  %531 = vmatprep.mubr.f32.mxu0 0.0
  %532 = vmatmul.mubr.f32.gmra.mrb[0].mxu0 %v460
  %v533 = vpop.f32.mrb[0].mxu0
  %v534 = vadd.f32 0.0, %v533
  %v535 = vpop.f32.mrb[0].mxu0
  %536 = vdwg.mxu0
  %537 = vrot.lane.b32.xlu0 %v107, 112
  %v538 = vpop.permute.xlu0 %537
  %539 = vrot.lane.b32.xlu0 %v110, 112
  %v540 = vpop.permute.xlu0 %539
  %541 = vrot.lane.b32.xlu0 %v107, 80
  %v542 = vpop.permute.xlu0 %541
  %543 = vrot.lane.b32.xlu0 %v110, 80
  %v544 = vpop.permute.xlu0 %543
  %v545 = vsel %vm127, %v538, 0
  %v547 = vsel %vm127, %v540, 0
  %v549 = vsel %vm127, %v542, 0
  %v551 = vsel %vm127, %v544, 0
  %553 = vmatprep.subr.mxu0 0.0
  %554 = vmatpush1.xpose.msra.mxu0 %v549
  %555 = vmatprep.subr.mxu0 0.0
  %556 = vmatpush1.xpose.msra.mxu0 %v551
  %557 = vmatprep.subr.mxu0 0.0
  %558 = vmatpush1.xpose.msra.mxu0 0.0
  %559 = vmatprep.subr.mxu0 0.0
  %560 = vmatpush1.xpose.msra.mxu0 0.0
  %561 = vmatprep.subr.mxu0 0.0
  %562 = vmatpush1.xpose.msra.mxu0 0.0
  %563 = vmatprep.subr.mxu0 0.0
  %564 = vmatpush1.xpose.msra.mxu0 0.0
  %565 = vmatprep.subr.mxu0 0.0
  %566 = vmatpush1.xpose.msra.mxu0 0.0
  %567 = vmatprep.subr.mxu0 0.0
  %568 = vmatpush1.xpose.msra.mxu0 0.0
  %569 = vmatprep.subr.mxu0 0.0
  %570 = vmatpush1.xpose.msra.mxu0 0.0
  %571 = vmatprep.subr.mxu0 0.0
  %572 = vmatpush1.xpose.msra.mxu0 0.0
  %573 = vmatprep.subr.mxu0 0.0
  %574 = vmatpush1.xpose.msra.mxu0 0.0
  %575 = vmatprep.subr.mxu0 0.0
  %576 = vmatpush1.xpose.msra.mxu0 0.0
  %577 = vmatprep.subr.mxu0 0.0
  %578 = vmatpush1.xpose.msra.mxu0 0.0
  %579 = vmatprep.subr.mxu0 0.0
  %580 = vmatpush1.xpose.msra.mxu0 0.0
  %581 = vmatprep.subr.mxu0 0.0
  %582 = vmatpush1.xpose.msra.mxu0 0.0
  %583 = vmatprep.subr.mxu0 0.0
  %584 = vmatpush1.xpose.msra.mxu0 0.0
  %585 = vmatprep.subr.mxu0 0.0
  %586 = vmatpush1.xpose.msra.mxu0 0.0
  %587 = vmatprep.subr.mxu0 0.0
  %588 = vmatpush1.xpose.msra.mxu0 0.0
  %589 = vmatprep.subr.mxu0 0.0
  %590 = vmatpush1.xpose.msra.mxu0 0.0
  %591 = vmatprep.subr.mxu0 0.0
  %592 = vmatpush1.xpose.msra.mxu0 0.0
  %593 = vmatprep.subr.mxu0 0.0
  %594 = vmatpush1.xpose.msra.mxu0 0.0
  %595 = vmatprep.subr.mxu0 0.0
  %596 = vmatpush1.xpose.msra.mxu0 0.0
  %597 = vmatprep.subr.mxu0 0.0
  %598 = vmatpush1.xpose.msra.mxu0 0.0
  %599 = vmatprep.subr.mxu0 0.0
  %600 = vmatpush1.xpose.msra.mxu0 0.0
  %601 = vmatprep.subr.mxu0 0.0
  %602 = vmatpush1.xpose.msra.mxu0 0.0
  %603 = vmatprep.subr.mxu0 0.0
  %604 = vmatpush1.xpose.msra.mxu0 0.0
  %605 = vmatprep.subr.mxu0 0.0
  %606 = vmatpush1.xpose.msra.mxu0 0.0
  %607 = vmatprep.subr.mxu0 0.0
  %608 = vmatpush1.xpose.msra.mxu0 0.0
  %609 = vmatprep.subr.mxu0 0.0
  %610 = vmatpush1.xpose.msra.mxu0 0.0
  %611 = vmatprep.subr.mxu0 0.0
  %612 = vmatpush1.xpose.msra.mxu0 0.0
  %613 = vmatprep.subr.mxu0 0.0
  %614 = vmatpush1.xpose.msra.mxu0 0.0
  %615 = vmatprep.subr.mxu0 0.0
  %616 = vmatpush1.xpose.msra.mxu0 0.0
  %617 = vmatprep.mubr.f32.mxu0 0.0
  %618 = vmatmul.mubr.f32.gmra.mrb[0].mxu0 %v545
  %v619 = vpop.f32.mrb[0].mxu0
  %v620 = vadd.f32 0.0, %v619
  %v621 = vpop.f32.mrb[0].mxu0
  %622 = vmatprep.mubr.f32.mxu0 0.0
  %623 = vmatmul.mubr.f32.gmra.mrb[0].mxu0 %v547
  %v624 = vpop.f32.mrb[0].mxu0
  %v625 = vadd.f32 0.0, %v624
  %v626 = vpop.f32.mrb[0].mxu0
  %627 = vdwg.mxu0
  %v628 = vmul.f32 %v620, 0.35355338
  %v629 = vmul.f32 %v625, 0.35355338
  %v630 = vadd.f32 %v628, %v216
  %v631 = vadd.f32 %v629, %v216
  %v632 = vsel %vm219, %v630, -inf
  %633 = vmax.xlane.f32.xlu0 %v632
  %v634 = vpop.xlane.xlu0 %633
  %v635 = vsel %vm219, %v631, -inf
  %636 = vmax.xlane.f32.xlu0 %v635
  %v637 = vpop.xlane.xlu0 %636
  %v638 = vsub.f32 %v630, %v634
  %v639 = vsub.f32 %v631, %v637
  %v640 = vmul.f32 %v638, 1.442695
  %v641 = vpow.pop %v640
  %v642 = vmul.f32 %v639, 1.442695
  %v643 = vpow.pop %v642
  %v644 = vsel %vm219, %v641, 0.0
  %645 = vadd.xlane.f32.xlu0 %v644
  %v646 = vpop.xlane.xlu0 %645
  %v647 = vsel %vm219, %v643, 0.0
  %648 = vadd.xlane.f32.xlu0 %v647
  %v649 = vpop.xlane.xlu0 %648
  %v650 = vadd.f32 %v646, 1e-20
  %v651 = vadd.f32 %v649, 1e-20
  %v652 = vrcp.pop %v650
  %v653 = vrcp.pop %v651
  %v654 = vmul.f32 %v641, %v652
  %v655 = vmul.f32 %v643, %v653
  %656 = vrot.lane.b32.xlu0 %v107, 48
  %v657 = vpop.permute.xlu0 %656
  %658 = vrot.lane.b32.xlu0 %v110, 48
  %v659 = vpop.permute.xlu0 %658
  %v663 = vsel %vm219, %v654, 0
  %v666 = vsel %vm219, %v655, 0
  %668 = vmatprep.subr.mxu0 0.0
  %669 = vmatpush1.msra.mxu0 %v657
  %670 = vmatprep.subr.mxu0 0.0
  %671 = vmatpush1.msra.mxu0 %v659
  %672 = vmatprep.subr.mxu0 0.0
  %673 = vmatpush1.msra.mxu0 0.0
  %674 = vmatprep.subr.mxu0 0.0
  %675 = vmatpush1.msra.mxu0 0.0
  %676 = vmatprep.subr.mxu0 0.0
  %677 = vmatpush1.msra.mxu0 0.0
  %678 = vmatprep.subr.mxu0 0.0
  %679 = vmatpush1.msra.mxu0 0.0
  %680 = vmatprep.subr.mxu0 0.0
  %681 = vmatpush1.msra.mxu0 0.0
  %682 = vmatprep.subr.mxu0 0.0
  %683 = vmatpush1.msra.mxu0 0.0
  %684 = vmatprep.subr.mxu0 0.0
  %685 = vmatpush1.msra.mxu0 0.0
  %686 = vmatprep.subr.mxu0 0.0
  %687 = vmatpush1.msra.mxu0 0.0
  %688 = vmatprep.subr.mxu0 0.0
  %689 = vmatpush1.msra.mxu0 0.0
  %690 = vmatprep.subr.mxu0 0.0
  %691 = vmatpush1.msra.mxu0 0.0
  %692 = vmatprep.subr.mxu0 0.0
  %693 = vmatpush1.msra.mxu0 0.0
  %694 = vmatprep.subr.mxu0 0.0
  %695 = vmatpush1.msra.mxu0 0.0
  %696 = vmatprep.subr.mxu0 0.0
  %697 = vmatpush1.msra.mxu0 0.0
  %698 = vmatprep.subr.mxu0 0.0
  %699 = vmatpush1.msra.mxu0 0.0
  %700 = vmatprep.subr.mxu0 0.0
  %701 = vmatpush1.msra.mxu0 0.0
  %702 = vmatprep.subr.mxu0 0.0
  %703 = vmatpush1.msra.mxu0 0.0
  %704 = vmatprep.subr.mxu0 0.0
  %705 = vmatpush1.msra.mxu0 0.0
  %706 = vmatprep.subr.mxu0 0.0
  %707 = vmatpush1.msra.mxu0 0.0
  %708 = vmatprep.subr.mxu0 0.0
  %709 = vmatpush1.msra.mxu0 0.0
  %710 = vmatprep.subr.mxu0 0.0
  %711 = vmatpush1.msra.mxu0 0.0
  %712 = vmatprep.subr.mxu0 0.0
  %713 = vmatpush1.msra.mxu0 0.0
  %714 = vmatprep.subr.mxu0 0.0
  %715 = vmatpush1.msra.mxu0 0.0
  %716 = vmatprep.subr.mxu0 0.0
  %717 = vmatpush1.msra.mxu0 0.0
  %718 = vmatprep.subr.mxu0 0.0
  %719 = vmatpush1.msra.mxu0 0.0
  %720 = vmatprep.subr.mxu0 0.0
  %721 = vmatpush1.msra.mxu0 0.0
  %722 = vmatprep.subr.mxu0 0.0
  %723 = vmatpush1.msra.mxu0 0.0
  %724 = vmatprep.subr.mxu0 0.0
  %725 = vmatpush1.msra.mxu0 0.0
  %726 = vmatprep.subr.mxu0 0.0
  %727 = vmatpush1.msra.mxu0 0.0
  %728 = vmatprep.subr.mxu0 0.0
  %729 = vmatpush1.msra.mxu0 0.0
  %730 = vmatprep.subr.mxu0 0.0
  %731 = vmatpush1.msra.mxu0 0.0
  %732 = vmatprep.mubr.f32.mxu0 0.0
  %733 = vmatmul.mubr.f32.gmra.mrb[0].mxu0 %v663
  %v734 = vpop.f32.mrb[0].mxu0
  %v735 = vadd.f32 0.0, %v734
  %v736 = vpop.f32.mrb[0].mxu0
  %737 = vmatprep.mubr.f32.mxu0 0.0
  %738 = vmatmul.mubr.f32.gmra.mrb[0].mxu0 %v666
  %v739 = vpop.f32.mrb[0].mxu0
  %v740 = vadd.f32 0.0, %v739
  %v741 = vpop.f32.mrb[0].mxu0
  %742 = vdwg.mxu0
  %743 = vrot.lane.b32.xlu0 %v107, 104
  %v744 = vpop.permute.xlu0 %743
  %745 = vrot.lane.b32.xlu0 %v110, 104
  %v746 = vpop.permute.xlu0 %745
  %747 = vrot.lane.b32.xlu0 %v107, 72
  %v748 = vpop.permute.xlu0 %747
  %749 = vrot.lane.b32.xlu0 %v110, 72
  %v750 = vpop.permute.xlu0 %749
  %v751 = vsel %vm127, %v744, 0
  %v753 = vsel %vm127, %v746, 0
  %v755 = vsel %vm127, %v748, 0
  %v757 = vsel %vm127, %v750, 0
  %759 = vmatprep.subr.mxu0 0.0
  %760 = vmatpush1.xpose.msra.mxu0 %v755
  %761 = vmatprep.subr.mxu0 0.0
  %762 = vmatpush1.xpose.msra.mxu0 %v757
  %763 = vmatprep.subr.mxu0 0.0
  %764 = vmatpush1.xpose.msra.mxu0 0.0
  %765 = vmatprep.subr.mxu0 0.0
  %766 = vmatpush1.xpose.msra.mxu0 0.0
  %767 = vmatprep.subr.mxu0 0.0
  %768 = vmatpush1.xpose.msra.mxu0 0.0
  %769 = vmatprep.subr.mxu0 0.0
  %770 = vmatpush1.xpose.msra.mxu0 0.0
  %771 = vmatprep.subr.mxu0 0.0
  %772 = vmatpush1.xpose.msra.mxu0 0.0
  %773 = vmatprep.subr.mxu0 0.0
  %774 = vmatpush1.xpose.msra.mxu0 0.0
  %775 = vmatprep.subr.mxu0 0.0
  %776 = vmatpush1.xpose.msra.mxu0 0.0
  %777 = vmatprep.subr.mxu0 0.0
  %778 = vmatpush1.xpose.msra.mxu0 0.0
  %779 = vmatprep.subr.mxu0 0.0
  %780 = vmatpush1.xpose.msra.mxu0 0.0
  %781 = vmatprep.subr.mxu0 0.0
  %782 = vmatpush1.xpose.msra.mxu0 0.0
  %783 = vmatprep.subr.mxu0 0.0
  %784 = vmatpush1.xpose.msra.mxu0 0.0
  %785 = vmatprep.subr.mxu0 0.0
  %786 = vmatpush1.xpose.msra.mxu0 0.0
  %787 = vmatprep.subr.mxu0 0.0
  %788 = vmatpush1.xpose.msra.mxu0 0.0
  %789 = vmatprep.subr.mxu0 0.0
  %790 = vmatpush1.xpose.msra.mxu0 0.0
  %791 = vmatprep.subr.mxu0 0.0
  %792 = vmatpush1.xpose.msra.mxu0 0.0
  %793 = vmatprep.subr.mxu0 0.0
  %794 = vmatpush1.xpose.msra.mxu0 0.0
  %795 = vmatprep.subr.mxu0 0.0
  %796 = vmatpush1.xpose.msra.mxu0 0.0
  %797 = vmatprep.subr.mxu0 0.0
  %798 = vmatpush1.xpose.msra.mxu0 0.0
  %799 = vmatprep.subr.mxu0 0.0
  %800 = vmatpush1.xpose.msra.mxu0 0.0
  %801 = vmatprep.subr.mxu0 0.0
  %802 = vmatpush1.xpose.msra.mxu0 0.0
  %803 = vmatprep.subr.mxu0 0.0
  %804 = vmatpush1.xpose.msra.mxu0 0.0
  %805 = vmatprep.subr.mxu0 0.0
  %806 = vmatpush1.xpose.msra.mxu0 0.0
  %807 = vmatprep.subr.mxu0 0.0
  %808 = vmatpush1.xpose.msra.mxu0 0.0
  %809 = vmatprep.subr.mxu0 0.0
  %810 = vmatpush1.xpose.msra.mxu0 0.0
  %811 = vmatprep.subr.mxu0 0.0
  %812 = vmatpush1.xpose.msra.mxu0 0.0
  %813 = vmatprep.subr.mxu0 0.0
  %814 = vmatpush1.xpose.msra.mxu0 0.0
  %815 = vmatprep.subr.mxu0 0.0
  %816 = vmatpush1.xpose.msra.mxu0 0.0
  %817 = vmatprep.subr.mxu0 0.0
  %818 = vmatpush1.xpose.msra.mxu0 0.0
  %819 = vmatprep.subr.mxu0 0.0
  %820 = vmatpush1.xpose.msra.mxu0 0.0
  %821 = vmatprep.subr.mxu0 0.0
  %822 = vmatpush1.xpose.msra.mxu0 0.0
  %823 = vmatprep.mubr.f32.mxu0 0.0
  %824 = vmatmul.mubr.f32.gmra.mrb[0].mxu0 %v751
  %v825 = vpop.f32.mrb[0].mxu0
  %v826 = vadd.f32 0.0, %v825
  %v827 = vpop.f32.mrb[0].mxu0
  %828 = vmatprep.mubr.f32.mxu0 0.0
  %829 = vmatmul.mubr.f32.gmra.mrb[0].mxu0 %v753
  %v830 = vpop.f32.mrb[0].mxu0
  %v831 = vadd.f32 0.0, %v830
  %v832 = vpop.f32.mrb[0].mxu0
  %833 = vdwg.mxu0
  %v834 = vmul.f32 %v826, 0.35355338
  %v835 = vmul.f32 %v831, 0.35355338
  %v836 = vadd.f32 %v834, %v216
  %v837 = vadd.f32 %v835, %v216
  %v838 = vsel %vm219, %v836, -inf
  %839 = vmax.xlane.f32.xlu0 %v838
  %v840 = vpop.xlane.xlu0 %839
  %v841 = vsel %vm219, %v837, -inf
  %842 = vmax.xlane.f32.xlu0 %v841
  %v843 = vpop.xlane.xlu0 %842
  %v844 = vsub.f32 %v836, %v840
  %v845 = vsub.f32 %v837, %v843
  %v846 = vmul.f32 %v844, 1.442695
  %v847 = vpow.pop %v846
  %v848 = vmul.f32 %v845, 1.442695
  %v849 = vpow.pop %v848
  %v850 = vsel %vm219, %v847, 0.0
  %851 = vadd.xlane.f32.xlu0 %v850
  %v852 = vpop.xlane.xlu0 %851
  %v853 = vsel %vm219, %v849, 0.0
  %854 = vadd.xlane.f32.xlu0 %v853
  %v855 = vpop.xlane.xlu0 %854
  %v856 = vadd.f32 %v852, 1e-20
  %v857 = vadd.f32 %v855, 1e-20
  %v858 = vrcp.pop %v856
  %v859 = vrcp.pop %v857
  %v860 = vmul.f32 %v847, %v858
  %v861 = vmul.f32 %v849, %v859
  %862 = vrot.lane.b32.xlu0 %v107, 40
  %v863 = vpop.permute.xlu0 %862
  %864 = vrot.lane.b32.xlu0 %v110, 40
  %v865 = vpop.permute.xlu0 %864
  %v869 = vsel %vm219, %v860, 0
  %v872 = vsel %vm219, %v861, 0
  %874 = vmatprep.subr.mxu0 0.0
  %875 = vmatpush1.msra.mxu0 %v863
  %876 = vmatprep.subr.mxu0 0.0
  %877 = vmatpush1.msra.mxu0 %v865
  %878 = vmatprep.subr.mxu0 0.0
  %879 = vmatpush1.msra.mxu0 0.0
  %880 = vmatprep.subr.mxu0 0.0
  %881 = vmatpush1.msra.mxu0 0.0
  %882 = vmatprep.subr.mxu0 0.0
  %883 = vmatpush1.msra.mxu0 0.0
  %884 = vmatprep.subr.mxu0 0.0
  %885 = vmatpush1.msra.mxu0 0.0
  %886 = vmatprep.subr.mxu0 0.0
  %887 = vmatpush1.msra.mxu0 0.0
  %888 = vmatprep.subr.mxu0 0.0
  %889 = vmatpush1.msra.mxu0 0.0
  %890 = vmatprep.subr.mxu0 0.0
  %891 = vmatpush1.msra.mxu0 0.0
  %892 = vmatprep.subr.mxu0 0.0
  %893 = vmatpush1.msra.mxu0 0.0
  %894 = vmatprep.subr.mxu0 0.0
  %895 = vmatpush1.msra.mxu0 0.0
  %896 = vmatprep.subr.mxu0 0.0
  %897 = vmatpush1.msra.mxu0 0.0
  %898 = vmatprep.subr.mxu0 0.0
  %899 = vmatpush1.msra.mxu0 0.0
  %900 = vmatprep.subr.mxu0 0.0
  %901 = vmatpush1.msra.mxu0 0.0
  %902 = vmatprep.subr.mxu0 0.0
  %903 = vmatpush1.msra.mxu0 0.0
  %904 = vmatprep.subr.mxu0 0.0
  %905 = vmatpush1.msra.mxu0 0.0
  %906 = vmatprep.subr.mxu0 0.0
  %907 = vmatpush1.msra.mxu0 0.0
  %908 = vmatprep.subr.mxu0 0.0
  %909 = vmatpush1.msra.mxu0 0.0
  %910 = vmatprep.subr.mxu0 0.0
  %911 = vmatpush1.msra.mxu0 0.0
  %912 = vmatprep.subr.mxu0 0.0
  %913 = vmatpush1.msra.mxu0 0.0
  %914 = vmatprep.subr.mxu0 0.0
  %915 = vmatpush1.msra.mxu0 0.0
  %916 = vmatprep.subr.mxu0 0.0
  %917 = vmatpush1.msra.mxu0 0.0
  %918 = vmatprep.subr.mxu0 0.0
  %919 = vmatpush1.msra.mxu0 0.0
  %920 = vmatprep.subr.mxu0 0.0
  %921 = vmatpush1.msra.mxu0 0.0
  %922 = vmatprep.subr.mxu0 0.0
  %923 = vmatpush1.msra.mxu0 0.0
  %924 = vmatprep.subr.mxu0 0.0
  %925 = vmatpush1.msra.mxu0 0.0
  %926 = vmatprep.subr.mxu0 0.0
  %927 = vmatpush1.msra.mxu0 0.0
  %928 = vmatprep.subr.mxu0 0.0
  %929 = vmatpush1.msra.mxu0 0.0
  %930 = vmatprep.subr.mxu0 0.0
  %931 = vmatpush1.msra.mxu0 0.0
  %932 = vmatprep.subr.mxu0 0.0
  %933 = vmatpush1.msra.mxu0 0.0
  %934 = vmatprep.subr.mxu0 0.0
  %935 = vmatpush1.msra.mxu0 0.0
  %936 = vmatprep.subr.mxu0 0.0
  %937 = vmatpush1.msra.mxu0 0.0
  %938 = vmatprep.mubr.f32.mxu0 0.0
  %939 = vmatmul.mubr.f32.gmra.mrb[0].mxu0 %v869
  %v940 = vpop.f32.mrb[0].mxu0
  %v941 = vadd.f32 0.0, %v940
  %v942 = vpop.f32.mrb[0].mxu0
  %943 = vmatprep.mubr.f32.mxu0 0.0
  %944 = vmatmul.mubr.f32.gmra.mrb[0].mxu0 %v872
  %v945 = vpop.f32.mrb[0].mxu0
  %v946 = vadd.f32 0.0, %v945
  %v947 = vpop.f32.mrb[0].mxu0
  %948 = vdwg.mxu0
  %951 = vrot.lane.b32.xlu0 %v529, 8
  %v952 = vpop.permute.xlu0 %951
  %953 = vrot.lane.b32.xlu0 %v534, 8
  %v954 = vpop.permute.xlu0 %953
  %959 = vrot.lane.b32.xlu0 %v735, 16
  %v960 = vpop.permute.xlu0 %959
  %961 = vrot.lane.b32.xlu0 %v740, 16
  %v962 = vpop.permute.xlu0 %961
  %967 = vrot.lane.b32.xlu0 %v941, 24
  %v968 = vpop.permute.xlu0 %967
  %969 = vrot.lane.b32.xlu0 %v946, 24
  %v970 = vpop.permute.xlu0 %969
  %v973 = vsel %vm127, %v323, %v952
  %v974 = vsel %vm127, %v328, %v954
  %v975 = vsel %vm219, %v973, %v960
  %v976 = vsel %vm219, %v974, %v962
  %vm977 = vcmask 195584
  %v978 = vsel %vm977, %v975, %v968
  %v979 = vsel %vm977, %v976, %v970
  %982 = vrot.lane.b32.xlu0 %v115, 96
  %v983 = vpop.permute.xlu0 %982
  %984 = vrot.lane.b32.xlu0 %v118, 96
  %v985 = vpop.permute.xlu0 %984
  %v986 = vsel %vm127, %v115, 0
  %v988 = vsel %vm127, %v118, 0
  %v990 = vsel %vm127, %v983, 0
  %v992 = vsel %vm127, %v985, 0
  %994 = vmatprep.subr.mxu0 0.0
  %995 = vmatpush1.xpose.msra.mxu0 %v990
  %996 = vmatprep.subr.mxu0 0.0
  %997 = vmatpush1.xpose.msra.mxu0 %v992
  %998 = vmatprep.subr.mxu0 0.0
  %999 = vmatpush1.xpose.msra.mxu0 0.0
  %1000 = vmatprep.subr.mxu0 0.0
  %1001 = vmatpush1.xpose.msra.mxu0 0.0
  %1002 = vmatprep.subr.mxu0 0.0
  %1003 = vmatpush1.xpose.msra.mxu0 0.0
  %1004 = vmatprep.subr.mxu0 0.0
  %1005 = vmatpush1.xpose.msra.mxu0 0.0
  %1006 = vmatprep.subr.mxu0 0.0
  %1007 = vmatpush1.xpose.msra.mxu0 0.0
  %1008 = vmatprep.subr.mxu0 0.0
  %1009 = vmatpush1.xpose.msra.mxu0 0.0
  %1010 = vmatprep.subr.mxu0 0.0
  %1011 = vmatpush1.xpose.msra.mxu0 0.0
  %1012 = vmatprep.subr.mxu0 0.0
  %1013 = vmatpush1.xpose.msra.mxu0 0.0
  %1014 = vmatprep.subr.mxu0 0.0
  %1015 = vmatpush1.xpose.msra.mxu0 0.0
  %1016 = vmatprep.subr.mxu0 0.0
  %1017 = vmatpush1.xpose.msra.mxu0 0.0
  %1018 = vmatprep.subr.mxu0 0.0
  %1019 = vmatpush1.xpose.msra.mxu0 0.0
  %1020 = vmatprep.subr.mxu0 0.0
  %1021 = vmatpush1.xpose.msra.mxu0 0.0
  %1022 = vmatprep.subr.mxu0 0.0
  %1023 = vmatpush1.xpose.msra.mxu0 0.0
  %1024 = vmatprep.subr.mxu0 0.0
  %1025 = vmatpush1.xpose.msra.mxu0 0.0
  %1026 = vmatprep.subr.mxu0 0.0
  %1027 = vmatpush1.xpose.msra.mxu0 0.0
  %1028 = vmatprep.subr.mxu0 0.0
  %1029 = vmatpush1.xpose.msra.mxu0 0.0
  %1030 = vmatprep.subr.mxu0 0.0
  %1031 = vmatpush1.xpose.msra.mxu0 0.0
  %1032 = vmatprep.subr.mxu0 0.0
  %1033 = vmatpush1.xpose.msra.mxu0 0.0
  %1034 = vmatprep.subr.mxu0 0.0
  %1035 = vmatpush1.xpose.msra.mxu0 0.0
  %1036 = vmatprep.subr.mxu0 0.0
  %1037 = vmatpush1.xpose.msra.mxu0 0.0
  %1038 = vmatprep.subr.mxu0 0.0
  %1039 = vmatpush1.xpose.msra.mxu0 0.0
  %1040 = vmatprep.subr.mxu0 0.0
  %1041 = vmatpush1.xpose.msra.mxu0 0.0
  %1042 = vmatprep.subr.mxu0 0.0
  %1043 = vmatpush1.xpose.msra.mxu0 0.0
  %1044 = vmatprep.subr.mxu0 0.0
  %1045 = vmatpush1.xpose.msra.mxu0 0.0
  %1046 = vmatprep.subr.mxu0 0.0
  %1047 = vmatpush1.xpose.msra.mxu0 0.0
  %1048 = vmatprep.subr.mxu0 0.0
  %1049 = vmatpush1.xpose.msra.mxu0 0.0
  %1050 = vmatprep.subr.mxu0 0.0
  %1051 = vmatpush1.xpose.msra.mxu0 0.0
  %1052 = vmatprep.subr.mxu0 0.0
  %1053 = vmatpush1.xpose.msra.mxu0 0.0
  %1054 = vmatprep.subr.mxu0 0.0
  %1055 = vmatpush1.xpose.msra.mxu0 0.0
  %1056 = vmatprep.subr.mxu0 0.0
  %1057 = vmatpush1.xpose.msra.mxu0 0.0
  %1058 = vmatprep.mubr.f32.mxu0 0.0
  %1059 = vmatmul.mubr.f32.gmra.mrb[0].mxu0 %v986
  %v1060 = vpop.f32.mrb[0].mxu0
  %v1061 = vadd.f32 0.0, %v1060
  %v1062 = vpop.f32.mrb[0].mxu0
  %1063 = vmatprep.mubr.f32.mxu0 0.0
  %1064 = vmatmul.mubr.f32.gmra.mrb[0].mxu0 %v988
  %v1065 = vpop.f32.mrb[0].mxu0
  %v1066 = vadd.f32 0.0, %v1065
  %v1067 = vpop.f32.mrb[0].mxu0
  %1068 = vdwg.mxu0
  %v1069 = vmul.f32 %v1061, 0.35355338
  %v1070 = vmul.f32 %v1066, 0.35355338
  %v1071 = vlaneseq
  %v1072 = vshrl.u32 %v1071, 7
  %v1073 = vsub.s32 1, %v1072
  %v1074 = vrot.slane %v37, %v1073
  %v1075 = vadd.f32 %v1069, %v1074
  %v1076 = vadd.f32 %v1070, %v1074
  %v1077 = vsel %vm219, %v1075, -inf
  %1078 = vmax.xlane.f32.xlu0 %v1077
  %v1079 = vpop.xlane.xlu0 %1078
  %v1080 = vsel %vm219, %v1076, -inf
  %1081 = vmax.xlane.f32.xlu0 %v1080
  %v1082 = vpop.xlane.xlu0 %1081
  %v1083 = vsub.f32 %v1075, %v1079
  %v1084 = vsub.f32 %v1076, %v1082
  %v1085 = vmul.f32 %v1083, 1.442695
  %v1086 = vpow.pop %v1085
  %v1087 = vmul.f32 %v1084, 1.442695
  %v1088 = vpow.pop %v1087
  %v1089 = vsel %vm219, %v1086, 0.0
  %1090 = vadd.xlane.f32.xlu0 %v1089
  %v1091 = vpop.xlane.xlu0 %1090
  %v1092 = vsel %vm219, %v1088, 0.0
  %1093 = vadd.xlane.f32.xlu0 %v1092
  %v1094 = vpop.xlane.xlu0 %1093
  %v1095 = vadd.f32 %v1091, 1e-20
  %v1096 = vadd.f32 %v1094, 1e-20
  %v1097 = vrcp.pop %v1095
  %v1098 = vrcp.pop %v1096
  %v1099 = vmul.f32 %v1086, %v1097
  %v1100 = vmul.f32 %v1088, %v1098
  %1101 = vrot.lane.b32.xlu0 %v115, 64
  %v1102 = vpop.permute.xlu0 %1101
  %1103 = vrot.lane.b32.xlu0 %v118, 64
  %v1104 = vpop.permute.xlu0 %1103
  %v1108 = vsel %vm219, %v1099, 0
  %v1111 = vsel %vm219, %v1100, 0
  %1113 = vmatprep.subr.mxu0 0.0
  %1114 = vmatpush1.msra.mxu0 %v1102
  %1115 = vmatprep.subr.mxu0 0.0
  %1116 = vmatpush1.msra.mxu0 %v1104
  %1117 = vmatprep.subr.mxu0 0.0
  %1118 = vmatpush1.msra.mxu0 0.0
  %1119 = vmatprep.subr.mxu0 0.0
  %1120 = vmatpush1.msra.mxu0 0.0
  %1121 = vmatprep.subr.mxu0 0.0
  %1122 = vmatpush1.msra.mxu0 0.0
  %1123 = vmatprep.subr.mxu0 0.0
  %1124 = vmatpush1.msra.mxu0 0.0
  %1125 = vmatprep.subr.mxu0 0.0
  %1126 = vmatpush1.msra.mxu0 0.0
  %1127 = vmatprep.subr.mxu0 0.0
  %1128 = vmatpush1.msra.mxu0 0.0
  %1129 = vmatprep.subr.mxu0 0.0
  %1130 = vmatpush1.msra.mxu0 0.0
  %1131 = vmatprep.subr.mxu0 0.0
  %1132 = vmatpush1.msra.mxu0 0.0
  %1133 = vmatprep.subr.mxu0 0.0
  %1134 = vmatpush1.msra.mxu0 0.0
  %1135 = vmatprep.subr.mxu0 0.0
  %1136 = vmatpush1.msra.mxu0 0.0
  %1137 = vmatprep.subr.mxu0 0.0
  %1138 = vmatpush1.msra.mxu0 0.0
  %1139 = vmatprep.subr.mxu0 0.0
  %1140 = vmatpush1.msra.mxu0 0.0
  %1141 = vmatprep.subr.mxu0 0.0
  %1142 = vmatpush1.msra.mxu0 0.0
  %1143 = vmatprep.subr.mxu0 0.0
  %1144 = vmatpush1.msra.mxu0 0.0
  %1145 = vmatprep.subr.mxu0 0.0
  %1146 = vmatpush1.msra.mxu0 0.0
  %1147 = vmatprep.subr.mxu0 0.0
  %1148 = vmatpush1.msra.mxu0 0.0
  %1149 = vmatprep.subr.mxu0 0.0
  %1150 = vmatpush1.msra.mxu0 0.0
  %1151 = vmatprep.subr.mxu0 0.0
  %1152 = vmatpush1.msra.mxu0 0.0
  %1153 = vmatprep.subr.mxu0 0.0
  %1154 = vmatpush1.msra.mxu0 0.0
  %1155 = vmatprep.subr.mxu0 0.0
  %1156 = vmatpush1.msra.mxu0 0.0
  %1157 = vmatprep.subr.mxu0 0.0
  %1158 = vmatpush1.msra.mxu0 0.0
  %1159 = vmatprep.subr.mxu0 0.0
  %1160 = vmatpush1.msra.mxu0 0.0
  %1161 = vmatprep.subr.mxu0 0.0
  %1162 = vmatpush1.msra.mxu0 0.0
  %1163 = vmatprep.subr.mxu0 0.0
  %1164 = vmatpush1.msra.mxu0 0.0
  %1165 = vmatprep.subr.mxu0 0.0
  %1166 = vmatpush1.msra.mxu0 0.0
  %1167 = vmatprep.subr.mxu0 0.0
  %1168 = vmatpush1.msra.mxu0 0.0
  %1169 = vmatprep.subr.mxu0 0.0
  %1170 = vmatpush1.msra.mxu0 0.0
  %1171 = vmatprep.subr.mxu0 0.0
  %1172 = vmatpush1.msra.mxu0 0.0
  %1173 = vmatprep.subr.mxu0 0.0
  %1174 = vmatpush1.msra.mxu0 0.0
  %1175 = vmatprep.subr.mxu0 0.0
  %1176 = vmatpush1.msra.mxu0 0.0
  %1177 = vmatprep.mubr.f32.mxu0 0.0
  %1178 = vmatmul.mubr.f32.gmra.mrb[0].mxu0 %v1108
  %v1179 = vpop.f32.mrb[0].mxu0
  %v1180 = vadd.f32 0.0, %v1179
  %v1181 = vpop.f32.mrb[0].mxu0
  %1182 = vmatprep.mubr.f32.mxu0 0.0
  %1183 = vmatmul.mubr.f32.gmra.mrb[0].mxu0 %v1111
  %v1184 = vpop.f32.mrb[0].mxu0
  %v1185 = vadd.f32 0.0, %v1184
  %v1186 = vpop.f32.mrb[0].mxu0
  %1187 = vdwg.mxu0
  %1188 = vrot.lane.b32.xlu0 %v115, 120
  %v1189 = vpop.permute.xlu0 %1188
  %1190 = vrot.lane.b32.xlu0 %v118, 120
  %v1191 = vpop.permute.xlu0 %1190
  %1192 = vrot.lane.b32.xlu0 %v115, 88
  %v1193 = vpop.permute.xlu0 %1192
  %1194 = vrot.lane.b32.xlu0 %v118, 88
  %v1195 = vpop.permute.xlu0 %1194
  %v1196 = vsel %vm127, %v1189, 0
  %v1198 = vsel %vm127, %v1191, 0
  %v1200 = vsel %vm127, %v1193, 0
  %v1202 = vsel %vm127, %v1195, 0
  %1204 = vmatprep.subr.mxu0 0.0
  %1205 = vmatpush1.xpose.msra.mxu0 %v1200
  %1206 = vmatprep.subr.mxu0 0.0
  %1207 = vmatpush1.xpose.msra.mxu0 %v1202
  %1208 = vmatprep.subr.mxu0 0.0
  %1209 = vmatpush1.xpose.msra.mxu0 0.0
  %1210 = vmatprep.subr.mxu0 0.0
  %1211 = vmatpush1.xpose.msra.mxu0 0.0
  %1212 = vmatprep.subr.mxu0 0.0
  %1213 = vmatpush1.xpose.msra.mxu0 0.0
  %1214 = vmatprep.subr.mxu0 0.0
  %1215 = vmatpush1.xpose.msra.mxu0 0.0
  %1216 = vmatprep.subr.mxu0 0.0
  %1217 = vmatpush1.xpose.msra.mxu0 0.0
  %1218 = vmatprep.subr.mxu0 0.0
  %1219 = vmatpush1.xpose.msra.mxu0 0.0
  %1220 = vmatprep.subr.mxu0 0.0
  %1221 = vmatpush1.xpose.msra.mxu0 0.0
  %1222 = vmatprep.subr.mxu0 0.0
  %1223 = vmatpush1.xpose.msra.mxu0 0.0
  %1224 = vmatprep.subr.mxu0 0.0
  %1225 = vmatpush1.xpose.msra.mxu0 0.0
  %1226 = vmatprep.subr.mxu0 0.0
  %1227 = vmatpush1.xpose.msra.mxu0 0.0
  %1228 = vmatprep.subr.mxu0 0.0
  %1229 = vmatpush1.xpose.msra.mxu0 0.0
  %1230 = vmatprep.subr.mxu0 0.0
  %1231 = vmatpush1.xpose.msra.mxu0 0.0
  %1232 = vmatprep.subr.mxu0 0.0
  %1233 = vmatpush1.xpose.msra.mxu0 0.0
  %1234 = vmatprep.subr.mxu0 0.0
  %1235 = vmatpush1.xpose.msra.mxu0 0.0
  %1236 = vmatprep.subr.mxu0 0.0
  %1237 = vmatpush1.xpose.msra.mxu0 0.0
  %1238 = vmatprep.subr.mxu0 0.0
  %1239 = vmatpush1.xpose.msra.mxu0 0.0
  %1240 = vmatprep.subr.mxu0 0.0
  %1241 = vmatpush1.xpose.msra.mxu0 0.0
  %1242 = vmatprep.subr.mxu0 0.0
  %1243 = vmatpush1.xpose.msra.mxu0 0.0
  %1244 = vmatprep.subr.mxu0 0.0
  %1245 = vmatpush1.xpose.msra.mxu0 0.0
  %1246 = vmatprep.subr.mxu0 0.0
  %1247 = vmatpush1.xpose.msra.mxu0 0.0
  %1248 = vmatprep.subr.mxu0 0.0
  %1249 = vmatpush1.xpose.msra.mxu0 0.0
  %1250 = vmatprep.subr.mxu0 0.0
  %1251 = vmatpush1.xpose.msra.mxu0 0.0
  %1252 = vmatprep.subr.mxu0 0.0
  %1253 = vmatpush1.xpose.msra.mxu0 0.0
  %1254 = vmatprep.subr.mxu0 0.0
  %1255 = vmatpush1.xpose.msra.mxu0 0.0
  %1256 = vmatprep.subr.mxu0 0.0
  %1257 = vmatpush1.xpose.msra.mxu0 0.0
  %1258 = vmatprep.subr.mxu0 0.0
  %1259 = vmatpush1.xpose.msra.mxu0 0.0
  %1260 = vmatprep.subr.mxu0 0.0
  %1261 = vmatpush1.xpose.msra.mxu0 0.0
  %1262 = vmatprep.subr.mxu0 0.0
  %1263 = vmatpush1.xpose.msra.mxu0 0.0
  %1264 = vmatprep.subr.mxu0 0.0
  %1265 = vmatpush1.xpose.msra.mxu0 0.0
  %1266 = vmatprep.subr.mxu0 0.0
  %1267 = vmatpush1.xpose.msra.mxu0 0.0
  %1268 = vmatprep.mubr.f32.mxu0 0.0
  %1269 = vmatmul.mubr.f32.gmra.mrb[0].mxu0 %v1196
  %v1270 = vpop.f32.mrb[0].mxu0
  %v1271 = vadd.f32 0.0, %v1270
  %v1272 = vpop.f32.mrb[0].mxu0
  %1273 = vmatprep.mubr.f32.mxu0 0.0
  %1274 = vmatmul.mubr.f32.gmra.mrb[0].mxu0 %v1198
  %v1275 = vpop.f32.mrb[0].mxu0
  %v1276 = vadd.f32 0.0, %v1275
  %v1277 = vpop.f32.mrb[0].mxu0
  %1278 = vdwg.mxu0
  %v1279 = vmul.f32 %v1271, 0.35355338
  %v1280 = vmul.f32 %v1276, 0.35355338
  %v1281 = vadd.f32 %v1279, %v1074
  %v1282 = vadd.f32 %v1280, %v1074
  %v1283 = vsel %vm219, %v1281, -inf
  %1284 = vmax.xlane.f32.xlu0 %v1283
  %v1285 = vpop.xlane.xlu0 %1284
  %v1286 = vsel %vm219, %v1282, -inf
  %1287 = vmax.xlane.f32.xlu0 %v1286
  %v1288 = vpop.xlane.xlu0 %1287
  %v1289 = vsub.f32 %v1281, %v1285
  %v1290 = vsub.f32 %v1282, %v1288
  %v1291 = vmul.f32 %v1289, 1.442695
  %v1292 = vpow.pop %v1291
  %v1293 = vmul.f32 %v1290, 1.442695
  %v1294 = vpow.pop %v1293
  %v1295 = vsel %vm219, %v1292, 0.0
  %1296 = vadd.xlane.f32.xlu0 %v1295
  %v1297 = vpop.xlane.xlu0 %1296
  %v1298 = vsel %vm219, %v1294, 0.0
  %1299 = vadd.xlane.f32.xlu0 %v1298
  %v1300 = vpop.xlane.xlu0 %1299
  %v1301 = vadd.f32 %v1297, 1e-20
  %v1302 = vadd.f32 %v1300, 1e-20
  %v1303 = vrcp.pop %v1301
  %v1304 = vrcp.pop %v1302
  %v1305 = vmul.f32 %v1292, %v1303
  %v1306 = vmul.f32 %v1294, %v1304
  %1307 = vrot.lane.b32.xlu0 %v115, 56
  %v1308 = vpop.permute.xlu0 %1307
  %1309 = vrot.lane.b32.xlu0 %v118, 56
  %v1310 = vpop.permute.xlu0 %1309
  %v1314 = vsel %vm219, %v1305, 0
  %v1317 = vsel %vm219, %v1306, 0
  %1319 = vmatprep.subr.mxu0 0.0
  %1320 = vmatpush1.msra.mxu0 %v1308
  %1321 = vmatprep.subr.mxu0 0.0
  %1322 = vmatpush1.msra.mxu0 %v1310
  %1323 = vmatprep.subr.mxu0 0.0
  %1324 = vmatpush1.msra.mxu0 0.0
  %1325 = vmatprep.subr.mxu0 0.0
  %1326 = vmatpush1.msra.mxu0 0.0
  %1327 = vmatprep.subr.mxu0 0.0
  %1328 = vmatpush1.msra.mxu0 0.0
  %1329 = vmatprep.subr.mxu0 0.0
  %1330 = vmatpush1.msra.mxu0 0.0
  %1331 = vmatprep.subr.mxu0 0.0
  %1332 = vmatpush1.msra.mxu0 0.0
  %1333 = vmatprep.subr.mxu0 0.0
  %1334 = vmatpush1.msra.mxu0 0.0
  %1335 = vmatprep.subr.mxu0 0.0
  %1336 = vmatpush1.msra.mxu0 0.0
  %1337 = vmatprep.subr.mxu0 0.0
  %1338 = vmatpush1.msra.mxu0 0.0
  %1339 = vmatprep.subr.mxu0 0.0
  %1340 = vmatpush1.msra.mxu0 0.0
  %1341 = vmatprep.subr.mxu0 0.0
  %1342 = vmatpush1.msra.mxu0 0.0
  %1343 = vmatprep.subr.mxu0 0.0
  %1344 = vmatpush1.msra.mxu0 0.0
  %1345 = vmatprep.subr.mxu0 0.0
  %1346 = vmatpush1.msra.mxu0 0.0
  %1347 = vmatprep.subr.mxu0 0.0
  %1348 = vmatpush1.msra.mxu0 0.0
  %1349 = vmatprep.subr.mxu0 0.0
  %1350 = vmatpush1.msra.mxu0 0.0
  %1351 = vmatprep.subr.mxu0 0.0
  %1352 = vmatpush1.msra.mxu0 0.0
  %1353 = vmatprep.subr.mxu0 0.0
  %1354 = vmatpush1.msra.mxu0 0.0
  %1355 = vmatprep.subr.mxu0 0.0
  %1356 = vmatpush1.msra.mxu0 0.0
  %1357 = vmatprep.subr.mxu0 0.0
  %1358 = vmatpush1.msra.mxu0 0.0
  %1359 = vmatprep.subr.mxu0 0.0
  %1360 = vmatpush1.msra.mxu0 0.0
  %1361 = vmatprep.subr.mxu0 0.0
  %1362 = vmatpush1.msra.mxu0 0.0
  %1363 = vmatprep.subr.mxu0 0.0
  %1364 = vmatpush1.msra.mxu0 0.0
  %1365 = vmatprep.subr.mxu0 0.0
  %1366 = vmatpush1.msra.mxu0 0.0
  %1367 = vmatprep.subr.mxu0 0.0
  %1368 = vmatpush1.msra.mxu0 0.0
  %1369 = vmatprep.subr.mxu0 0.0
  %1370 = vmatpush1.msra.mxu0 0.0
  %1371 = vmatprep.subr.mxu0 0.0
  %1372 = vmatpush1.msra.mxu0 0.0
  %1373 = vmatprep.subr.mxu0 0.0
  %1374 = vmatpush1.msra.mxu0 0.0
  %1375 = vmatprep.subr.mxu0 0.0
  %1376 = vmatpush1.msra.mxu0 0.0
  %1377 = vmatprep.subr.mxu0 0.0
  %1378 = vmatpush1.msra.mxu0 0.0
  %1379 = vmatprep.subr.mxu0 0.0
  %1380 = vmatpush1.msra.mxu0 0.0
  %1381 = vmatprep.subr.mxu0 0.0
  %1382 = vmatpush1.msra.mxu0 0.0
  %1383 = vmatprep.mubr.f32.mxu0 0.0
  %1384 = vmatmul.mubr.f32.gmra.mrb[0].mxu0 %v1314
  %v1385 = vpop.f32.mrb[0].mxu0
  %v1386 = vadd.f32 0.0, %v1385
  %v1387 = vpop.f32.mrb[0].mxu0
  %1388 = vmatprep.mubr.f32.mxu0 0.0
  %1389 = vmatmul.mubr.f32.gmra.mrb[0].mxu0 %v1317
  %v1390 = vpop.f32.mrb[0].mxu0
  %v1391 = vadd.f32 0.0, %v1390
  %v1392 = vpop.f32.mrb[0].mxu0
  %1393 = vdwg.mxu0
  %1394 = vrot.lane.b32.xlu0 %v115, 112
  %v1395 = vpop.permute.xlu0 %1394
  %1396 = vrot.lane.b32.xlu0 %v118, 112
  %v1397 = vpop.permute.xlu0 %1396
  %1398 = vrot.lane.b32.xlu0 %v115, 80
  %v1399 = vpop.permute.xlu0 %1398
  %1400 = vrot.lane.b32.xlu0 %v118, 80
  %v1401 = vpop.permute.xlu0 %1400
  %v1402 = vsel %vm127, %v1395, 0
  %v1404 = vsel %vm127, %v1397, 0
  %v1406 = vsel %vm127, %v1399, 0
  %v1408 = vsel %vm127, %v1401, 0
  %1410 = vmatprep.subr.mxu0 0.0
  %1411 = vmatpush1.xpose.msra.mxu0 %v1406
  %1412 = vmatprep.subr.mxu0 0.0
  %1413 = vmatpush1.xpose.msra.mxu0 %v1408
  %1414 = vmatprep.subr.mxu0 0.0
  %1415 = vmatpush1.xpose.msra.mxu0 0.0
  %1416 = vmatprep.subr.mxu0 0.0
  %1417 = vmatpush1.xpose.msra.mxu0 0.0
  %1418 = vmatprep.subr.mxu0 0.0
  %1419 = vmatpush1.xpose.msra.mxu0 0.0
  %1420 = vmatprep.subr.mxu0 0.0
  %1421 = vmatpush1.xpose.msra.mxu0 0.0
  %1422 = vmatprep.subr.mxu0 0.0
  %1423 = vmatpush1.xpose.msra.mxu0 0.0
  %1424 = vmatprep.subr.mxu0 0.0
  %1425 = vmatpush1.xpose.msra.mxu0 0.0
  %1426 = vmatprep.subr.mxu0 0.0
  %1427 = vmatpush1.xpose.msra.mxu0 0.0
  %1428 = vmatprep.subr.mxu0 0.0
  %1429 = vmatpush1.xpose.msra.mxu0 0.0
  %1430 = vmatprep.subr.mxu0 0.0
  %1431 = vmatpush1.xpose.msra.mxu0 0.0
  %1432 = vmatprep.subr.mxu0 0.0
  %1433 = vmatpush1.xpose.msra.mxu0 0.0
  %1434 = vmatprep.subr.mxu0 0.0
  %1435 = vmatpush1.xpose.msra.mxu0 0.0
  %1436 = vmatprep.subr.mxu0 0.0
  %1437 = vmatpush1.xpose.msra.mxu0 0.0
  %1438 = vmatprep.subr.mxu0 0.0
  %1439 = vmatpush1.xpose.msra.mxu0 0.0
  %1440 = vmatprep.subr.mxu0 0.0
  %1441 = vmatpush1.xpose.msra.mxu0 0.0
  %1442 = vmatprep.subr.mxu0 0.0
  %1443 = vmatpush1.xpose.msra.mxu0 0.0
  %1444 = vmatprep.subr.mxu0 0.0
  %1445 = vmatpush1.xpose.msra.mxu0 0.0
  %1446 = vmatprep.subr.mxu0 0.0
  %1447 = vmatpush1.xpose.msra.mxu0 0.0
  %1448 = vmatprep.subr.mxu0 0.0
  %1449 = vmatpush1.xpose.msra.mxu0 0.0
  %1450 = vmatprep.subr.mxu0 0.0
  %1451 = vmatpush1.xpose.msra.mxu0 0.0
  %1452 = vmatprep.subr.mxu0 0.0
  %1453 = vmatpush1.xpose.msra.mxu0 0.0
  %1454 = vmatprep.subr.mxu0 0.0
  %1455 = vmatpush1.xpose.msra.mxu0 0.0
  %1456 = vmatprep.subr.mxu0 0.0
  %1457 = vmatpush1.xpose.msra.mxu0 0.0
  %1458 = vmatprep.subr.mxu0 0.0
  %1459 = vmatpush1.xpose.msra.mxu0 0.0
  %1460 = vmatprep.subr.mxu0 0.0
  %1461 = vmatpush1.xpose.msra.mxu0 0.0
  %1462 = vmatprep.subr.mxu0 0.0
  %1463 = vmatpush1.xpose.msra.mxu0 0.0
  %1464 = vmatprep.subr.mxu0 0.0
  %1465 = vmatpush1.xpose.msra.mxu0 0.0
  %1466 = vmatprep.subr.mxu0 0.0
  %1467 = vmatpush1.xpose.msra.mxu0 0.0
  %1468 = vmatprep.subr.mxu0 0.0
  %1469 = vmatpush1.xpose.msra.mxu0 0.0
  %1470 = vmatprep.subr.mxu0 0.0
  %1471 = vmatpush1.xpose.msra.mxu0 0.0
  %1472 = vmatprep.subr.mxu0 0.0
  %1473 = vmatpush1.xpose.msra.mxu0 0.0
  %1474 = vmatprep.mubr.f32.mxu0 0.0
  %1475 = vmatmul.mubr.f32.gmra.mrb[0].mxu0 %v1402
  %v1476 = vpop.f32.mrb[0].mxu0
  %v1477 = vadd.f32 0.0, %v1476
  %v1478 = vpop.f32.mrb[0].mxu0
  %1479 = vmatprep.mubr.f32.mxu0 0.0
  %1480 = vmatmul.mubr.f32.gmra.mrb[0].mxu0 %v1404
  %v1481 = vpop.f32.mrb[0].mxu0
  %v1482 = vadd.f32 0.0, %v1481
  %v1483 = vpop.f32.mrb[0].mxu0
  %1484 = vdwg.mxu0
  %v1485 = vmul.f32 %v1477, 0.35355338
  %v1486 = vmul.f32 %v1482, 0.35355338
  %v1487 = vadd.f32 %v1485, %v1074
  %v1488 = vadd.f32 %v1486, %v1074
  %v1489 = vsel %vm219, %v1487, -inf
  %1490 = vmax.xlane.f32.xlu0 %v1489
  %v1491 = vpop.xlane.xlu0 %1490
  %v1492 = vsel %vm219, %v1488, -inf
  %1493 = vmax.xlane.f32.xlu0 %v1492
  %v1494 = vpop.xlane.xlu0 %1493
  %v1495 = vsub.f32 %v1487, %v1491
  %v1496 = vsub.f32 %v1488, %v1494
  %v1497 = vmul.f32 %v1495, 1.442695
  %v1498 = vpow.pop %v1497
  %v1499 = vmul.f32 %v1496, 1.442695
  %v1500 = vpow.pop %v1499
  %v1501 = vsel %vm219, %v1498, 0.0
  %1502 = vadd.xlane.f32.xlu0 %v1501
  %v1503 = vpop.xlane.xlu0 %1502
  %v1504 = vsel %vm219, %v1500, 0.0
  %1505 = vadd.xlane.f32.xlu0 %v1504
  %v1506 = vpop.xlane.xlu0 %1505
  %v1507 = vadd.f32 %v1503, 1e-20
  %v1508 = vadd.f32 %v1506, 1e-20
  %v1509 = vrcp.pop %v1507
  %v1510 = vrcp.pop %v1508
  %v1511 = vmul.f32 %v1498, %v1509
  %v1512 = vmul.f32 %v1500, %v1510
  %1513 = vrot.lane.b32.xlu0 %v115, 48
  %v1514 = vpop.permute.xlu0 %1513
  %1515 = vrot.lane.b32.xlu0 %v118, 48
  %v1516 = vpop.permute.xlu0 %1515
  %v1520 = vsel %vm219, %v1511, 0
  %v1523 = vsel %vm219, %v1512, 0
  %1525 = vmatprep.subr.mxu0 0.0
  %1526 = vmatpush1.msra.mxu0 %v1514
  %1527 = vmatprep.subr.mxu0 0.0
  %1528 = vmatpush1.msra.mxu0 %v1516
  %1529 = vmatprep.subr.mxu0 0.0
  %1530 = vmatpush1.msra.mxu0 0.0
  %1531 = vmatprep.subr.mxu0 0.0
  %1532 = vmatpush1.msra.mxu0 0.0
  %1533 = vmatprep.subr.mxu0 0.0
  %1534 = vmatpush1.msra.mxu0 0.0
  %1535 = vmatprep.subr.mxu0 0.0
  %1536 = vmatpush1.msra.mxu0 0.0
  %1537 = vmatprep.subr.mxu0 0.0
  %1538 = vmatpush1.msra.mxu0 0.0
  %1539 = vmatprep.subr.mxu0 0.0
  %1540 = vmatpush1.msra.mxu0 0.0
  %1541 = vmatprep.subr.mxu0 0.0
  %1542 = vmatpush1.msra.mxu0 0.0
  %1543 = vmatprep.subr.mxu0 0.0
  %1544 = vmatpush1.msra.mxu0 0.0
  %1545 = vmatprep.subr.mxu0 0.0
  %1546 = vmatpush1.msra.mxu0 0.0
  %1547 = vmatprep.subr.mxu0 0.0
  %1548 = vmatpush1.msra.mxu0 0.0
  %1549 = vmatprep.subr.mxu0 0.0
  %1550 = vmatpush1.msra.mxu0 0.0
  %1551 = vmatprep.subr.mxu0 0.0
  %1552 = vmatpush1.msra.mxu0 0.0
  %1553 = vmatprep.subr.mxu0 0.0
  %1554 = vmatpush1.msra.mxu0 0.0
  %1555 = vmatprep.subr.mxu0 0.0
  %1556 = vmatpush1.msra.mxu0 0.0
  %1557 = vmatprep.subr.mxu0 0.0
  %1558 = vmatpush1.msra.mxu0 0.0
  %1559 = vmatprep.subr.mxu0 0.0
  %1560 = vmatpush1.msra.mxu0 0.0
  %1561 = vmatprep.subr.mxu0 0.0
  %1562 = vmatpush1.msra.mxu0 0.0
  %1563 = vmatprep.subr.mxu0 0.0
  %1564 = vmatpush1.msra.mxu0 0.0
  %1565 = vmatprep.subr.mxu0 0.0
  %1566 = vmatpush1.msra.mxu0 0.0
  %1567 = vmatprep.subr.mxu0 0.0
  %1568 = vmatpush1.msra.mxu0 0.0
  %1569 = vmatprep.subr.mxu0 0.0
  %1570 = vmatpush1.msra.mxu0 0.0
  %1571 = vmatprep.subr.mxu0 0.0
  %1572 = vmatpush1.msra.mxu0 0.0
  %1573 = vmatprep.subr.mxu0 0.0
  %1574 = vmatpush1.msra.mxu0 0.0
  %1575 = vmatprep.subr.mxu0 0.0
  %1576 = vmatpush1.msra.mxu0 0.0
  %1577 = vmatprep.subr.mxu0 0.0
  %1578 = vmatpush1.msra.mxu0 0.0
  %1579 = vmatprep.subr.mxu0 0.0
  %1580 = vmatpush1.msra.mxu0 0.0
  %1581 = vmatprep.subr.mxu0 0.0
  %1582 = vmatpush1.msra.mxu0 0.0
  %1583 = vmatprep.subr.mxu0 0.0
  %1584 = vmatpush1.msra.mxu0 0.0
  %1585 = vmatprep.subr.mxu0 0.0
  %1586 = vmatpush1.msra.mxu0 0.0
  %1587 = vmatprep.subr.mxu0 0.0
  %1588 = vmatpush1.msra.mxu0 0.0
  %1589 = vmatprep.mubr.f32.mxu0 0.0
  %1590 = vmatmul.mubr.f32.gmra.mrb[0].mxu0 %v1520
  %v1591 = vpop.f32.mrb[0].mxu0
  %v1592 = vadd.f32 0.0, %v1591
  %v1593 = vpop.f32.mrb[0].mxu0
  %1594 = vmatprep.mubr.f32.mxu0 0.0
  %1595 = vmatmul.mubr.f32.gmra.mrb[0].mxu0 %v1523
  %v1596 = vpop.f32.mrb[0].mxu0
  %v1597 = vadd.f32 0.0, %v1596
  %v1598 = vpop.f32.mrb[0].mxu0
  %1599 = vdwg.mxu0
  %1600 = vrot.lane.b32.xlu0 %v115, 104
  %v1601 = vpop.permute.xlu0 %1600
  %1602 = vrot.lane.b32.xlu0 %v118, 104
  %v1603 = vpop.permute.xlu0 %1602
  %1604 = vrot.lane.b32.xlu0 %v115, 72
  %v1605 = vpop.permute.xlu0 %1604
  %1606 = vrot.lane.b32.xlu0 %v118, 72
  %v1607 = vpop.permute.xlu0 %1606
  %v1608 = vsel %vm127, %v1601, 0
  %v1610 = vsel %vm127, %v1603, 0
  %v1612 = vsel %vm127, %v1605, 0
  %v1614 = vsel %vm127, %v1607, 0
  %1616 = vmatprep.subr.mxu0 0.0
  %1617 = vmatpush1.xpose.msra.mxu0 %v1612
  %1618 = vmatprep.subr.mxu0 0.0
  %1619 = vmatpush1.xpose.msra.mxu0 %v1614
  %1620 = vmatprep.subr.mxu0 0.0
  %1621 = vmatpush1.xpose.msra.mxu0 0.0
  %1622 = vmatprep.subr.mxu0 0.0
  %1623 = vmatpush1.xpose.msra.mxu0 0.0
  %1624 = vmatprep.subr.mxu0 0.0
  %1625 = vmatpush1.xpose.msra.mxu0 0.0
  %1626 = vmatprep.subr.mxu0 0.0
  %1627 = vmatpush1.xpose.msra.mxu0 0.0
  %1628 = vmatprep.subr.mxu0 0.0
  %1629 = vmatpush1.xpose.msra.mxu0 0.0
  %1630 = vmatprep.subr.mxu0 0.0
  %1631 = vmatpush1.xpose.msra.mxu0 0.0
  %1632 = vmatprep.subr.mxu0 0.0
  %1633 = vmatpush1.xpose.msra.mxu0 0.0
  %1634 = vmatprep.subr.mxu0 0.0
  %1635 = vmatpush1.xpose.msra.mxu0 0.0
  %1636 = vmatprep.subr.mxu0 0.0
  %1637 = vmatpush1.xpose.msra.mxu0 0.0
  %1638 = vmatprep.subr.mxu0 0.0
  %1639 = vmatpush1.xpose.msra.mxu0 0.0
  %1640 = vmatprep.subr.mxu0 0.0
  %1641 = vmatpush1.xpose.msra.mxu0 0.0
  %1642 = vmatprep.subr.mxu0 0.0
  %1643 = vmatpush1.xpose.msra.mxu0 0.0
  %1644 = vmatprep.subr.mxu0 0.0
  %1645 = vmatpush1.xpose.msra.mxu0 0.0
  %1646 = vmatprep.subr.mxu0 0.0
  %1647 = vmatpush1.xpose.msra.mxu0 0.0
  %1648 = vmatprep.subr.mxu0 0.0
  %1649 = vmatpush1.xpose.msra.mxu0 0.0
  %1650 = vmatprep.subr.mxu0 0.0
  %1651 = vmatpush1.xpose.msra.mxu0 0.0
  %1652 = vmatprep.subr.mxu0 0.0
  %1653 = vmatpush1.xpose.msra.mxu0 0.0
  %1654 = vmatprep.subr.mxu0 0.0
  %1655 = vmatpush1.xpose.msra.mxu0 0.0
  %1656 = vmatprep.subr.mxu0 0.0
  %1657 = vmatpush1.xpose.msra.mxu0 0.0
  %1658 = vmatprep.subr.mxu0 0.0
  %1659 = vmatpush1.xpose.msra.mxu0 0.0
  %1660 = vmatprep.subr.mxu0 0.0
  %1661 = vmatpush1.xpose.msra.mxu0 0.0
  %1662 = vmatprep.subr.mxu0 0.0
  %1663 = vmatpush1.xpose.msra.mxu0 0.0
  %1664 = vmatprep.subr.mxu0 0.0
  %1665 = vmatpush1.xpose.msra.mxu0 0.0
  %1666 = vmatprep.subr.mxu0 0.0
  %1667 = vmatpush1.xpose.msra.mxu0 0.0
  %1668 = vmatprep.subr.mxu0 0.0
  %1669 = vmatpush1.xpose.msra.mxu0 0.0
  %1670 = vmatprep.subr.mxu0 0.0
  %1671 = vmatpush1.xpose.msra.mxu0 0.0
  %1672 = vmatprep.subr.mxu0 0.0
  %1673 = vmatpush1.xpose.msra.mxu0 0.0
  %1674 = vmatprep.subr.mxu0 0.0
  %1675 = vmatpush1.xpose.msra.mxu0 0.0
  %1676 = vmatprep.subr.mxu0 0.0
  %1677 = vmatpush1.xpose.msra.mxu0 0.0
  %1678 = vmatprep.subr.mxu0 0.0
  %1679 = vmatpush1.xpose.msra.mxu0 0.0
  %1680 = vmatprep.mubr.f32.mxu0 0.0
  %1681 = vmatmul.mubr.f32.gmra.mrb[0].mxu0 %v1608
  %v1682 = vpop.f32.mrb[0].mxu0
  %v1683 = vadd.f32 0.0, %v1682
  %v1684 = vpop.f32.mrb[0].mxu0
  %1685 = vmatprep.mubr.f32.mxu0 0.0
  %1686 = vmatmul.mubr.f32.gmra.mrb[0].mxu0 %v1610
  %v1687 = vpop.f32.mrb[0].mxu0
  %v1688 = vadd.f32 0.0, %v1687
  %v1689 = vpop.f32.mrb[0].mxu0
  %1690 = vdwg.mxu0
  %v1691 = vmul.f32 %v1683, 0.35355338
  %v1692 = vmul.f32 %v1688, 0.35355338
  %v1693 = vadd.f32 %v1691, %v1074
  %v1694 = vadd.f32 %v1692, %v1074
  %v1695 = vsel %vm219, %v1693, -inf
  %1696 = vmax.xlane.f32.xlu0 %v1695
  %v1697 = vpop.xlane.xlu0 %1696
  %v1698 = vsel %vm219, %v1694, -inf
  %1699 = vmax.xlane.f32.xlu0 %v1698
  %v1700 = vpop.xlane.xlu0 %1699
  %v1701 = vsub.f32 %v1693, %v1697
  %v1702 = vsub.f32 %v1694, %v1700
  %v1703 = vmul.f32 %v1701, 1.442695
  %v1704 = vpow.pop %v1703
  %v1705 = vmul.f32 %v1702, 1.442695
  %v1706 = vpow.pop %v1705
  %v1707 = vsel %vm219, %v1704, 0.0
  %1708 = vadd.xlane.f32.xlu0 %v1707
  %v1709 = vpop.xlane.xlu0 %1708
  %v1710 = vsel %vm219, %v1706, 0.0
  %1711 = vadd.xlane.f32.xlu0 %v1710
  %v1712 = vpop.xlane.xlu0 %1711
  %v1713 = vadd.f32 %v1709, 1e-20
  %v1714 = vadd.f32 %v1712, 1e-20
  %v1715 = vrcp.pop %v1713
  %v1716 = vrcp.pop %v1714
  %v1717 = vmul.f32 %v1704, %v1715
  %v1718 = vmul.f32 %v1706, %v1716
  %1719 = vrot.lane.b32.xlu0 %v115, 40
  %v1720 = vpop.permute.xlu0 %1719
  %1721 = vrot.lane.b32.xlu0 %v118, 40
  %v1722 = vpop.permute.xlu0 %1721
  %v1726 = vsel %vm219, %v1717, 0
  %v1729 = vsel %vm219, %v1718, 0
  %1731 = vmatprep.subr.mxu0 0.0
  %1732 = vmatpush1.msra.mxu0 %v1720
  %1733 = vmatprep.subr.mxu0 0.0
  %1734 = vmatpush1.msra.mxu0 %v1722
  %1735 = vmatprep.subr.mxu0 0.0
  %1736 = vmatpush1.msra.mxu0 0.0
  %1737 = vmatprep.subr.mxu0 0.0
  %1738 = vmatpush1.msra.mxu0 0.0
  %1739 = vmatprep.subr.mxu0 0.0
  %1740 = vmatpush1.msra.mxu0 0.0
  %1741 = vmatprep.subr.mxu0 0.0
  %1742 = vmatpush1.msra.mxu0 0.0
  %1743 = vmatprep.subr.mxu0 0.0
  %1744 = vmatpush1.msra.mxu0 0.0
  %1745 = vmatprep.subr.mxu0 0.0
  %1746 = vmatpush1.msra.mxu0 0.0
  %1747 = vmatprep.subr.mxu0 0.0
  %1748 = vmatpush1.msra.mxu0 0.0
  %1749 = vmatprep.subr.mxu0 0.0
  %1750 = vmatpush1.msra.mxu0 0.0
  %1751 = vmatprep.subr.mxu0 0.0
  %1752 = vmatpush1.msra.mxu0 0.0
  %1753 = vmatprep.subr.mxu0 0.0
  %1754 = vmatpush1.msra.mxu0 0.0
  %1755 = vmatprep.subr.mxu0 0.0
  %1756 = vmatpush1.msra.mxu0 0.0
  %1757 = vmatprep.subr.mxu0 0.0
  %1758 = vmatpush1.msra.mxu0 0.0
  %1759 = vmatprep.subr.mxu0 0.0
  %1760 = vmatpush1.msra.mxu0 0.0
  %1761 = vmatprep.subr.mxu0 0.0
  %1762 = vmatpush1.msra.mxu0 0.0
  %1763 = vmatprep.subr.mxu0 0.0
  %1764 = vmatpush1.msra.mxu0 0.0
  %1765 = vmatprep.subr.mxu0 0.0
  %1766 = vmatpush1.msra.mxu0 0.0
  %1767 = vmatprep.subr.mxu0 0.0
  %1768 = vmatpush1.msra.mxu0 0.0
  %1769 = vmatprep.subr.mxu0 0.0
  %1770 = vmatpush1.msra.mxu0 0.0
  %1771 = vmatprep.subr.mxu0 0.0
  %1772 = vmatpush1.msra.mxu0 0.0
  %1773 = vmatprep.subr.mxu0 0.0
  %1774 = vmatpush1.msra.mxu0 0.0
  %1775 = vmatprep.subr.mxu0 0.0
  %1776 = vmatpush1.msra.mxu0 0.0
  %1777 = vmatprep.subr.mxu0 0.0
  %1778 = vmatpush1.msra.mxu0 0.0
  %1779 = vmatprep.subr.mxu0 0.0
  %1780 = vmatpush1.msra.mxu0 0.0
  %1781 = vmatprep.subr.mxu0 0.0
  %1782 = vmatpush1.msra.mxu0 0.0
  %1783 = vmatprep.subr.mxu0 0.0
  %1784 = vmatpush1.msra.mxu0 0.0
  %1785 = vmatprep.subr.mxu0 0.0
  %1786 = vmatpush1.msra.mxu0 0.0
  %1787 = vmatprep.subr.mxu0 0.0
  %1788 = vmatpush1.msra.mxu0 0.0
  %1789 = vmatprep.subr.mxu0 0.0
  %1790 = vmatpush1.msra.mxu0 0.0
  %1791 = vmatprep.subr.mxu0 0.0
  %1792 = vmatpush1.msra.mxu0 0.0
  %1793 = vmatprep.subr.mxu0 0.0
  %1794 = vmatpush1.msra.mxu0 0.0
  %1795 = vmatprep.mubr.f32.mxu0 0.0
  %1796 = vmatmul.mubr.f32.gmra.mrb[0].mxu0 %v1726
  %v1797 = vpop.f32.mrb[0].mxu0
  %v1798 = vadd.f32 0.0, %v1797
  %v1799 = vpop.f32.mrb[0].mxu0
  %1800 = vmatprep.mubr.f32.mxu0 0.0
  %1801 = vmatmul.mubr.f32.gmra.mrb[0].mxu0 %v1729
  %v1802 = vpop.f32.mrb[0].mxu0
  %v1803 = vadd.f32 0.0, %v1802
  %v1804 = vpop.f32.mrb[0].mxu0
  %1805 = vdwg.mxu0
  %1808 = vrot.lane.b32.xlu0 %v1386, 8
  %v1809 = vpop.permute.xlu0 %1808
  %1810 = vrot.lane.b32.xlu0 %v1391, 8
  %v1811 = vpop.permute.xlu0 %1810
  %1816 = vrot.lane.b32.xlu0 %v1592, 16
  %v1817 = vpop.permute.xlu0 %1816
  %1818 = vrot.lane.b32.xlu0 %v1597, 16
  %v1819 = vpop.permute.xlu0 %1818
  %1824 = vrot.lane.b32.xlu0 %v1798, 24
  %v1825 = vpop.permute.xlu0 %1824
  %1826 = vrot.lane.b32.xlu0 %v1803, 24
  %v1827 = vpop.permute.xlu0 %1826
  %v1830 = vsel %vm127, %v1180, %v1809
  %v1831 = vsel %vm127, %v1185, %v1811
  %v1832 = vsel %vm219, %v1830, %v1817
  %v1833 = vsel %vm219, %v1831, %v1819
  %v1834 = vsel %vm977, %v1832, %v1825
  %v1835 = vsel %vm977, %v1833, %v1827
  %v1836 = vpack.c.bf16 %v979, %v978
  %v1837 = vpack.c.bf16 %v1835, %v1834
  %1838 = vrot.lane.b32.xlu0 %v61, 32
  %v1839 = vpop.permute.xlu0 %1838
  %1840 = vrot.lane.b32.xlu0 %v62, 32
  %v1841 = vpop.permute.xlu0 %1840
  %1844 = vrot.lane.b32.xlu0 %v51, 32
  %v1845 = vpop.permute.xlu0 %1844
  %v1848 = vsel %vm65, %v1836, 0
  %v1851 = vsel %vm65, %v1837, 0
  %1853 = vmatprep.subr.bf16.mxu0 0
  %1854 = vmatpush1.bf16.msra.mxu0 %v1839
  %1855 = vmatprep.subr.bf16.mxu0 0
  %1856 = vmatpush1.bf16.msra.mxu0 %v1841
  %1857 = vmatprep.subr.bf16.mxu0 0
  %1858 = vmatpush1.bf16.msra.mxu0 0
  %1859 = vmatprep.subr.bf16.mxu0 0
  %1860 = vmatpush1.bf16.msra.mxu0 0
  %1861 = vmatprep.subr.bf16.mxu0 0
  %1862 = vmatpush1.bf16.msra.mxu0 0
  %1863 = vmatprep.subr.bf16.mxu0 0
  %1864 = vmatpush1.bf16.msra.mxu0 0
  %1865 = vmatprep.subr.bf16.mxu0 0
  %1866 = vmatpush1.bf16.msra.mxu0 0
  %1867 = vmatprep.subr.bf16.mxu0 0
  %1868 = vmatpush1.bf16.msra.mxu0 0
  %1869 = vmatprep.subr.bf16.mxu0 0
  %1870 = vmatpush1.bf16.msra.mxu0 0
  %1871 = vmatprep.subr.bf16.mxu0 0
  %1872 = vmatpush1.bf16.msra.mxu0 0
  %1873 = vmatprep.subr.bf16.mxu0 0
  %1874 = vmatpush1.bf16.msra.mxu0 0
  %1875 = vmatprep.subr.bf16.mxu0 0
  %1876 = vmatpush1.bf16.msra.mxu0 0
  %1877 = vmatprep.subr.bf16.mxu0 0
  %1878 = vmatpush1.bf16.msra.mxu0 0
  %1879 = vmatprep.subr.bf16.mxu0 0
  %1880 = vmatpush1.bf16.msra.mxu0 0
  %1881 = vmatprep.subr.bf16.mxu0 0
  %1882 = vmatpush1.bf16.msra.mxu0 0
  %1883 = vmatprep.subr.bf16.mxu0 0
  %1884 = vmatpush1.bf16.msra.mxu0 0
  %1885 = vmatprep.mubr.bf16.mxu0 0
  %1886 = vmatmul.mubr.bf16.gmra.mrb[0].mxu0 %v1848
  %v1887 = vpop.f32.mrb[0].mxu0
  %v1888 = vadd.f32 %v1845, %v1887
  %v1889 = vpop.f32.mrb[0].mxu0
  %v1890 = vpop.f32.mrb[0].mxu0
  %v1891 = vadd.f32 %v1845, %v1890
  %v1892 = vpop.f32.mrb[0].mxu0
  %1893 = vmatprep.mubr.bf16.mxu0 0
  %1894 = vmatmul.mubr.bf16.gmra.mrb[0].mxu0 %v1851
  %v1895 = vpop.f32.mrb[0].mxu0
  %v1896 = vadd.f32 %v1845, %v1895
  %v1897 = vpop.f32.mrb[0].mxu0
  %v1898 = vpop.f32.mrb[0].mxu0
  %v1899 = vadd.f32 %v1845, %v1898
  %v1900 = vpop.f32.mrb[0].mxu0
  %1901 = vdwg.mxu0
  %v1902 = vadd.f32 %v33, %v1888
  %v1903 = vadd.f32 %v34, %v1891
  %v1904 = vadd.f32 %v35, %v1896
  %v1905 = vadd.f32 %v36, %v1899
  %v1906 = vsel %vm65, %v1902, 0.0
  %1907 = vadd.xlane.f32.xlu0 %v1906
  %v1908 = vpop.xlane.xlu0 %1907
  %v1909 = vsel %vm65, %v1903, 0.0
  %1910 = vadd.xlane.f32.xlu0 %v1909
  %v1911 = vpop.xlane.xlu0 %1910
  %v1912 = vsel %vm65, %v1904, 0.0
  %1913 = vadd.xlane.f32.xlu0 %v1912
  %v1914 = vpop.xlane.xlu0 %1913
  %v1915 = vsel %vm65, %v1905, 0.0
  %1916 = vadd.xlane.f32.xlu0 %v1915
  %v1917 = vpop.xlane.xlu0 %1916
  %v1918 = vrcp.pop 32.0
  %v1919 = vmul.f32 %v1908, %v1918
  %v1920 = vmul.f32 %v1911, %v1918
  %v1921 = vmul.f32 %v1914, %v1918
  %v1922 = vmul.f32 %v1917, %v1918
  %v1923 = vsub.f32 %v1902, %v1919
  %v1924 = vsub.f32 %v1903, %v1920
  %v1925 = vsub.f32 %v1904, %v1921
  %v1926 = vsub.f32 %v1905, %v1922
  %v1927 = vmul.f32 %v1923, %v1923
  %v1928 = vmul.f32 %v1924, %v1924
  %v1929 = vmul.f32 %v1925, %v1925
  %v1930 = vmul.f32 %v1926, %v1926
  %v1931 = vsel %vm65, %v1927, 0.0
  %1932 = vadd.xlane.f32.xlu0 %v1931
  %v1933 = vpop.xlane.xlu0 %1932
  %v1934 = vsel %vm65, %v1928, 0.0
  %1935 = vadd.xlane.f32.xlu0 %v1934
  %v1936 = vpop.xlane.xlu0 %1935
  %v1937 = vsel %vm65, %v1929, 0.0
  %1938 = vadd.xlane.f32.xlu0 %v1937
  %v1939 = vpop.xlane.xlu0 %1938
  %v1940 = vsel %vm65, %v1930, 0.0
  %1941 = vadd.xlane.f32.xlu0 %v1940
  %v1942 = vpop.xlane.xlu0 %1941
  %v1943 = vmul.f32 %v1933, %v1918
  %v1944 = vmul.f32 %v1936, %v1918
  %v1945 = vmul.f32 %v1939, %v1918
  %v1946 = vmul.f32 %v1942, %v1918
  %v1947 = vadd.f32 %v1943, 1e-05
  %v1948 = vadd.f32 %v1944, 1e-05
  %v1949 = vadd.f32 %v1945, 1e-05
  %v1950 = vadd.f32 %v1946, 1e-05
  %v1951 = vrsqrt.pop %v1947
  %v1952 = vrsqrt.pop %v1948
  %v1953 = vrsqrt.pop %v1949
  %v1954 = vrsqrt.pop %v1950
  %v1955 = vmul.f32 %v1923, %v1951
  %v1956 = vmul.f32 %v1924, %v1952
  %v1957 = vmul.f32 %v1925, %v1953
  %v1958 = vmul.f32 %v1926, %v1954
  %v1959 = vlaneseq
  %v1960 = vshrl.u32 %v1959, 7
  %v1961 = vsub.s32 0, %v1960
  %v1962 = vrot.slane %v38, %v1961
  %v1963 = vmul.f32 %v1955, %v1962
  %v1964 = vmul.f32 %v1956, %v1962
  %v1965 = vmul.f32 %v1957, %v1962
  %v1966 = vmul.f32 %v1958, %v1962
  %v1967 = vlaneseq
  %v1968 = vshrl.u32 %v1967, 7
  %v1969 = vsub.s32 1, %v1968
  %v1970 = vrot.slane %v38, %v1969
  %v1971 = vadd.f32 %v1963, %v1970
  %v1972 = vadd.f32 %v1964, %v1970
  %v1973 = vadd.f32 %v1965, %v1970
  %v1974 = vadd.f32 %v1966, %v1970
  %v1975 = vpack.c.bf16 %v1972, %v1971
  %v1976 = vpack.c.bf16 %v1974, %v1973
  %v1977 = vld [vmem:[%s4] sm:$0xf]
  %v1978 = vld [vmem:[%s4 + $0x4] sm:$0xf]
  %v1979 = vld [vmem:[%s4 + $0x8] sm:$0xf]
  %v1980 = vld [vmem:[%s4 + $0xc] sm:$0xf]
  %v1981 = vld [vmem:[%s5] sm:$0x1]
  %v1983 = vlaneseq
  %v1984 = vshrl.u32 %v1983, 7
  %v1985 = vsub.s32 0, %v1984
  %v1986 = vrot.slane %v1981, %v1985
  %v1992 = vunpack.c.l.b16 %v1977
  %v1993 = vunpack.c.l.b16 %v1978
  %v1994 = vunpack.c.l.b16 %v1979
  %v1995 = vunpack.c.l.b16 %v1980
  %v1996 = vpack.c.b16 %v1993, %v1992
  %v1997 = vpack.c.b16 %v1995, %v1994
  %v2001 = vsel %vm65, %v1975, 0
  %v2004 = vsel %vm65, %v1976, 0
  %2006 = vmatprep.subr.bf16.mxu0 0
  %2007 = vmatpush1.bf16.msra.mxu0 %v1996
  %2008 = vmatprep.subr.bf16.mxu0 0
  %2009 = vmatpush1.bf16.msra.mxu0 %v1997
  %2010 = vmatprep.subr.bf16.mxu0 0
  %2011 = vmatpush1.bf16.msra.mxu0 0
  %2012 = vmatprep.subr.bf16.mxu0 0
  %2013 = vmatpush1.bf16.msra.mxu0 0
  %2014 = vmatprep.subr.bf16.mxu0 0
  %2015 = vmatpush1.bf16.msra.mxu0 0
  %2016 = vmatprep.subr.bf16.mxu0 0
  %2017 = vmatpush1.bf16.msra.mxu0 0
  %2018 = vmatprep.subr.bf16.mxu0 0
  %2019 = vmatpush1.bf16.msra.mxu0 0
  %2020 = vmatprep.subr.bf16.mxu0 0
  %2021 = vmatpush1.bf16.msra.mxu0 0
  %2022 = vmatprep.subr.bf16.mxu0 0
  %2023 = vmatpush1.bf16.msra.mxu0 0
  %2024 = vmatprep.subr.bf16.mxu0 0
  %2025 = vmatpush1.bf16.msra.mxu0 0
  %2026 = vmatprep.subr.bf16.mxu0 0
  %2027 = vmatpush1.bf16.msra.mxu0 0
  %2028 = vmatprep.subr.bf16.mxu0 0
  %2029 = vmatpush1.bf16.msra.mxu0 0
  %2030 = vmatprep.subr.bf16.mxu0 0
  %2031 = vmatpush1.bf16.msra.mxu0 0
  %2032 = vmatprep.subr.bf16.mxu0 0
  %2033 = vmatpush1.bf16.msra.mxu0 0
  %2034 = vmatprep.subr.bf16.mxu0 0
  %2035 = vmatpush1.bf16.msra.mxu0 0
  %2036 = vmatprep.subr.bf16.mxu0 0
  %2037 = vmatpush1.bf16.msra.mxu0 0
  %2038 = vmatprep.mubr.bf16.mxu0 0
  %2039 = vmatmul.mubr.bf16.gmra.mrb[0].mxu0 %v2001
  %v2040 = vpop.f32.mrb[0].mxu0
  %v2041 = vadd.f32 %v1986, %v2040
  %v2042 = vpop.f32.mrb[0].mxu0
  %v2043 = vpop.f32.mrb[0].mxu0
  %v2044 = vadd.f32 %v1986, %v2043
  %v2045 = vpop.f32.mrb[0].mxu0
  %2046 = vmatprep.mubr.bf16.mxu0 0
  %2047 = vmatmul.mubr.bf16.gmra.mrb[0].mxu0 %v2004
  %v2048 = vpop.f32.mrb[0].mxu0
  %v2049 = vadd.f32 %v1986, %v2048
  %v2050 = vpop.f32.mrb[0].mxu0
  %v2051 = vpop.f32.mrb[0].mxu0
  %v2052 = vadd.f32 %v1986, %v2051
  %v2053 = vpop.f32.mrb[0].mxu0
  %2054 = vdwg.mxu0
  %v2055 = vmul.f32 %v2041, %v2041
  %v2056 = vmul.f32 %v2044, %v2044
  %v2057 = vmul.f32 %v2049, %v2049
  %v2058 = vmul.f32 %v2052, %v2052
  %v2059 = vmul.f32 %v2041, %v2055
  %v2060 = vmul.f32 %v2044, %v2056
  %v2061 = vmul.f32 %v2049, %v2057
  %v2062 = vmul.f32 %v2052, %v2058
  %v2063 = vmul.f32 %v2059, 0.044715
  %v2064 = vmul.f32 %v2060, 0.044715
  %v2065 = vmul.f32 %v2061, 0.044715
  %v2066 = vmul.f32 %v2062, 0.044715
  %v2067 = vadd.f32 %v2041, %v2063
  %v2068 = vadd.f32 %v2044, %v2064
  %v2069 = vadd.f32 %v2049, %v2065
  %v2070 = vadd.f32 %v2052, %v2066
  %v2071 = vmul.f32 %v2067, 0.7978846
  %v2072 = vmul.f32 %v2068, 0.7978846
  %v2073 = vmul.f32 %v2069, 0.7978846
  %v2074 = vmul.f32 %v2070, 0.7978846
  %v2075 = vtanh.pop %v2071
  %v2076 = vtanh.pop %v2072
  %v2077 = vtanh.pop %v2073
  %v2078 = vtanh.pop %v2074
  %v2079 = vadd.f32 %v2075, 1.0
  %v2080 = vadd.f32 %v2076, 1.0
  %v2081 = vadd.f32 %v2077, 1.0
  %v2082 = vadd.f32 %v2078, 1.0
  %v2083 = vmul.f32 %v2079, 0.5
  %v2084 = vmul.f32 %v2080, 0.5
  %v2085 = vmul.f32 %v2081, 0.5
  %v2086 = vmul.f32 %v2082, 0.5
  %v2087 = vmul.f32 %v2041, %v2083
  %v2088 = vmul.f32 %v2044, %v2084
  %v2089 = vmul.f32 %v2049, %v2085
  %v2090 = vmul.f32 %v2052, %v2086
  %v2091 = vpack.c.bf16 %v2088, %v2087
  %v2092 = vpack.c.bf16 %v2090, %v2089
  %v2093 = vld [vmem:[%s6] sm:$0xf]
  %v2094 = vld [vmem:[%s6 + $0x4] sm:$0xf]
  %v2095 = vld [vmem:[%s6 + $0x8] sm:$0xf]
  %v2096 = vld [vmem:[%s6 + $0xc] sm:$0xf]
  %v2097 = vld [vmem:[%s6 + $0x10] sm:$0xf]
  %v2098 = vld [vmem:[%s6 + $0x14] sm:$0xf]
  %v2099 = vld [vmem:[%s6 + $0x18] sm:$0xf]
  %v2100 = vld [vmem:[%s6 + $0x1c] sm:$0xf]
  %v2101 = vld [vmem:[%s7] sm:$0x1]
  %v2103 = vlaneseq
  %v2104 = vshrl.u32 %v2103, 7
  %v2105 = vsub.s32 0, %v2104
  %v2106 = vrot.slane %v2101, %v2105
  %v2116 = vunpack.c.l.b16 %v2093
  %v2117 = vunpack.c.l.b16 %v2094
  %v2118 = vunpack.c.l.b16 %v2095
  %v2119 = vunpack.c.l.b16 %v2096
  %v2120 = vunpack.c.l.b16 %v2097
  %v2121 = vunpack.c.l.b16 %v2098
  %v2122 = vunpack.c.l.b16 %v2099
  %v2123 = vunpack.c.l.b16 %v2100
  %v2124 = vpack.c.b16 %v2117, %v2116
  %v2125 = vpack.c.b16 %v2119, %v2118
  %v2126 = vpack.c.b16 %v2121, %v2120
  %v2127 = vpack.c.b16 %v2123, %v2122
  %vm2132 = vcmask 523264
  %v2134 = vsel %vm2132, %v2091, 0
  %v2137 = vsel %vm2132, %v2092, 0
  %2139 = vmatprep.subr.bf16.mxu0 0
  %2140 = vmatpush1.bf16.msra.mxu0 %v2124
  %2141 = vmatprep.subr.bf16.mxu0 0
  %2142 = vmatpush1.bf16.msra.mxu0 %v2125
  %2143 = vmatprep.subr.bf16.mxu0 0
  %2144 = vmatpush1.bf16.msra.mxu0 %v2126
  %2145 = vmatprep.subr.bf16.mxu0 0
  %2146 = vmatpush1.bf16.msra.mxu0 %v2127
  %2147 = vmatprep.subr.bf16.mxu0 0
  %2148 = vmatpush1.bf16.msra.mxu0 0
  %2149 = vmatprep.subr.bf16.mxu0 0
  %2150 = vmatpush1.bf16.msra.mxu0 0
  %2151 = vmatprep.subr.bf16.mxu0 0
  %2152 = vmatpush1.bf16.msra.mxu0 0
  %2153 = vmatprep.subr.bf16.mxu0 0
  %2154 = vmatpush1.bf16.msra.mxu0 0
  %2155 = vmatprep.subr.bf16.mxu0 0
  %2156 = vmatpush1.bf16.msra.mxu0 0
  %2157 = vmatprep.subr.bf16.mxu0 0
  %2158 = vmatpush1.bf16.msra.mxu0 0
  %2159 = vmatprep.subr.bf16.mxu0 0
  %2160 = vmatpush1.bf16.msra.mxu0 0
  %2161 = vmatprep.subr.bf16.mxu0 0
  %2162 = vmatpush1.bf16.msra.mxu0 0
  %2163 = vmatprep.subr.bf16.mxu0 0
  %2164 = vmatpush1.bf16.msra.mxu0 0
  %2165 = vmatprep.subr.bf16.mxu0 0
  %2166 = vmatpush1.bf16.msra.mxu0 0
  %2167 = vmatprep.subr.bf16.mxu0 0
  %2168 = vmatpush1.bf16.msra.mxu0 0
  %2169 = vmatprep.subr.bf16.mxu0 0
  %2170 = vmatpush1.bf16.msra.mxu0 0
  %2171 = vmatprep.mubr.bf16.mxu0 0
  %2172 = vmatmul.mubr.bf16.gmra.mrb[0].mxu0 %v2134
  %v2173 = vpop.f32.mrb[0].mxu0
  %v2174 = vadd.f32 %v2106, %v2173
  %v2175 = vpop.f32.mrb[0].mxu0
  %v2176 = vpop.f32.mrb[0].mxu0
  %v2177 = vadd.f32 %v2106, %v2176
  %v2178 = vpop.f32.mrb[0].mxu0
  %2179 = vmatprep.mubr.bf16.mxu0 0
  %2180 = vmatmul.mubr.bf16.gmra.mrb[0].mxu0 %v2137
  %v2181 = vpop.f32.mrb[0].mxu0
  %v2182 = vadd.f32 %v2106, %v2181
  %v2183 = vpop.f32.mrb[0].mxu0
  %v2184 = vpop.f32.mrb[0].mxu0
  %v2185 = vadd.f32 %v2106, %v2184
  %v2186 = vpop.f32.mrb[0].mxu0
  %2187 = vdwg.mxu0
  %v2188 = vadd.f32 %v1971, %v2174
  %v2189 = vadd.f32 %v1972, %v2177
  %v2190 = vadd.f32 %v1973, %v2182
  %v2191 = vadd.f32 %v1974, %v2185
  %v2192 = vsel %vm65, %v2188, 0.0
  %2193 = vadd.xlane.f32.xlu0 %v2192
  %v2194 = vpop.xlane.xlu0 %2193
  %v2195 = vsel %vm65, %v2189, 0.0
  %2196 = vadd.xlane.f32.xlu0 %v2195
  %v2197 = vpop.xlane.xlu0 %2196
  %v2198 = vsel %vm65, %v2190, 0.0
  %2199 = vadd.xlane.f32.xlu0 %v2198
  %v2200 = vpop.xlane.xlu0 %2199
  %v2201 = vsel %vm65, %v2191, 0.0
  %2202 = vadd.xlane.f32.xlu0 %v2201
  %v2203 = vpop.xlane.xlu0 %2202
  %v2204 = vmul.f32 %v2194, %v1918
  %v2205 = vmul.f32 %v2197, %v1918
  %v2206 = vmul.f32 %v2200, %v1918
  %v2207 = vmul.f32 %v2203, %v1918
  %v2208 = vsub.f32 %v2188, %v2204
  %v2209 = vsub.f32 %v2189, %v2205
  %v2210 = vsub.f32 %v2190, %v2206
  %v2211 = vsub.f32 %v2191, %v2207
  %v2212 = vmul.f32 %v2208, %v2208
  %v2213 = vmul.f32 %v2209, %v2209
  %v2214 = vmul.f32 %v2210, %v2210
  %v2215 = vmul.f32 %v2211, %v2211
  %v2216 = vsel %vm65, %v2212, 0.0
  %2217 = vadd.xlane.f32.xlu0 %v2216
  %v2218 = vpop.xlane.xlu0 %2217
  %v2219 = vsel %vm65, %v2213, 0.0
  %2220 = vadd.xlane.f32.xlu0 %v2219
  %v2221 = vpop.xlane.xlu0 %2220
  %v2222 = vsel %vm65, %v2214, 0.0
  %2223 = vadd.xlane.f32.xlu0 %v2222
  %v2224 = vpop.xlane.xlu0 %2223
  %v2225 = vsel %vm65, %v2215, 0.0
  %2226 = vadd.xlane.f32.xlu0 %v2225
  %v2227 = vpop.xlane.xlu0 %2226
  %v2228 = vmul.f32 %v2218, %v1918
  %v2229 = vmul.f32 %v2221, %v1918
  %v2230 = vmul.f32 %v2224, %v1918
  %v2231 = vmul.f32 %v2227, %v1918
  %v2232 = vadd.f32 %v2228, 1e-05
  %v2233 = vadd.f32 %v2229, 1e-05
  %v2234 = vadd.f32 %v2230, 1e-05
  %v2235 = vadd.f32 %v2231, 1e-05
  %v2236 = vrsqrt.pop %v2232
  %v2237 = vrsqrt.pop %v2233
  %v2238 = vrsqrt.pop %v2234
  %v2239 = vrsqrt.pop %v2235
  %v2240 = vmul.f32 %v2208, %v2236
  %v2241 = vmul.f32 %v2209, %v2237
  %v2242 = vmul.f32 %v2210, %v2238
  %v2243 = vmul.f32 %v2211, %v2239
  %v2244 = vlaneseq
  %v2245 = vshrl.u32 %v2244, 7
  %v2246 = vsub.s32 2, %v2245
  %v2247 = vrot.slane %v38, %v2246
  %v2248 = vmul.f32 %v2240, %v2247
  %v2249 = vmul.f32 %v2241, %v2247
  %v2250 = vmul.f32 %v2242, %v2247
  %v2251 = vmul.f32 %v2243, %v2247
  %v2252 = vlaneseq
  %v2253 = vshrl.u32 %v2252, 7
  %v2254 = vsub.s32 3, %v2253
  %v2255 = vrot.slane %v38, %v2254
  %v2256 = vadd.f32 %v2248, %v2255
  %v2257 = vadd.f32 %v2249, %v2255
  %v2258 = vadd.f32 %v2250, %v2255
  %v2259 = vadd.f32 %v2251, %v2255
  %s2260 = scalar_lea.vmem %s2, 16
  %v2261 = vld [vmem:[%s2260] sm:$0xf]
  %v2262 = vld [vmem:[%s2260 + $0x4] sm:$0xf]
  %v2263 = vld [vmem:[%s2260 + $0x8] sm:$0xf]
  %v2264 = vld [vmem:[%s2260 + $0xc] sm:$0xf]
  %s2265 = scalar_lea.vmem %s3, 1
  %v2266 = vld [vmem:[%s2265] sm:$0x1]
  %v2267 = vpack.c.bf16 %v2257, %v2256
  %v2268 = vpack.c.bf16 %v2259, %v2258
  %v2270 = vlaneseq
  %v2271 = vshrl.u32 %v2270, 7
  %v2272 = vsub.s32 0, %v2271
  %v2273 = vrot.slane %v2266, %v2272
  %v2279 = vunpack.c.l.b16 %v2261
  %v2280 = vunpack.c.l.b16 %v2262
  %v2281 = vunpack.c.l.b16 %v2263
  %v2282 = vunpack.c.l.b16 %v2264
  %v2283 = vpack.c.b16 %v2280, %v2279
  %v2284 = vpack.c.b16 %v2282, %v2281
  %v2288 = vsel %vm65, %v2267, 0
  %v2291 = vsel %vm65, %v2268, 0
  %2293 = vmatprep.subr.bf16.mxu0 0
  %2294 = vmatpush1.bf16.msra.mxu0 %v2283
  %2295 = vmatprep.subr.bf16.mxu0 0
  %2296 = vmatpush1.bf16.msra.mxu0 %v2284
  %2297 = vmatprep.subr.bf16.mxu0 0
  %2298 = vmatpush1.bf16.msra.mxu0 0
  %2299 = vmatprep.subr.bf16.mxu0 0
  %2300 = vmatpush1.bf16.msra.mxu0 0
  %2301 = vmatprep.subr.bf16.mxu0 0
  %2302 = vmatpush1.bf16.msra.mxu0 0
  %2303 = vmatprep.subr.bf16.mxu0 0
  %2304 = vmatpush1.bf16.msra.mxu0 0
  %2305 = vmatprep.subr.bf16.mxu0 0
  %2306 = vmatpush1.bf16.msra.mxu0 0
  %2307 = vmatprep.subr.bf16.mxu0 0
  %2308 = vmatpush1.bf16.msra.mxu0 0
  %2309 = vmatprep.subr.bf16.mxu0 0
  %2310 = vmatpush1.bf16.msra.mxu0 0
  %2311 = vmatprep.subr.bf16.mxu0 0
  %2312 = vmatpush1.bf16.msra.mxu0 0
  %2313 = vmatprep.subr.bf16.mxu0 0
  %2314 = vmatpush1.bf16.msra.mxu0 0
  %2315 = vmatprep.subr.bf16.mxu0 0
  %2316 = vmatpush1.bf16.msra.mxu0 0
  %2317 = vmatprep.subr.bf16.mxu0 0
  %2318 = vmatpush1.bf16.msra.mxu0 0
  %2319 = vmatprep.subr.bf16.mxu0 0
  %2320 = vmatpush1.bf16.msra.mxu0 0
  %2321 = vmatprep.subr.bf16.mxu0 0
  %2322 = vmatpush1.bf16.msra.mxu0 0
  %2323 = vmatprep.subr.bf16.mxu0 0
  %2324 = vmatpush1.bf16.msra.mxu0 0
  %2325 = vmatprep.mubr.bf16.mxu0 0
  %2326 = vmatmul.mubr.bf16.gmra.mrb[0].mxu0 %v2288
  %v2327 = vpop.f32.mrb[0].mxu0
  %v2328 = vadd.f32 %v2273, %v2327
  %v2329 = vpop.f32.mrb[0].mxu0
  %v2330 = vpop.f32.mrb[0].mxu0
  %v2331 = vadd.f32 %v2273, %v2330
  %v2332 = vpop.f32.mrb[0].mxu0
  %2333 = vmatprep.mubr.bf16.mxu0 0
  %2334 = vmatmul.mubr.bf16.gmra.mrb[0].mxu0 %v2291
  %v2335 = vpop.f32.mrb[0].mxu0
  %v2336 = vadd.f32 %v2273, %v2335
  %v2337 = vpop.f32.mrb[0].mxu0
  %v2338 = vpop.f32.mrb[0].mxu0
  %v2339 = vadd.f32 %v2273, %v2338
  %v2340 = vpop.f32.mrb[0].mxu0
  %2341 = vdwg.mxu0
  %2344 = vrot.lane.b32.xlu0 %v2328, 96
  %v2345 = vpop.permute.xlu0 %2344
  %2346 = vrot.lane.b32.xlu0 %v2331, 96
  %v2347 = vpop.permute.xlu0 %2346
  %v2348 = vsel %vm127, %v2328, 0
  %v2350 = vsel %vm127, %v2331, 0
  %v2352 = vsel %vm127, %v2345, 0
  %v2354 = vsel %vm127, %v2347, 0
  %2356 = vmatprep.subr.mxu0 0.0
  %2357 = vmatpush1.xpose.msra.mxu0 %v2352
  %2358 = vmatprep.subr.mxu0 0.0
  %2359 = vmatpush1.xpose.msra.mxu0 %v2354
  %2360 = vmatprep.subr.mxu0 0.0
  %2361 = vmatpush1.xpose.msra.mxu0 0.0
  %2362 = vmatprep.subr.mxu0 0.0
  %2363 = vmatpush1.xpose.msra.mxu0 0.0
  %2364 = vmatprep.subr.mxu0 0.0
  %2365 = vmatpush1.xpose.msra.mxu0 0.0
  %2366 = vmatprep.subr.mxu0 0.0
  %2367 = vmatpush1.xpose.msra.mxu0 0.0
  %2368 = vmatprep.subr.mxu0 0.0
  %2369 = vmatpush1.xpose.msra.mxu0 0.0
  %2370 = vmatprep.subr.mxu0 0.0
  %2371 = vmatpush1.xpose.msra.mxu0 0.0
  %2372 = vmatprep.subr.mxu0 0.0
  %2373 = vmatpush1.xpose.msra.mxu0 0.0
  %2374 = vmatprep.subr.mxu0 0.0
  %2375 = vmatpush1.xpose.msra.mxu0 0.0
  %2376 = vmatprep.subr.mxu0 0.0
  %2377 = vmatpush1.xpose.msra.mxu0 0.0
  %2378 = vmatprep.subr.mxu0 0.0
  %2379 = vmatpush1.xpose.msra.mxu0 0.0
  %2380 = vmatprep.subr.mxu0 0.0
  %2381 = vmatpush1.xpose.msra.mxu0 0.0
  %2382 = vmatprep.subr.mxu0 0.0
  %2383 = vmatpush1.xpose.msra.mxu0 0.0
  %2384 = vmatprep.subr.mxu0 0.0
  %2385 = vmatpush1.xpose.msra.mxu0 0.0
  %2386 = vmatprep.subr.mxu0 0.0
  %2387 = vmatpush1.xpose.msra.mxu0 0.0
  %2388 = vmatprep.subr.mxu0 0.0
  %2389 = vmatpush1.xpose.msra.mxu0 0.0
  %2390 = vmatprep.subr.mxu0 0.0
  %2391 = vmatpush1.xpose.msra.mxu0 0.0
  %2392 = vmatprep.subr.mxu0 0.0
  %2393 = vmatpush1.xpose.msra.mxu0 0.0
  %2394 = vmatprep.subr.mxu0 0.0
  %2395 = vmatpush1.xpose.msra.mxu0 0.0
  %2396 = vmatprep.subr.mxu0 0.0
  %2397 = vmatpush1.xpose.msra.mxu0 0.0
  %2398 = vmatprep.subr.mxu0 0.0
  %2399 = vmatpush1.xpose.msra.mxu0 0.0
  %2400 = vmatprep.subr.mxu0 0.0
  %2401 = vmatpush1.xpose.msra.mxu0 0.0
  %2402 = vmatprep.subr.mxu0 0.0
  %2403 = vmatpush1.xpose.msra.mxu0 0.0
  %2404 = vmatprep.subr.mxu0 0.0
  %2405 = vmatpush1.xpose.msra.mxu0 0.0
  %2406 = vmatprep.subr.mxu0 0.0
  %2407 = vmatpush1.xpose.msra.mxu0 0.0
  %2408 = vmatprep.subr.mxu0 0.0
  %2409 = vmatpush1.xpose.msra.mxu0 0.0
  %2410 = vmatprep.subr.mxu0 0.0
  %2411 = vmatpush1.xpose.msra.mxu0 0.0
  %2412 = vmatprep.subr.mxu0 0.0
  %2413 = vmatpush1.xpose.msra.mxu0 0.0
  %2414 = vmatprep.subr.mxu0 0.0
  %2415 = vmatpush1.xpose.msra.mxu0 0.0
  %2416 = vmatprep.subr.mxu0 0.0
  %2417 = vmatpush1.xpose.msra.mxu0 0.0
  %2418 = vmatprep.subr.mxu0 0.0
  %2419 = vmatpush1.xpose.msra.mxu0 0.0
  %2420 = vmatprep.mubr.f32.mxu0 0.0
  %2421 = vmatmul.mubr.f32.gmra.mrb[0].mxu0 %v2348
  %v2422 = vpop.f32.mrb[0].mxu0
  %v2423 = vadd.f32 0.0, %v2422
  %v2424 = vpop.f32.mrb[0].mxu0
  %2425 = vmatprep.mubr.f32.mxu0 0.0
  %2426 = vmatmul.mubr.f32.gmra.mrb[0].mxu0 %v2350
  %v2427 = vpop.f32.mrb[0].mxu0
  %v2428 = vadd.f32 0.0, %v2427
  %v2429 = vpop.f32.mrb[0].mxu0
  %2430 = vdwg.mxu0
  %v2431 = vmul.f32 %v2423, 0.35355338
  %v2432 = vmul.f32 %v2428, 0.35355338
  %v2433 = vadd.f32 %v2431, %v216
  %v2434 = vadd.f32 %v2432, %v216
  %v2435 = vsel %vm219, %v2433, -inf
  %2436 = vmax.xlane.f32.xlu0 %v2435
  %v2437 = vpop.xlane.xlu0 %2436
  %v2438 = vsel %vm219, %v2434, -inf
  %2439 = vmax.xlane.f32.xlu0 %v2438
  %v2440 = vpop.xlane.xlu0 %2439
  %v2441 = vsub.f32 %v2433, %v2437
  %v2442 = vsub.f32 %v2434, %v2440
  %v2443 = vmul.f32 %v2441, 1.442695
  %v2444 = vpow.pop %v2443
  %v2445 = vmul.f32 %v2442, 1.442695
  %v2446 = vpow.pop %v2445
  %v2447 = vsel %vm219, %v2444, 0.0
  %2448 = vadd.xlane.f32.xlu0 %v2447
  %v2449 = vpop.xlane.xlu0 %2448
  %v2450 = vsel %vm219, %v2446, 0.0
  %2451 = vadd.xlane.f32.xlu0 %v2450
  %v2452 = vpop.xlane.xlu0 %2451
  %v2453 = vadd.f32 %v2449, 1e-20
  %v2454 = vadd.f32 %v2452, 1e-20
  %v2455 = vrcp.pop %v2453
  %v2456 = vrcp.pop %v2454
  %v2457 = vmul.f32 %v2444, %v2455
  %v2458 = vmul.f32 %v2446, %v2456
  %2459 = vrot.lane.b32.xlu0 %v2328, 64
  %v2460 = vpop.permute.xlu0 %2459
  %2461 = vrot.lane.b32.xlu0 %v2331, 64
  %v2462 = vpop.permute.xlu0 %2461
  %v2466 = vsel %vm219, %v2457, 0
  %v2469 = vsel %vm219, %v2458, 0
  %2471 = vmatprep.subr.mxu0 0.0
  %2472 = vmatpush1.msra.mxu0 %v2460
  %2473 = vmatprep.subr.mxu0 0.0
  %2474 = vmatpush1.msra.mxu0 %v2462
  %2475 = vmatprep.subr.mxu0 0.0
  %2476 = vmatpush1.msra.mxu0 0.0
  %2477 = vmatprep.subr.mxu0 0.0
  %2478 = vmatpush1.msra.mxu0 0.0
  %2479 = vmatprep.subr.mxu0 0.0
  %2480 = vmatpush1.msra.mxu0 0.0
  %2481 = vmatprep.subr.mxu0 0.0
  %2482 = vmatpush1.msra.mxu0 0.0
  %2483 = vmatprep.subr.mxu0 0.0
  %2484 = vmatpush1.msra.mxu0 0.0
  %2485 = vmatprep.subr.mxu0 0.0
  %2486 = vmatpush1.msra.mxu0 0.0
  %2487 = vmatprep.subr.mxu0 0.0
  %2488 = vmatpush1.msra.mxu0 0.0
  %2489 = vmatprep.subr.mxu0 0.0
  %2490 = vmatpush1.msra.mxu0 0.0
  %2491 = vmatprep.subr.mxu0 0.0
  %2492 = vmatpush1.msra.mxu0 0.0
  %2493 = vmatprep.subr.mxu0 0.0
  %2494 = vmatpush1.msra.mxu0 0.0
  %2495 = vmatprep.subr.mxu0 0.0
  %2496 = vmatpush1.msra.mxu0 0.0
  %2497 = vmatprep.subr.mxu0 0.0
  %2498 = vmatpush1.msra.mxu0 0.0
  %2499 = vmatprep.subr.mxu0 0.0
  %2500 = vmatpush1.msra.mxu0 0.0
  %2501 = vmatprep.subr.mxu0 0.0
  %2502 = vmatpush1.msra.mxu0 0.0
  %2503 = vmatprep.subr.mxu0 0.0
  %2504 = vmatpush1.msra.mxu0 0.0
  %2505 = vmatprep.subr.mxu0 0.0
  %2506 = vmatpush1.msra.mxu0 0.0
  %2507 = vmatprep.subr.mxu0 0.0
  %2508 = vmatpush1.msra.mxu0 0.0
  %2509 = vmatprep.subr.mxu0 0.0
  %2510 = vmatpush1.msra.mxu0 0.0
  %2511 = vmatprep.subr.mxu0 0.0
  %2512 = vmatpush1.msra.mxu0 0.0
  %2513 = vmatprep.subr.mxu0 0.0
  %2514 = vmatpush1.msra.mxu0 0.0
  %2515 = vmatprep.subr.mxu0 0.0
  %2516 = vmatpush1.msra.mxu0 0.0
  %2517 = vmatprep.subr.mxu0 0.0
  %2518 = vmatpush1.msra.mxu0 0.0
  %2519 = vmatprep.subr.mxu0 0.0
  %2520 = vmatpush1.msra.mxu0 0.0
  %2521 = vmatprep.subr.mxu0 0.0
  %2522 = vmatpush1.msra.mxu0 0.0
  %2523 = vmatprep.subr.mxu0 0.0
  %2524 = vmatpush1.msra.mxu0 0.0
  %2525 = vmatprep.subr.mxu0 0.0
  %2526 = vmatpush1.msra.mxu0 0.0
  %2527 = vmatprep.subr.mxu0 0.0
  %2528 = vmatpush1.msra.mxu0 0.0
  %2529 = vmatprep.subr.mxu0 0.0
  %2530 = vmatpush1.msra.mxu0 0.0
  %2531 = vmatprep.subr.mxu0 0.0
  %2532 = vmatpush1.msra.mxu0 0.0
  %2533 = vmatprep.subr.mxu0 0.0
  %2534 = vmatpush1.msra.mxu0 0.0
  %2535 = vmatprep.mubr.f32.mxu0 0.0
  %2536 = vmatmul.mubr.f32.gmra.mrb[0].mxu0 %v2466
  %v2537 = vpop.f32.mrb[0].mxu0
  %v2538 = vadd.f32 0.0, %v2537
  %v2539 = vpop.f32.mrb[0].mxu0
  %2540 = vmatprep.mubr.f32.mxu0 0.0
  %2541 = vmatmul.mubr.f32.gmra.mrb[0].mxu0 %v2469
  %v2542 = vpop.f32.mrb[0].mxu0
  %v2543 = vadd.f32 0.0, %v2542
  %v2544 = vpop.f32.mrb[0].mxu0
  %2545 = vdwg.mxu0
  %2546 = vrot.lane.b32.xlu0 %v2328, 120
  %v2547 = vpop.permute.xlu0 %2546
  %2548 = vrot.lane.b32.xlu0 %v2331, 120
  %v2549 = vpop.permute.xlu0 %2548
  %2550 = vrot.lane.b32.xlu0 %v2328, 88
  %v2551 = vpop.permute.xlu0 %2550
  %2552 = vrot.lane.b32.xlu0 %v2331, 88
  %v2553 = vpop.permute.xlu0 %2552
  %v2554 = vsel %vm127, %v2547, 0
  %v2556 = vsel %vm127, %v2549, 0
  %v2558 = vsel %vm127, %v2551, 0
  %v2560 = vsel %vm127, %v2553, 0
  %2562 = vmatprep.subr.mxu0 0.0
  %2563 = vmatpush1.xpose.msra.mxu0 %v2558
  %2564 = vmatprep.subr.mxu0 0.0
  %2565 = vmatpush1.xpose.msra.mxu0 %v2560
  %2566 = vmatprep.subr.mxu0 0.0
  %2567 = vmatpush1.xpose.msra.mxu0 0.0
  %2568 = vmatprep.subr.mxu0 0.0
  %2569 = vmatpush1.xpose.msra.mxu0 0.0
  %2570 = vmatprep.subr.mxu0 0.0
  %2571 = vmatpush1.xpose.msra.mxu0 0.0
  %2572 = vmatprep.subr.mxu0 0.0
  %2573 = vmatpush1.xpose.msra.mxu0 0.0
  %2574 = vmatprep.subr.mxu0 0.0
  %2575 = vmatpush1.xpose.msra.mxu0 0.0
  %2576 = vmatprep.subr.mxu0 0.0
  %2577 = vmatpush1.xpose.msra.mxu0 0.0
  %2578 = vmatprep.subr.mxu0 0.0
  %2579 = vmatpush1.xpose.msra.mxu0 0.0
  %2580 = vmatprep.subr.mxu0 0.0
  %2581 = vmatpush1.xpose.msra.mxu0 0.0
  %2582 = vmatprep.subr.mxu0 0.0
  %2583 = vmatpush1.xpose.msra.mxu0 0.0
  %2584 = vmatprep.subr.mxu0 0.0
  %2585 = vmatpush1.xpose.msra.mxu0 0.0
  %2586 = vmatprep.subr.mxu0 0.0
  %2587 = vmatpush1.xpose.msra.mxu0 0.0
  %2588 = vmatprep.subr.mxu0 0.0
  %2589 = vmatpush1.xpose.msra.mxu0 0.0
  %2590 = vmatprep.subr.mxu0 0.0
  %2591 = vmatpush1.xpose.msra.mxu0 0.0
  %2592 = vmatprep.subr.mxu0 0.0
  %2593 = vmatpush1.xpose.msra.mxu0 0.0
  %2594 = vmatprep.subr.mxu0 0.0
  %2595 = vmatpush1.xpose.msra.mxu0 0.0
  %2596 = vmatprep.subr.mxu0 0.0
  %2597 = vmatpush1.xpose.msra.mxu0 0.0
  %2598 = vmatprep.subr.mxu0 0.0
  %2599 = vmatpush1.xpose.msra.mxu0 0.0
  %2600 = vmatprep.subr.mxu0 0.0
  %2601 = vmatpush1.xpose.msra.mxu0 0.0
  %2602 = vmatprep.subr.mxu0 0.0
  %2603 = vmatpush1.xpose.msra.mxu0 0.0
  %2604 = vmatprep.subr.mxu0 0.0
  %2605 = vmatpush1.xpose.msra.mxu0 0.0
  %2606 = vmatprep.subr.mxu0 0.0
  %2607 = vmatpush1.xpose.msra.mxu0 0.0
  %2608 = vmatprep.subr.mxu0 0.0
  %2609 = vmatpush1.xpose.msra.mxu0 0.0
  %2610 = vmatprep.subr.mxu0 0.0
  %2611 = vmatpush1.xpose.msra.mxu0 0.0
  %2612 = vmatprep.subr.mxu0 0.0
  %2613 = vmatpush1.xpose.msra.mxu0 0.0
  %2614 = vmatprep.subr.mxu0 0.0
  %2615 = vmatpush1.xpose.msra.mxu0 0.0
  %2616 = vmatprep.subr.mxu0 0.0
  %2617 = vmatpush1.xpose.msra.mxu0 0.0
  %2618 = vmatprep.subr.mxu0 0.0
  %2619 = vmatpush1.xpose.msra.mxu0 0.0
  %2620 = vmatprep.subr.mxu0 0.0
  %2621 = vmatpush1.xpose.msra.mxu0 0.0
  %2622 = vmatprep.subr.mxu0 0.0
  %2623 = vmatpush1.xpose.msra.mxu0 0.0
  %2624 = vmatprep.subr.mxu0 0.0
  %2625 = vmatpush1.xpose.msra.mxu0 0.0
  %2626 = vmatprep.mubr.f32.mxu0 0.0
  %2627 = vmatmul.mubr.f32.gmra.mrb[0].mxu0 %v2554
  %v2628 = vpop.f32.mrb[0].mxu0
  %v2629 = vadd.f32 0.0, %v2628
  %v2630 = vpop.f32.mrb[0].mxu0
  %2631 = vmatprep.mubr.f32.mxu0 0.0
  %2632 = vmatmul.mubr.f32.gmra.mrb[0].mxu0 %v2556
  %v2633 = vpop.f32.mrb[0].mxu0
  %v2634 = vadd.f32 0.0, %v2633
  %v2635 = vpop.f32.mrb[0].mxu0
  %2636 = vdwg.mxu0
  %v2637 = vmul.f32 %v2629, 0.35355338
  %v2638 = vmul.f32 %v2634, 0.35355338
  %v2639 = vadd.f32 %v2637, %v216
  %v2640 = vadd.f32 %v2638, %v216
  %v2641 = vsel %vm219, %v2639, -inf
  %2642 = vmax.xlane.f32.xlu0 %v2641
  %v2643 = vpop.xlane.xlu0 %2642
  %v2644 = vsel %vm219, %v2640, -inf
  %2645 = vmax.xlane.f32.xlu0 %v2644
  %v2646 = vpop.xlane.xlu0 %2645
  %v2647 = vsub.f32 %v2639, %v2643
  %v2648 = vsub.f32 %v2640, %v2646
  %v2649 = vmul.f32 %v2647, 1.442695
  %v2650 = vpow.pop %v2649
  %v2651 = vmul.f32 %v2648, 1.442695
  %v2652 = vpow.pop %v2651
  %v2653 = vsel %vm219, %v2650, 0.0
  %2654 = vadd.xlane.f32.xlu0 %v2653
  %v2655 = vpop.xlane.xlu0 %2654
  %v2656 = vsel %vm219, %v2652, 0.0
  %2657 = vadd.xlane.f32.xlu0 %v2656
  %v2658 = vpop.xlane.xlu0 %2657
  %v2659 = vadd.f32 %v2655, 1e-20
  %v2660 = vadd.f32 %v2658, 1e-20
  %v2661 = vrcp.pop %v2659
  %v2662 = vrcp.pop %v2660
  %v2663 = vmul.f32 %v2650, %v2661
  %v2664 = vmul.f32 %v2652, %v2662
  %2665 = vrot.lane.b32.xlu0 %v2328, 56
  %v2666 = vpop.permute.xlu0 %2665
  %2667 = vrot.lane.b32.xlu0 %v2331, 56
  %v2668 = vpop.permute.xlu0 %2667
  %v2672 = vsel %vm219, %v2663, 0
  %v2675 = vsel %vm219, %v2664, 0
  %2677 = vmatprep.subr.mxu0 0.0
  %2678 = vmatpush1.msra.mxu0 %v2666
  %2679 = vmatprep.subr.mxu0 0.0
  %2680 = vmatpush1.msra.mxu0 %v2668
  %2681 = vmatprep.subr.mxu0 0.0
  %2682 = vmatpush1.msra.mxu0 0.0
  %2683 = vmatprep.subr.mxu0 0.0
  %2684 = vmatpush1.msra.mxu0 0.0
  %2685 = vmatprep.subr.mxu0 0.0
  %2686 = vmatpush1.msra.mxu0 0.0
  %2687 = vmatprep.subr.mxu0 0.0
  %2688 = vmatpush1.msra.mxu0 0.0
  %2689 = vmatprep.subr.mxu0 0.0
  %2690 = vmatpush1.msra.mxu0 0.0
  %2691 = vmatprep.subr.mxu0 0.0
  %2692 = vmatpush1.msra.mxu0 0.0
  %2693 = vmatprep.subr.mxu0 0.0
  %2694 = vmatpush1.msra.mxu0 0.0
  %2695 = vmatprep.subr.mxu0 0.0
  %2696 = vmatpush1.msra.mxu0 0.0
  %2697 = vmatprep.subr.mxu0 0.0
  %2698 = vmatpush1.msra.mxu0 0.0
  %2699 = vmatprep.subr.mxu0 0.0
  %2700 = vmatpush1.msra.mxu0 0.0
  %2701 = vmatprep.subr.mxu0 0.0
  %2702 = vmatpush1.msra.mxu0 0.0
  %2703 = vmatprep.subr.mxu0 0.0
  %2704 = vmatpush1.msra.mxu0 0.0
  %2705 = vmatprep.subr.mxu0 0.0
  %2706 = vmatpush1.msra.mxu0 0.0
  %2707 = vmatprep.subr.mxu0 0.0
  %2708 = vmatpush1.msra.mxu0 0.0
  %2709 = vmatprep.subr.mxu0 0.0
  %2710 = vmatpush1.msra.mxu0 0.0
  %2711 = vmatprep.subr.mxu0 0.0
  %2712 = vmatpush1.msra.mxu0 0.0
  %2713 = vmatprep.subr.mxu0 0.0
  %2714 = vmatpush1.msra.mxu0 0.0
  %2715 = vmatprep.subr.mxu0 0.0
  %2716 = vmatpush1.msra.mxu0 0.0
  %2717 = vmatprep.subr.mxu0 0.0
  %2718 = vmatpush1.msra.mxu0 0.0
  %2719 = vmatprep.subr.mxu0 0.0
  %2720 = vmatpush1.msra.mxu0 0.0
  %2721 = vmatprep.subr.mxu0 0.0
  %2722 = vmatpush1.msra.mxu0 0.0
  %2723 = vmatprep.subr.mxu0 0.0
  %2724 = vmatpush1.msra.mxu0 0.0
  %2725 = vmatprep.subr.mxu0 0.0
  %2726 = vmatpush1.msra.mxu0 0.0
  %2727 = vmatprep.subr.mxu0 0.0
  %2728 = vmatpush1.msra.mxu0 0.0
  %2729 = vmatprep.subr.mxu0 0.0
  %2730 = vmatpush1.msra.mxu0 0.0
  %2731 = vmatprep.subr.mxu0 0.0
  %2732 = vmatpush1.msra.mxu0 0.0
  %2733 = vmatprep.subr.mxu0 0.0
  %2734 = vmatpush1.msra.mxu0 0.0
  %2735 = vmatprep.subr.mxu0 0.0
  %2736 = vmatpush1.msra.mxu0 0.0
  %2737 = vmatprep.subr.mxu0 0.0
  %2738 = vmatpush1.msra.mxu0 0.0
  %2739 = vmatprep.subr.mxu0 0.0
  %2740 = vmatpush1.msra.mxu0 0.0
  %2741 = vmatprep.mubr.f32.mxu0 0.0
  %2742 = vmatmul.mubr.f32.gmra.mrb[0].mxu0 %v2672
  %v2743 = vpop.f32.mrb[0].mxu0
  %v2744 = vadd.f32 0.0, %v2743
  %v2745 = vpop.f32.mrb[0].mxu0
  %2746 = vmatprep.mubr.f32.mxu0 0.0
  %2747 = vmatmul.mubr.f32.gmra.mrb[0].mxu0 %v2675
  %v2748 = vpop.f32.mrb[0].mxu0
  %v2749 = vadd.f32 0.0, %v2748
  %v2750 = vpop.f32.mrb[0].mxu0
  %2751 = vdwg.mxu0
  %2752 = vrot.lane.b32.xlu0 %v2328, 112
  %v2753 = vpop.permute.xlu0 %2752
  %2754 = vrot.lane.b32.xlu0 %v2331, 112
  %v2755 = vpop.permute.xlu0 %2754
  %2756 = vrot.lane.b32.xlu0 %v2328, 80
  %v2757 = vpop.permute.xlu0 %2756
  %2758 = vrot.lane.b32.xlu0 %v2331, 80
  %v2759 = vpop.permute.xlu0 %2758
  %v2760 = vsel %vm127, %v2753, 0
  %v2762 = vsel %vm127, %v2755, 0
  %v2764 = vsel %vm127, %v2757, 0
  %v2766 = vsel %vm127, %v2759, 0
  %2768 = vmatprep.subr.mxu0 0.0
  %2769 = vmatpush1.xpose.msra.mxu0 %v2764
  %2770 = vmatprep.subr.mxu0 0.0
  %2771 = vmatpush1.xpose.msra.mxu0 %v2766
  %2772 = vmatprep.subr.mxu0 0.0
  %2773 = vmatpush1.xpose.msra.mxu0 0.0
  %2774 = vmatprep.subr.mxu0 0.0
  %2775 = vmatpush1.xpose.msra.mxu0 0.0
  %2776 = vmatprep.subr.mxu0 0.0
  %2777 = vmatpush1.xpose.msra.mxu0 0.0
  %2778 = vmatprep.subr.mxu0 0.0
  %2779 = vmatpush1.xpose.msra.mxu0 0.0
  %2780 = vmatprep.subr.mxu0 0.0
  %2781 = vmatpush1.xpose.msra.mxu0 0.0
  %2782 = vmatprep.subr.mxu0 0.0
  %2783 = vmatpush1.xpose.msra.mxu0 0.0
  %2784 = vmatprep.subr.mxu0 0.0
  %2785 = vmatpush1.xpose.msra.mxu0 0.0
  %2786 = vmatprep.subr.mxu0 0.0
  %2787 = vmatpush1.xpose.msra.mxu0 0.0
  %2788 = vmatprep.subr.mxu0 0.0
  %2789 = vmatpush1.xpose.msra.mxu0 0.0
  %2790 = vmatprep.subr.mxu0 0.0
  %2791 = vmatpush1.xpose.msra.mxu0 0.0
  %2792 = vmatprep.subr.mxu0 0.0
  %2793 = vmatpush1.xpose.msra.mxu0 0.0
  %2794 = vmatprep.subr.mxu0 0.0
  %2795 = vmatpush1.xpose.msra.mxu0 0.0
  %2796 = vmatprep.subr.mxu0 0.0
  %2797 = vmatpush1.xpose.msra.mxu0 0.0
  %2798 = vmatprep.subr.mxu0 0.0
  %2799 = vmatpush1.xpose.msra.mxu0 0.0
  %2800 = vmatprep.subr.mxu0 0.0
  %2801 = vmatpush1.xpose.msra.mxu0 0.0
  %2802 = vmatprep.subr.mxu0 0.0
  %2803 = vmatpush1.xpose.msra.mxu0 0.0
  %2804 = vmatprep.subr.mxu0 0.0
  %2805 = vmatpush1.xpose.msra.mxu0 0.0
  %2806 = vmatprep.subr.mxu0 0.0
  %2807 = vmatpush1.xpose.msra.mxu0 0.0
  %2808 = vmatprep.subr.mxu0 0.0
  %2809 = vmatpush1.xpose.msra.mxu0 0.0
  %2810 = vmatprep.subr.mxu0 0.0
  %2811 = vmatpush1.xpose.msra.mxu0 0.0
  %2812 = vmatprep.subr.mxu0 0.0
  %2813 = vmatpush1.xpose.msra.mxu0 0.0
  %2814 = vmatprep.subr.mxu0 0.0
  %2815 = vmatpush1.xpose.msra.mxu0 0.0
  %2816 = vmatprep.subr.mxu0 0.0
  %2817 = vmatpush1.xpose.msra.mxu0 0.0
  %2818 = vmatprep.subr.mxu0 0.0
  %2819 = vmatpush1.xpose.msra.mxu0 0.0
  %2820 = vmatprep.subr.mxu0 0.0
  %2821 = vmatpush1.xpose.msra.mxu0 0.0
  %2822 = vmatprep.subr.mxu0 0.0
  %2823 = vmatpush1.xpose.msra.mxu0 0.0
  %2824 = vmatprep.subr.mxu0 0.0
  %2825 = vmatpush1.xpose.msra.mxu0 0.0
  %2826 = vmatprep.subr.mxu0 0.0
  %2827 = vmatpush1.xpose.msra.mxu0 0.0
  %2828 = vmatprep.subr.mxu0 0.0
  %2829 = vmatpush1.xpose.msra.mxu0 0.0
  %2830 = vmatprep.subr.mxu0 0.0
  %2831 = vmatpush1.xpose.msra.mxu0 0.0
  %2832 = vmatprep.mubr.f32.mxu0 0.0
  %2833 = vmatmul.mubr.f32.gmra.mrb[0].mxu0 %v2760
  %v2834 = vpop.f32.mrb[0].mxu0
  %v2835 = vadd.f32 0.0, %v2834
  %v2836 = vpop.f32.mrb[0].mxu0
  %2837 = vmatprep.mubr.f32.mxu0 0.0
  %2838 = vmatmul.mubr.f32.gmra.mrb[0].mxu0 %v2762
  %v2839 = vpop.f32.mrb[0].mxu0
  %v2840 = vadd.f32 0.0, %v2839
  %v2841 = vpop.f32.mrb[0].mxu0
  %2842 = vdwg.mxu0
  %v2843 = vmul.f32 %v2835, 0.35355338
  %v2844 = vmul.f32 %v2840, 0.35355338
  %v2845 = vadd.f32 %v2843, %v216
  %v2846 = vadd.f32 %v2844, %v216
  %v2847 = vsel %vm219, %v2845, -inf
  %2848 = vmax.xlane.f32.xlu0 %v2847
  %v2849 = vpop.xlane.xlu0 %2848
  %v2850 = vsel %vm219, %v2846, -inf
  %2851 = vmax.xlane.f32.xlu0 %v2850
  %v2852 = vpop.xlane.xlu0 %2851
  %v2853 = vsub.f32 %v2845, %v2849
  %v2854 = vsub.f32 %v2846, %v2852
  %v2855 = vmul.f32 %v2853, 1.442695
  %v2856 = vpow.pop %v2855
  %v2857 = vmul.f32 %v2854, 1.442695
  %v2858 = vpow.pop %v2857
  %v2859 = vsel %vm219, %v2856, 0.0
  %2860 = vadd.xlane.f32.xlu0 %v2859
  %v2861 = vpop.xlane.xlu0 %2860
  %v2862 = vsel %vm219, %v2858, 0.0
  %2863 = vadd.xlane.f32.xlu0 %v2862
  %v2864 = vpop.xlane.xlu0 %2863
  %v2865 = vadd.f32 %v2861, 1e-20
  %v2866 = vadd.f32 %v2864, 1e-20
  %v2867 = vrcp.pop %v2865
  %v2868 = vrcp.pop %v2866
  %v2869 = vmul.f32 %v2856, %v2867
  %v2870 = vmul.f32 %v2858, %v2868
  %2871 = vrot.lane.b32.xlu0 %v2328, 48
  %v2872 = vpop.permute.xlu0 %2871
  %2873 = vrot.lane.b32.xlu0 %v2331, 48
  %v2874 = vpop.permute.xlu0 %2873
  %v2878 = vsel %vm219, %v2869, 0
  %v2881 = vsel %vm219, %v2870, 0
  %2883 = vmatprep.subr.mxu0 0.0
  %2884 = vmatpush1.msra.mxu0 %v2872
  %2885 = vmatprep.subr.mxu0 0.0
  %2886 = vmatpush1.msra.mxu0 %v2874
  %2887 = vmatprep.subr.mxu0 0.0
  %2888 = vmatpush1.msra.mxu0 0.0
  %2889 = vmatprep.subr.mxu0 0.0
  %2890 = vmatpush1.msra.mxu0 0.0
  %2891 = vmatprep.subr.mxu0 0.0
  %2892 = vmatpush1.msra.mxu0 0.0
  %2893 = vmatprep.subr.mxu0 0.0
  %2894 = vmatpush1.msra.mxu0 0.0
  %2895 = vmatprep.subr.mxu0 0.0
  %2896 = vmatpush1.msra.mxu0 0.0
  %2897 = vmatprep.subr.mxu0 0.0
  %2898 = vmatpush1.msra.mxu0 0.0
  %2899 = vmatprep.subr.mxu0 0.0
  %2900 = vmatpush1.msra.mxu0 0.0
  %2901 = vmatprep.subr.mxu0 0.0
  %2902 = vmatpush1.msra.mxu0 0.0
  %2903 = vmatprep.subr.mxu0 0.0
  %2904 = vmatpush1.msra.mxu0 0.0
  %2905 = vmatprep.subr.mxu0 0.0
  %2906 = vmatpush1.msra.mxu0 0.0
  %2907 = vmatprep.subr.mxu0 0.0
  %2908 = vmatpush1.msra.mxu0 0.0
  %2909 = vmatprep.subr.mxu0 0.0
  %2910 = vmatpush1.msra.mxu0 0.0
  %2911 = vmatprep.subr.mxu0 0.0
  %2912 = vmatpush1.msra.mxu0 0.0
  %2913 = vmatprep.subr.mxu0 0.0
  %2914 = vmatpush1.msra.mxu0 0.0
  %2915 = vmatprep.subr.mxu0 0.0
  %2916 = vmatpush1.msra.mxu0 0.0
  %2917 = vmatprep.subr.mxu0 0.0
  %2918 = vmatpush1.msra.mxu0 0.0
  %2919 = vmatprep.subr.mxu0 0.0
  %2920 = vmatpush1.msra.mxu0 0.0
  %2921 = vmatprep.subr.mxu0 0.0
  %2922 = vmatpush1.msra.mxu0 0.0
  %2923 = vmatprep.subr.mxu0 0.0
  %2924 = vmatpush1.msra.mxu0 0.0
  %2925 = vmatprep.subr.mxu0 0.0
  %2926 = vmatpush1.msra.mxu0 0.0
  %2927 = vmatprep.subr.mxu0 0.0
  %2928 = vmatpush1.msra.mxu0 0.0
  %2929 = vmatprep.subr.mxu0 0.0
  %2930 = vmatpush1.msra.mxu0 0.0
  %2931 = vmatprep.subr.mxu0 0.0
  %2932 = vmatpush1.msra.mxu0 0.0
  %2933 = vmatprep.subr.mxu0 0.0
  %2934 = vmatpush1.msra.mxu0 0.0
  %2935 = vmatprep.subr.mxu0 0.0
  %2936 = vmatpush1.msra.mxu0 0.0
  %2937 = vmatprep.subr.mxu0 0.0
  %2938 = vmatpush1.msra.mxu0 0.0
  %2939 = vmatprep.subr.mxu0 0.0
  %2940 = vmatpush1.msra.mxu0 0.0
  %2941 = vmatprep.subr.mxu0 0.0
  %2942 = vmatpush1.msra.mxu0 0.0
  %2943 = vmatprep.subr.mxu0 0.0
  %2944 = vmatpush1.msra.mxu0 0.0
  %2945 = vmatprep.subr.mxu0 0.0
  %2946 = vmatpush1.msra.mxu0 0.0
  %2947 = vmatprep.mubr.f32.mxu0 0.0
  %2948 = vmatmul.mubr.f32.gmra.mrb[0].mxu0 %v2878
  %v2949 = vpop.f32.mrb[0].mxu0
  %v2950 = vadd.f32 0.0, %v2949
  %v2951 = vpop.f32.mrb[0].mxu0
  %2952 = vmatprep.mubr.f32.mxu0 0.0
  %2953 = vmatmul.mubr.f32.gmra.mrb[0].mxu0 %v2881
  %v2954 = vpop.f32.mrb[0].mxu0
  %v2955 = vadd.f32 0.0, %v2954
  %v2956 = vpop.f32.mrb[0].mxu0
  %2957 = vdwg.mxu0
  %2958 = vrot.lane.b32.xlu0 %v2328, 104
  %v2959 = vpop.permute.xlu0 %2958
  %2960 = vrot.lane.b32.xlu0 %v2331, 104
  %v2961 = vpop.permute.xlu0 %2960
  %2962 = vrot.lane.b32.xlu0 %v2328, 72
  %v2963 = vpop.permute.xlu0 %2962
  %2964 = vrot.lane.b32.xlu0 %v2331, 72
  %v2965 = vpop.permute.xlu0 %2964
  %v2966 = vsel %vm127, %v2959, 0
  %v2968 = vsel %vm127, %v2961, 0
  %v2970 = vsel %vm127, %v2963, 0
  %v2972 = vsel %vm127, %v2965, 0
  %2974 = vmatprep.subr.mxu0 0.0
  %2975 = vmatpush1.xpose.msra.mxu0 %v2970
  %2976 = vmatprep.subr.mxu0 0.0
  %2977 = vmatpush1.xpose.msra.mxu0 %v2972
  %2978 = vmatprep.subr.mxu0 0.0
  %2979 = vmatpush1.xpose.msra.mxu0 0.0
  %2980 = vmatprep.subr.mxu0 0.0
  %2981 = vmatpush1.xpose.msra.mxu0 0.0
  %2982 = vmatprep.subr.mxu0 0.0
  %2983 = vmatpush1.xpose.msra.mxu0 0.0
  %2984 = vmatprep.subr.mxu0 0.0
  %2985 = vmatpush1.xpose.msra.mxu0 0.0
  %2986 = vmatprep.subr.mxu0 0.0
  %2987 = vmatpush1.xpose.msra.mxu0 0.0
  %2988 = vmatprep.subr.mxu0 0.0
  %2989 = vmatpush1.xpose.msra.mxu0 0.0
  %2990 = vmatprep.subr.mxu0 0.0
  %2991 = vmatpush1.xpose.msra.mxu0 0.0
  %2992 = vmatprep.subr.mxu0 0.0
  %2993 = vmatpush1.xpose.msra.mxu0 0.0
  %2994 = vmatprep.subr.mxu0 0.0
  %2995 = vmatpush1.xpose.msra.mxu0 0.0
  %2996 = vmatprep.subr.mxu0 0.0
  %2997 = vmatpush1.xpose.msra.mxu0 0.0
  %2998 = vmatprep.subr.mxu0 0.0
  %2999 = vmatpush1.xpose.msra.mxu0 0.0
  %3000 = vmatprep.subr.mxu0 0.0
  %3001 = vmatpush1.xpose.msra.mxu0 0.0
  %3002 = vmatprep.subr.mxu0 0.0
  %3003 = vmatpush1.xpose.msra.mxu0 0.0
  %3004 = vmatprep.subr.mxu0 0.0
  %3005 = vmatpush1.xpose.msra.mxu0 0.0
  %3006 = vmatprep.subr.mxu0 0.0
  %3007 = vmatpush1.xpose.msra.mxu0 0.0
  %3008 = vmatprep.subr.mxu0 0.0
  %3009 = vmatpush1.xpose.msra.mxu0 0.0
  %3010 = vmatprep.subr.mxu0 0.0
  %3011 = vmatpush1.xpose.msra.mxu0 0.0
  %3012 = vmatprep.subr.mxu0 0.0
  %3013 = vmatpush1.xpose.msra.mxu0 0.0
  %3014 = vmatprep.subr.mxu0 0.0
  %3015 = vmatpush1.xpose.msra.mxu0 0.0
  %3016 = vmatprep.subr.mxu0 0.0
  %3017 = vmatpush1.xpose.msra.mxu0 0.0
  %3018 = vmatprep.subr.mxu0 0.0
  %3019 = vmatpush1.xpose.msra.mxu0 0.0
  %3020 = vmatprep.subr.mxu0 0.0
  %3021 = vmatpush1.xpose.msra.mxu0 0.0
  %3022 = vmatprep.subr.mxu0 0.0
  %3023 = vmatpush1.xpose.msra.mxu0 0.0
  %3024 = vmatprep.subr.mxu0 0.0
  %3025 = vmatpush1.xpose.msra.mxu0 0.0
  %3026 = vmatprep.subr.mxu0 0.0
  %3027 = vmatpush1.xpose.msra.mxu0 0.0
  %3028 = vmatprep.subr.mxu0 0.0
  %3029 = vmatpush1.xpose.msra.mxu0 0.0
  %3030 = vmatprep.subr.mxu0 0.0
  %3031 = vmatpush1.xpose.msra.mxu0 0.0
  %3032 = vmatprep.subr.mxu0 0.0
  %3033 = vmatpush1.xpose.msra.mxu0 0.0
  %3034 = vmatprep.subr.mxu0 0.0
  %3035 = vmatpush1.xpose.msra.mxu0 0.0
  %3036 = vmatprep.subr.mxu0 0.0
  %3037 = vmatpush1.xpose.msra.mxu0 0.0
  %3038 = vmatprep.mubr.f32.mxu0 0.0
  %3039 = vmatmul.mubr.f32.gmra.mrb[0].mxu0 %v2966
  %v3040 = vpop.f32.mrb[0].mxu0
  %v3041 = vadd.f32 0.0, %v3040
  %v3042 = vpop.f32.mrb[0].mxu0
  %3043 = vmatprep.mubr.f32.mxu0 0.0
  %3044 = vmatmul.mubr.f32.gmra.mrb[0].mxu0 %v2968
  %v3045 = vpop.f32.mrb[0].mxu0
  %v3046 = vadd.f32 0.0, %v3045
  %v3047 = vpop.f32.mrb[0].mxu0
  %3048 = vdwg.mxu0
  %v3049 = vmul.f32 %v3041, 0.35355338
  %v3050 = vmul.f32 %v3046, 0.35355338
  %v3051 = vadd.f32 %v3049, %v216
  %v3052 = vadd.f32 %v3050, %v216
  %v3053 = vsel %vm219, %v3051, -inf
  %3054 = vmax.xlane.f32.xlu0 %v3053
  %v3055 = vpop.xlane.xlu0 %3054
  %v3056 = vsel %vm219, %v3052, -inf
  %3057 = vmax.xlane.f32.xlu0 %v3056
  %v3058 = vpop.xlane.xlu0 %3057
  %v3059 = vsub.f32 %v3051, %v3055
  %v3060 = vsub.f32 %v3052, %v3058
  %v3061 = vmul.f32 %v3059, 1.442695
  %v3062 = vpow.pop %v3061
  %v3063 = vmul.f32 %v3060, 1.442695
  %v3064 = vpow.pop %v3063
  %v3065 = vsel %vm219, %v3062, 0.0
  %3066 = vadd.xlane.f32.xlu0 %v3065
  %v3067 = vpop.xlane.xlu0 %3066
  %v3068 = vsel %vm219, %v3064, 0.0
  %3069 = vadd.xlane.f32.xlu0 %v3068
  %v3070 = vpop.xlane.xlu0 %3069
  %v3071 = vadd.f32 %v3067, 1e-20
  %v3072 = vadd.f32 %v3070, 1e-20
  %v3073 = vrcp.pop %v3071
  %v3074 = vrcp.pop %v3072
  %v3075 = vmul.f32 %v3062, %v3073
  %v3076 = vmul.f32 %v3064, %v3074
  %3077 = vrot.lane.b32.xlu0 %v2328, 40
  %v3078 = vpop.permute.xlu0 %3077
  %3079 = vrot.lane.b32.xlu0 %v2331, 40
  %v3080 = vpop.permute.xlu0 %3079
  %v3084 = vsel %vm219, %v3075, 0
  %v3087 = vsel %vm219, %v3076, 0
  %3089 = vmatprep.subr.mxu0 0.0
  %3090 = vmatpush1.msra.mxu0 %v3078
  %3091 = vmatprep.subr.mxu0 0.0
  %3092 = vmatpush1.msra.mxu0 %v3080
  %3093 = vmatprep.subr.mxu0 0.0
  %3094 = vmatpush1.msra.mxu0 0.0
  %3095 = vmatprep.subr.mxu0 0.0
  %3096 = vmatpush1.msra.mxu0 0.0
  %3097 = vmatprep.subr.mxu0 0.0
  %3098 = vmatpush1.msra.mxu0 0.0
  %3099 = vmatprep.subr.mxu0 0.0
  %3100 = vmatpush1.msra.mxu0 0.0
  %3101 = vmatprep.subr.mxu0 0.0
  %3102 = vmatpush1.msra.mxu0 0.0
  %3103 = vmatprep.subr.mxu0 0.0
  %3104 = vmatpush1.msra.mxu0 0.0
  %3105 = vmatprep.subr.mxu0 0.0
  %3106 = vmatpush1.msra.mxu0 0.0
  %3107 = vmatprep.subr.mxu0 0.0
  %3108 = vmatpush1.msra.mxu0 0.0
  %3109 = vmatprep.subr.mxu0 0.0
  %3110 = vmatpush1.msra.mxu0 0.0
  %3111 = vmatprep.subr.mxu0 0.0
  %3112 = vmatpush1.msra.mxu0 0.0
  %3113 = vmatprep.subr.mxu0 0.0
  %3114 = vmatpush1.msra.mxu0 0.0
  %3115 = vmatprep.subr.mxu0 0.0
  %3116 = vmatpush1.msra.mxu0 0.0
  %3117 = vmatprep.subr.mxu0 0.0
  %3118 = vmatpush1.msra.mxu0 0.0
  %3119 = vmatprep.subr.mxu0 0.0
  %3120 = vmatpush1.msra.mxu0 0.0
  %3121 = vmatprep.subr.mxu0 0.0
  %3122 = vmatpush1.msra.mxu0 0.0
  %3123 = vmatprep.subr.mxu0 0.0
  %3124 = vmatpush1.msra.mxu0 0.0
  %3125 = vmatprep.subr.mxu0 0.0
  %3126 = vmatpush1.msra.mxu0 0.0
  %3127 = vmatprep.subr.mxu0 0.0
  %3128 = vmatpush1.msra.mxu0 0.0
  %3129 = vmatprep.subr.mxu0 0.0
  %3130 = vmatpush1.msra.mxu0 0.0
  %3131 = vmatprep.subr.mxu0 0.0
  %3132 = vmatpush1.msra.mxu0 0.0
  %3133 = vmatprep.subr.mxu0 0.0
  %3134 = vmatpush1.msra.mxu0 0.0
  %3135 = vmatprep.subr.mxu0 0.0
  %3136 = vmatpush1.msra.mxu0 0.0
  %3137 = vmatprep.subr.mxu0 0.0
  %3138 = vmatpush1.msra.mxu0 0.0
  %3139 = vmatprep.subr.mxu0 0.0
  %3140 = vmatpush1.msra.mxu0 0.0
  %3141 = vmatprep.subr.mxu0 0.0
  %3142 = vmatpush1.msra.mxu0 0.0
  %3143 = vmatprep.subr.mxu0 0.0
  %3144 = vmatpush1.msra.mxu0 0.0
  %3145 = vmatprep.subr.mxu0 0.0
  %3146 = vmatpush1.msra.mxu0 0.0
  %3147 = vmatprep.subr.mxu0 0.0
  %3148 = vmatpush1.msra.mxu0 0.0
  %3149 = vmatprep.subr.mxu0 0.0
  %3150 = vmatpush1.msra.mxu0 0.0
  %3151 = vmatprep.subr.mxu0 0.0
  %3152 = vmatpush1.msra.mxu0 0.0
  %3153 = vmatprep.mubr.f32.mxu0 0.0
  %3154 = vmatmul.mubr.f32.gmra.mrb[0].mxu0 %v3084
  %v3155 = vpop.f32.mrb[0].mxu0
  %v3156 = vadd.f32 0.0, %v3155
  %v3157 = vpop.f32.mrb[0].mxu0
  %3158 = vmatprep.mubr.f32.mxu0 0.0
  %3159 = vmatmul.mubr.f32.gmra.mrb[0].mxu0 %v3087
  %v3160 = vpop.f32.mrb[0].mxu0
  %v3161 = vadd.f32 0.0, %v3160
  %v3162 = vpop.f32.mrb[0].mxu0
  %3163 = vdwg.mxu0
  %3166 = vrot.lane.b32.xlu0 %v2744, 8
  %v3167 = vpop.permute.xlu0 %3166
  %3168 = vrot.lane.b32.xlu0 %v2749, 8
  %v3169 = vpop.permute.xlu0 %3168
  %3174 = vrot.lane.b32.xlu0 %v2950, 16
  %v3175 = vpop.permute.xlu0 %3174
  %3176 = vrot.lane.b32.xlu0 %v2955, 16
  %v3177 = vpop.permute.xlu0 %3176
  %3182 = vrot.lane.b32.xlu0 %v3156, 24
  %v3183 = vpop.permute.xlu0 %3182
  %3184 = vrot.lane.b32.xlu0 %v3161, 24
  %v3185 = vpop.permute.xlu0 %3184
  %v3188 = vsel %vm127, %v2538, %v3167
  %v3189 = vsel %vm127, %v2543, %v3169
  %v3190 = vsel %vm219, %v3188, %v3175
  %v3191 = vsel %vm219, %v3189, %v3177
  %v3192 = vsel %vm977, %v3190, %v3183
  %v3193 = vsel %vm977, %v3191, %v3185
  %3196 = vrot.lane.b32.xlu0 %v2336, 96
  %v3197 = vpop.permute.xlu0 %3196
  %3198 = vrot.lane.b32.xlu0 %v2339, 96
  %v3199 = vpop.permute.xlu0 %3198
  %v3200 = vsel %vm127, %v2336, 0
  %v3202 = vsel %vm127, %v2339, 0
  %v3204 = vsel %vm127, %v3197, 0
  %v3206 = vsel %vm127, %v3199, 0
  %3208 = vmatprep.subr.mxu0 0.0
  %3209 = vmatpush1.xpose.msra.mxu0 %v3204
  %3210 = vmatprep.subr.mxu0 0.0
  %3211 = vmatpush1.xpose.msra.mxu0 %v3206
  %3212 = vmatprep.subr.mxu0 0.0
  %3213 = vmatpush1.xpose.msra.mxu0 0.0
  %3214 = vmatprep.subr.mxu0 0.0
  %3215 = vmatpush1.xpose.msra.mxu0 0.0
  %3216 = vmatprep.subr.mxu0 0.0
  %3217 = vmatpush1.xpose.msra.mxu0 0.0
  %3218 = vmatprep.subr.mxu0 0.0
  %3219 = vmatpush1.xpose.msra.mxu0 0.0
  %3220 = vmatprep.subr.mxu0 0.0
  %3221 = vmatpush1.xpose.msra.mxu0 0.0
  %3222 = vmatprep.subr.mxu0 0.0
  %3223 = vmatpush1.xpose.msra.mxu0 0.0
  %3224 = vmatprep.subr.mxu0 0.0
  %3225 = vmatpush1.xpose.msra.mxu0 0.0
  %3226 = vmatprep.subr.mxu0 0.0
  %3227 = vmatpush1.xpose.msra.mxu0 0.0
  %3228 = vmatprep.subr.mxu0 0.0
  %3229 = vmatpush1.xpose.msra.mxu0 0.0
  %3230 = vmatprep.subr.mxu0 0.0
  %3231 = vmatpush1.xpose.msra.mxu0 0.0
  %3232 = vmatprep.subr.mxu0 0.0
  %3233 = vmatpush1.xpose.msra.mxu0 0.0
  %3234 = vmatprep.subr.mxu0 0.0
  %3235 = vmatpush1.xpose.msra.mxu0 0.0
  %3236 = vmatprep.subr.mxu0 0.0
  %3237 = vmatpush1.xpose.msra.mxu0 0.0
  %3238 = vmatprep.subr.mxu0 0.0
  %3239 = vmatpush1.xpose.msra.mxu0 0.0
  %3240 = vmatprep.subr.mxu0 0.0
  %3241 = vmatpush1.xpose.msra.mxu0 0.0
  %3242 = vmatprep.subr.mxu0 0.0
  %3243 = vmatpush1.xpose.msra.mxu0 0.0
  %3244 = vmatprep.subr.mxu0 0.0
  %3245 = vmatpush1.xpose.msra.mxu0 0.0
  %3246 = vmatprep.subr.mxu0 0.0
  %3247 = vmatpush1.xpose.msra.mxu0 0.0
  %3248 = vmatprep.subr.mxu0 0.0
  %3249 = vmatpush1.xpose.msra.mxu0 0.0
  %3250 = vmatprep.subr.mxu0 0.0
  %3251 = vmatpush1.xpose.msra.mxu0 0.0
  %3252 = vmatprep.subr.mxu0 0.0
  %3253 = vmatpush1.xpose.msra.mxu0 0.0
  %3254 = vmatprep.subr.mxu0 0.0
  %3255 = vmatpush1.xpose.msra.mxu0 0.0
  %3256 = vmatprep.subr.mxu0 0.0
  %3257 = vmatpush1.xpose.msra.mxu0 0.0
  %3258 = vmatprep.subr.mxu0 0.0
  %3259 = vmatpush1.xpose.msra.mxu0 0.0
  %3260 = vmatprep.subr.mxu0 0.0
  %3261 = vmatpush1.xpose.msra.mxu0 0.0
  %3262 = vmatprep.subr.mxu0 0.0
  %3263 = vmatpush1.xpose.msra.mxu0 0.0
  %3264 = vmatprep.subr.mxu0 0.0
  %3265 = vmatpush1.xpose.msra.mxu0 0.0
  %3266 = vmatprep.subr.mxu0 0.0
  %3267 = vmatpush1.xpose.msra.mxu0 0.0
  %3268 = vmatprep.subr.mxu0 0.0
  %3269 = vmatpush1.xpose.msra.mxu0 0.0
  %3270 = vmatprep.subr.mxu0 0.0
  %3271 = vmatpush1.xpose.msra.mxu0 0.0
  %3272 = vmatprep.mubr.f32.mxu0 0.0
  %3273 = vmatmul.mubr.f32.gmra.mrb[0].mxu0 %v3200
  %v3274 = vpop.f32.mrb[0].mxu0
  %v3275 = vadd.f32 0.0, %v3274
  %v3276 = vpop.f32.mrb[0].mxu0
  %3277 = vmatprep.mubr.f32.mxu0 0.0
  %3278 = vmatmul.mubr.f32.gmra.mrb[0].mxu0 %v3202
  %v3279 = vpop.f32.mrb[0].mxu0
  %v3280 = vadd.f32 0.0, %v3279
  %v3281 = vpop.f32.mrb[0].mxu0
  %3282 = vdwg.mxu0
  %v3283 = vmul.f32 %v3275, 0.35355338
  %v3284 = vmul.f32 %v3280, 0.35355338
  %v3285 = vadd.f32 %v3283, %v1074
  %v3286 = vadd.f32 %v3284, %v1074
  %v3287 = vsel %vm219, %v3285, -inf
  %3288 = vmax.xlane.f32.xlu0 %v3287
  %v3289 = vpop.xlane.xlu0 %3288
  %v3290 = vsel %vm219, %v3286, -inf
  %3291 = vmax.xlane.f32.xlu0 %v3290
  %v3292 = vpop.xlane.xlu0 %3291
  %v3293 = vsub.f32 %v3285, %v3289
  %v3294 = vsub.f32 %v3286, %v3292
  %v3295 = vmul.f32 %v3293, 1.442695
  %v3296 = vpow.pop %v3295
  %v3297 = vmul.f32 %v3294, 1.442695
  %v3298 = vpow.pop %v3297
  %v3299 = vsel %vm219, %v3296, 0.0
  %3300 = vadd.xlane.f32.xlu0 %v3299
  %v3301 = vpop.xlane.xlu0 %3300
  %v3302 = vsel %vm219, %v3298, 0.0
  %3303 = vadd.xlane.f32.xlu0 %v3302
  %v3304 = vpop.xlane.xlu0 %3303
  %v3305 = vadd.f32 %v3301, 1e-20
  %v3306 = vadd.f32 %v3304, 1e-20
  %v3307 = vrcp.pop %v3305
  %v3308 = vrcp.pop %v3306
  %v3309 = vmul.f32 %v3296, %v3307
  %v3310 = vmul.f32 %v3298, %v3308
  %3311 = vrot.lane.b32.xlu0 %v2336, 64
  %v3312 = vpop.permute.xlu0 %3311
  %3313 = vrot.lane.b32.xlu0 %v2339, 64
  %v3314 = vpop.permute.xlu0 %3313
  %v3318 = vsel %vm219, %v3309, 0
  %v3321 = vsel %vm219, %v3310, 0
  %3323 = vmatprep.subr.mxu0 0.0
  %3324 = vmatpush1.msra.mxu0 %v3312
  %3325 = vmatprep.subr.mxu0 0.0
  %3326 = vmatpush1.msra.mxu0 %v3314
  %3327 = vmatprep.subr.mxu0 0.0
  %3328 = vmatpush1.msra.mxu0 0.0
  %3329 = vmatprep.subr.mxu0 0.0
  %3330 = vmatpush1.msra.mxu0 0.0
  %3331 = vmatprep.subr.mxu0 0.0
  %3332 = vmatpush1.msra.mxu0 0.0
  %3333 = vmatprep.subr.mxu0 0.0
  %3334 = vmatpush1.msra.mxu0 0.0
  %3335 = vmatprep.subr.mxu0 0.0
  %3336 = vmatpush1.msra.mxu0 0.0
  %3337 = vmatprep.subr.mxu0 0.0
  %3338 = vmatpush1.msra.mxu0 0.0
  %3339 = vmatprep.subr.mxu0 0.0
  %3340 = vmatpush1.msra.mxu0 0.0
  %3341 = vmatprep.subr.mxu0 0.0
  %3342 = vmatpush1.msra.mxu0 0.0
  %3343 = vmatprep.subr.mxu0 0.0
  %3344 = vmatpush1.msra.mxu0 0.0
  %3345 = vmatprep.subr.mxu0 0.0
  %3346 = vmatpush1.msra.mxu0 0.0
  %3347 = vmatprep.subr.mxu0 0.0
  %3348 = vmatpush1.msra.mxu0 0.0
  %3349 = vmatprep.subr.mxu0 0.0
  %3350 = vmatpush1.msra.mxu0 0.0
  %3351 = vmatprep.subr.mxu0 0.0
  %3352 = vmatpush1.msra.mxu0 0.0
  %3353 = vmatprep.subr.mxu0 0.0
  %3354 = vmatpush1.msra.mxu0 0.0
  %3355 = vmatprep.subr.mxu0 0.0
  %3356 = vmatpush1.msra.mxu0 0.0
  %3357 = vmatprep.subr.mxu0 0.0
  %3358 = vmatpush1.msra.mxu0 0.0
  %3359 = vmatprep.subr.mxu0 0.0
  %3360 = vmatpush1.msra.mxu0 0.0
  %3361 = vmatprep.subr.mxu0 0.0
  %3362 = vmatpush1.msra.mxu0 0.0
  %3363 = vmatprep.subr.mxu0 0.0
  %3364 = vmatpush1.msra.mxu0 0.0
  %3365 = vmatprep.subr.mxu0 0.0
  %3366 = vmatpush1.msra.mxu0 0.0
  %3367 = vmatprep.subr.mxu0 0.0
  %3368 = vmatpush1.msra.mxu0 0.0
  %3369 = vmatprep.subr.mxu0 0.0
  %3370 = vmatpush1.msra.mxu0 0.0
  %3371 = vmatprep.subr.mxu0 0.0
  %3372 = vmatpush1.msra.mxu0 0.0
  %3373 = vmatprep.subr.mxu0 0.0
  %3374 = vmatpush1.msra.mxu0 0.0
  %3375 = vmatprep.subr.mxu0 0.0
  %3376 = vmatpush1.msra.mxu0 0.0
  %3377 = vmatprep.subr.mxu0 0.0
  %3378 = vmatpush1.msra.mxu0 0.0
  %3379 = vmatprep.subr.mxu0 0.0
  %3380 = vmatpush1.msra.mxu0 0.0
  %3381 = vmatprep.subr.mxu0 0.0
  %3382 = vmatpush1.msra.mxu0 0.0
  %3383 = vmatprep.subr.mxu0 0.0
  %3384 = vmatpush1.msra.mxu0 0.0
  %3385 = vmatprep.subr.mxu0 0.0
  %3386 = vmatpush1.msra.mxu0 0.0
  %3387 = vmatprep.mubr.f32.mxu0 0.0
  %3388 = vmatmul.mubr.f32.gmra.mrb[0].mxu0 %v3318
  %v3389 = vpop.f32.mrb[0].mxu0
  %v3390 = vadd.f32 0.0, %v3389
  %v3391 = vpop.f32.mrb[0].mxu0
  %3392 = vmatprep.mubr.f32.mxu0 0.0
  %3393 = vmatmul.mubr.f32.gmra.mrb[0].mxu0 %v3321
  %v3394 = vpop.f32.mrb[0].mxu0
  %v3395 = vadd.f32 0.0, %v3394
  %v3396 = vpop.f32.mrb[0].mxu0
  %3397 = vdwg.mxu0
  %3398 = vrot.lane.b32.xlu0 %v2336, 120
  %v3399 = vpop.permute.xlu0 %3398
  %3400 = vrot.lane.b32.xlu0 %v2339, 120
  %v3401 = vpop.permute.xlu0 %3400
  %3402 = vrot.lane.b32.xlu0 %v2336, 88
  %v3403 = vpop.permute.xlu0 %3402
  %3404 = vrot.lane.b32.xlu0 %v2339, 88
  %v3405 = vpop.permute.xlu0 %3404
  %v3406 = vsel %vm127, %v3399, 0
  %v3408 = vsel %vm127, %v3401, 0
  %v3410 = vsel %vm127, %v3403, 0
  %v3412 = vsel %vm127, %v3405, 0
  %3414 = vmatprep.subr.mxu0 0.0
  %3415 = vmatpush1.xpose.msra.mxu0 %v3410
  %3416 = vmatprep.subr.mxu0 0.0
  %3417 = vmatpush1.xpose.msra.mxu0 %v3412
  %3418 = vmatprep.subr.mxu0 0.0
  %3419 = vmatpush1.xpose.msra.mxu0 0.0
  %3420 = vmatprep.subr.mxu0 0.0
  %3421 = vmatpush1.xpose.msra.mxu0 0.0
  %3422 = vmatprep.subr.mxu0 0.0
  %3423 = vmatpush1.xpose.msra.mxu0 0.0
  %3424 = vmatprep.subr.mxu0 0.0
  %3425 = vmatpush1.xpose.msra.mxu0 0.0
  %3426 = vmatprep.subr.mxu0 0.0
  %3427 = vmatpush1.xpose.msra.mxu0 0.0
  %3428 = vmatprep.subr.mxu0 0.0
  %3429 = vmatpush1.xpose.msra.mxu0 0.0
  %3430 = vmatprep.subr.mxu0 0.0
  %3431 = vmatpush1.xpose.msra.mxu0 0.0
  %3432 = vmatprep.subr.mxu0 0.0
  %3433 = vmatpush1.xpose.msra.mxu0 0.0
  %3434 = vmatprep.subr.mxu0 0.0
  %3435 = vmatpush1.xpose.msra.mxu0 0.0
  %3436 = vmatprep.subr.mxu0 0.0
  %3437 = vmatpush1.xpose.msra.mxu0 0.0
  %3438 = vmatprep.subr.mxu0 0.0
  %3439 = vmatpush1.xpose.msra.mxu0 0.0
  %3440 = vmatprep.subr.mxu0 0.0
  %3441 = vmatpush1.xpose.msra.mxu0 0.0
  %3442 = vmatprep.subr.mxu0 0.0
  %3443 = vmatpush1.xpose.msra.mxu0 0.0
  %3444 = vmatprep.subr.mxu0 0.0
  %3445 = vmatpush1.xpose.msra.mxu0 0.0
  %3446 = vmatprep.subr.mxu0 0.0
  %3447 = vmatpush1.xpose.msra.mxu0 0.0
  %3448 = vmatprep.subr.mxu0 0.0
  %3449 = vmatpush1.xpose.msra.mxu0 0.0
  %3450 = vmatprep.subr.mxu0 0.0
  %3451 = vmatpush1.xpose.msra.mxu0 0.0
  %3452 = vmatprep.subr.mxu0 0.0
  %3453 = vmatpush1.xpose.msra.mxu0 0.0
  %3454 = vmatprep.subr.mxu0 0.0
  %3455 = vmatpush1.xpose.msra.mxu0 0.0
  %3456 = vmatprep.subr.mxu0 0.0
  %3457 = vmatpush1.xpose.msra.mxu0 0.0
  %3458 = vmatprep.subr.mxu0 0.0
  %3459 = vmatpush1.xpose.msra.mxu0 0.0
  %3460 = vmatprep.subr.mxu0 0.0
  %3461 = vmatpush1.xpose.msra.mxu0 0.0
  %3462 = vmatprep.subr.mxu0 0.0
  %3463 = vmatpush1.xpose.msra.mxu0 0.0
  %3464 = vmatprep.subr.mxu0 0.0
  %3465 = vmatpush1.xpose.msra.mxu0 0.0
  %3466 = vmatprep.subr.mxu0 0.0
  %3467 = vmatpush1.xpose.msra.mxu0 0.0
  %3468 = vmatprep.subr.mxu0 0.0
  %3469 = vmatpush1.xpose.msra.mxu0 0.0
  %3470 = vmatprep.subr.mxu0 0.0
  %3471 = vmatpush1.xpose.msra.mxu0 0.0
  %3472 = vmatprep.subr.mxu0 0.0
  %3473 = vmatpush1.xpose.msra.mxu0 0.0
  %3474 = vmatprep.subr.mxu0 0.0
  %3475 = vmatpush1.xpose.msra.mxu0 0.0
  %3476 = vmatprep.subr.mxu0 0.0
  %3477 = vmatpush1.xpose.msra.mxu0 0.0
  %3478 = vmatprep.mubr.f32.mxu0 0.0
  %3479 = vmatmul.mubr.f32.gmra.mrb[0].mxu0 %v3406
  %v3480 = vpop.f32.mrb[0].mxu0
  %v3481 = vadd.f32 0.0, %v3480
  %v3482 = vpop.f32.mrb[0].mxu0
  %3483 = vmatprep.mubr.f32.mxu0 0.0
  %3484 = vmatmul.mubr.f32.gmra.mrb[0].mxu0 %v3408
  %v3485 = vpop.f32.mrb[0].mxu0
  %v3486 = vadd.f32 0.0, %v3485
  %v3487 = vpop.f32.mrb[0].mxu0
  %3488 = vdwg.mxu0
  %v3489 = vmul.f32 %v3481, 0.35355338
  %v3490 = vmul.f32 %v3486, 0.35355338
  %v3491 = vadd.f32 %v3489, %v1074
  %v3492 = vadd.f32 %v3490, %v1074
  %v3493 = vsel %vm219, %v3491, -inf
  %3494 = vmax.xlane.f32.xlu0 %v3493
  %v3495 = vpop.xlane.xlu0 %3494
  %v3496 = vsel %vm219, %v3492, -inf
  %3497 = vmax.xlane.f32.xlu0 %v3496
  %v3498 = vpop.xlane.xlu0 %3497
  %v3499 = vsub.f32 %v3491, %v3495
  %v3500 = vsub.f32 %v3492, %v3498
  %v3501 = vmul.f32 %v3499, 1.442695
  %v3502 = vpow.pop %v3501
  %v3503 = vmul.f32 %v3500, 1.442695
  %v3504 = vpow.pop %v3503
  %v3505 = vsel %vm219, %v3502, 0.0
  %3506 = vadd.xlane.f32.xlu0 %v3505
  %v3507 = vpop.xlane.xlu0 %3506
  %v3508 = vsel %vm219, %v3504, 0.0
  %3509 = vadd.xlane.f32.xlu0 %v3508
  %v3510 = vpop.xlane.xlu0 %3509
  %v3511 = vadd.f32 %v3507, 1e-20
  %v3512 = vadd.f32 %v3510, 1e-20
  %v3513 = vrcp.pop %v3511
  %v3514 = vrcp.pop %v3512
  %v3515 = vmul.f32 %v3502, %v3513
  %v3516 = vmul.f32 %v3504, %v3514
  %3517 = vrot.lane.b32.xlu0 %v2336, 56
  %v3518 = vpop.permute.xlu0 %3517
  %3519 = vrot.lane.b32.xlu0 %v2339, 56
  %v3520 = vpop.permute.xlu0 %3519
  %v3524 = vsel %vm219, %v3515, 0
  %v3527 = vsel %vm219, %v3516, 0
  %3529 = vmatprep.subr.mxu0 0.0
  %3530 = vmatpush1.msra.mxu0 %v3518
  %3531 = vmatprep.subr.mxu0 0.0
  %3532 = vmatpush1.msra.mxu0 %v3520
  %3533 = vmatprep.subr.mxu0 0.0
  %3534 = vmatpush1.msra.mxu0 0.0
  %3535 = vmatprep.subr.mxu0 0.0
  %3536 = vmatpush1.msra.mxu0 0.0
  %3537 = vmatprep.subr.mxu0 0.0
  %3538 = vmatpush1.msra.mxu0 0.0
  %3539 = vmatprep.subr.mxu0 0.0
  %3540 = vmatpush1.msra.mxu0 0.0
  %3541 = vmatprep.subr.mxu0 0.0
  %3542 = vmatpush1.msra.mxu0 0.0
  %3543 = vmatprep.subr.mxu0 0.0
  %3544 = vmatpush1.msra.mxu0 0.0
  %3545 = vmatprep.subr.mxu0 0.0
  %3546 = vmatpush1.msra.mxu0 0.0
  %3547 = vmatprep.subr.mxu0 0.0
  %3548 = vmatpush1.msra.mxu0 0.0
  %3549 = vmatprep.subr.mxu0 0.0
  %3550 = vmatpush1.msra.mxu0 0.0
  %3551 = vmatprep.subr.mxu0 0.0
  %3552 = vmatpush1.msra.mxu0 0.0
  %3553 = vmatprep.subr.mxu0 0.0
  %3554 = vmatpush1.msra.mxu0 0.0
  %3555 = vmatprep.subr.mxu0 0.0
  %3556 = vmatpush1.msra.mxu0 0.0
  %3557 = vmatprep.subr.mxu0 0.0
  %3558 = vmatpush1.msra.mxu0 0.0
  %3559 = vmatprep.subr.mxu0 0.0
  %3560 = vmatpush1.msra.mxu0 0.0
  %3561 = vmatprep.subr.mxu0 0.0
  %3562 = vmatpush1.msra.mxu0 0.0
  %3563 = vmatprep.subr.mxu0 0.0
  %3564 = vmatpush1.msra.mxu0 0.0
  %3565 = vmatprep.subr.mxu0 0.0
  %3566 = vmatpush1.msra.mxu0 0.0
  %3567 = vmatprep.subr.mxu0 0.0
  %3568 = vmatpush1.msra.mxu0 0.0
  %3569 = vmatprep.subr.mxu0 0.0
  %3570 = vmatpush1.msra.mxu0 0.0
  %3571 = vmatprep.subr.mxu0 0.0
  %3572 = vmatpush1.msra.mxu0 0.0
  %3573 = vmatprep.subr.mxu0 0.0
  %3574 = vmatpush1.msra.mxu0 0.0
  %3575 = vmatprep.subr.mxu0 0.0
  %3576 = vmatpush1.msra.mxu0 0.0
  %3577 = vmatprep.subr.mxu0 0.0
  %3578 = vmatpush1.msra.mxu0 0.0
  %3579 = vmatprep.subr.mxu0 0.0
  %3580 = vmatpush1.msra.mxu0 0.0
  %3581 = vmatprep.subr.mxu0 0.0
  %3582 = vmatpush1.msra.mxu0 0.0
  %3583 = vmatprep.subr.mxu0 0.0
  %3584 = vmatpush1.msra.mxu0 0.0
  %3585 = vmatprep.subr.mxu0 0.0
  %3586 = vmatpush1.msra.mxu0 0.0
  %3587 = vmatprep.subr.mxu0 0.0
  %3588 = vmatpush1.msra.mxu0 0.0
  %3589 = vmatprep.subr.mxu0 0.0
  %3590 = vmatpush1.msra.mxu0 0.0
  %3591 = vmatprep.subr.mxu0 0.0
  %3592 = vmatpush1.msra.mxu0 0.0
  %3593 = vmatprep.mubr.f32.mxu0 0.0
  %3594 = vmatmul.mubr.f32.gmra.mrb[0].mxu0 %v3524
  %v3595 = vpop.f32.mrb[0].mxu0
  %v3596 = vadd.f32 0.0, %v3595
  %v3597 = vpop.f32.mrb[0].mxu0
  %3598 = vmatprep.mubr.f32.mxu0 0.0
  %3599 = vmatmul.mubr.f32.gmra.mrb[0].mxu0 %v3527
  %v3600 = vpop.f32.mrb[0].mxu0
  %v3601 = vadd.f32 0.0, %v3600
  %v3602 = vpop.f32.mrb[0].mxu0
  %3603 = vdwg.mxu0
  %3604 = vrot.lane.b32.xlu0 %v2336, 112
  %v3605 = vpop.permute.xlu0 %3604
  %3606 = vrot.lane.b32.xlu0 %v2339, 112
  %v3607 = vpop.permute.xlu0 %3606
  %3608 = vrot.lane.b32.xlu0 %v2336, 80
  %v3609 = vpop.permute.xlu0 %3608
  %3610 = vrot.lane.b32.xlu0 %v2339, 80
  %v3611 = vpop.permute.xlu0 %3610
  %v3612 = vsel %vm127, %v3605, 0
  %v3614 = vsel %vm127, %v3607, 0
  %v3616 = vsel %vm127, %v3609, 0
  %v3618 = vsel %vm127, %v3611, 0
  %3620 = vmatprep.subr.mxu0 0.0
  %3621 = vmatpush1.xpose.msra.mxu0 %v3616
  %3622 = vmatprep.subr.mxu0 0.0
  %3623 = vmatpush1.xpose.msra.mxu0 %v3618
  %3624 = vmatprep.subr.mxu0 0.0
  %3625 = vmatpush1.xpose.msra.mxu0 0.0
  %3626 = vmatprep.subr.mxu0 0.0
  %3627 = vmatpush1.xpose.msra.mxu0 0.0
  %3628 = vmatprep.subr.mxu0 0.0
  %3629 = vmatpush1.xpose.msra.mxu0 0.0
  %3630 = vmatprep.subr.mxu0 0.0
  %3631 = vmatpush1.xpose.msra.mxu0 0.0
  %3632 = vmatprep.subr.mxu0 0.0
  %3633 = vmatpush1.xpose.msra.mxu0 0.0
  %3634 = vmatprep.subr.mxu0 0.0
  %3635 = vmatpush1.xpose.msra.mxu0 0.0
  %3636 = vmatprep.subr.mxu0 0.0
  %3637 = vmatpush1.xpose.msra.mxu0 0.0
  %3638 = vmatprep.subr.mxu0 0.0
  %3639 = vmatpush1.xpose.msra.mxu0 0.0
  %3640 = vmatprep.subr.mxu0 0.0
  %3641 = vmatpush1.xpose.msra.mxu0 0.0
  %3642 = vmatprep.subr.mxu0 0.0
  %3643 = vmatpush1.xpose.msra.mxu0 0.0
  %3644 = vmatprep.subr.mxu0 0.0
  %3645 = vmatpush1.xpose.msra.mxu0 0.0
  %3646 = vmatprep.subr.mxu0 0.0
  %3647 = vmatpush1.xpose.msra.mxu0 0.0
  %3648 = vmatprep.subr.mxu0 0.0
  %3649 = vmatpush1.xpose.msra.mxu0 0.0
  %3650 = vmatprep.subr.mxu0 0.0
  %3651 = vmatpush1.xpose.msra.mxu0 0.0
  %3652 = vmatprep.subr.mxu0 0.0
  %3653 = vmatpush1.xpose.msra.mxu0 0.0
  %3654 = vmatprep.subr.mxu0 0.0
  %3655 = vmatpush1.xpose.msra.mxu0 0.0
  %3656 = vmatprep.subr.mxu0 0.0
  %3657 = vmatpush1.xpose.msra.mxu0 0.0
  %3658 = vmatprep.subr.mxu0 0.0
  %3659 = vmatpush1.xpose.msra.mxu0 0.0
  %3660 = vmatprep.subr.mxu0 0.0
  %3661 = vmatpush1.xpose.msra.mxu0 0.0
  %3662 = vmatprep.subr.mxu0 0.0
  %3663 = vmatpush1.xpose.msra.mxu0 0.0
  %3664 = vmatprep.subr.mxu0 0.0
  %3665 = vmatpush1.xpose.msra.mxu0 0.0
  %3666 = vmatprep.subr.mxu0 0.0
  %3667 = vmatpush1.xpose.msra.mxu0 0.0
  %3668 = vmatprep.subr.mxu0 0.0
  %3669 = vmatpush1.xpose.msra.mxu0 0.0
  %3670 = vmatprep.subr.mxu0 0.0
  %3671 = vmatpush1.xpose.msra.mxu0 0.0
  %3672 = vmatprep.subr.mxu0 0.0
  %3673 = vmatpush1.xpose.msra.mxu0 0.0
  %3674 = vmatprep.subr.mxu0 0.0
  %3675 = vmatpush1.xpose.msra.mxu0 0.0
  %3676 = vmatprep.subr.mxu0 0.0
  %3677 = vmatpush1.xpose.msra.mxu0 0.0
  %3678 = vmatprep.subr.mxu0 0.0
  %3679 = vmatpush1.xpose.msra.mxu0 0.0
  %3680 = vmatprep.subr.mxu0 0.0
  %3681 = vmatpush1.xpose.msra.mxu0 0.0
  %3682 = vmatprep.subr.mxu0 0.0
  %3683 = vmatpush1.xpose.msra.mxu0 0.0
  %3684 = vmatprep.mubr.f32.mxu0 0.0
  %3685 = vmatmul.mubr.f32.gmra.mrb[0].mxu0 %v3612
  %v3686 = vpop.f32.mrb[0].mxu0
  %v3687 = vadd.f32 0.0, %v3686
  %v3688 = vpop.f32.mrb[0].mxu0
  %3689 = vmatprep.mubr.f32.mxu0 0.0
  %3690 = vmatmul.mubr.f32.gmra.mrb[0].mxu0 %v3614
  %v3691 = vpop.f32.mrb[0].mxu0
  %v3692 = vadd.f32 0.0, %v3691
  %v3693 = vpop.f32.mrb[0].mxu0
  %3694 = vdwg.mxu0
  %v3695 = vmul.f32 %v3687, 0.35355338
  %v3696 = vmul.f32 %v3692, 0.35355338
  %v3697 = vadd.f32 %v3695, %v1074
  %v3698 = vadd.f32 %v3696, %v1074
  %v3699 = vsel %vm219, %v3697, -inf
  %3700 = vmax.xlane.f32.xlu0 %v3699
  %v3701 = vpop.xlane.xlu0 %3700
  %v3702 = vsel %vm219, %v3698, -inf
  %3703 = vmax.xlane.f32.xlu0 %v3702
  %v3704 = vpop.xlane.xlu0 %3703
  %v3705 = vsub.f32 %v3697, %v3701
  %v3706 = vsub.f32 %v3698, %v3704
  %v3707 = vmul.f32 %v3705, 1.442695
  %v3708 = vpow.pop %v3707
  %v3709 = vmul.f32 %v3706, 1.442695
  %v3710 = vpow.pop %v3709
  %v3711 = vsel %vm219, %v3708, 0.0
  %3712 = vadd.xlane.f32.xlu0 %v3711
  %v3713 = vpop.xlane.xlu0 %3712
  %v3714 = vsel %vm219, %v3710, 0.0
  %3715 = vadd.xlane.f32.xlu0 %v3714
  %v3716 = vpop.xlane.xlu0 %3715
  %v3717 = vadd.f32 %v3713, 1e-20
  %v3718 = vadd.f32 %v3716, 1e-20
  %v3719 = vrcp.pop %v3717
  %v3720 = vrcp.pop %v3718
  %v3721 = vmul.f32 %v3708, %v3719
  %v3722 = vmul.f32 %v3710, %v3720
  %3723 = vrot.lane.b32.xlu0 %v2336, 48
  %v3724 = vpop.permute.xlu0 %3723
  %3725 = vrot.lane.b32.xlu0 %v2339, 48
  %v3726 = vpop.permute.xlu0 %3725
  %v3730 = vsel %vm219, %v3721, 0
  %v3733 = vsel %vm219, %v3722, 0
  %3735 = vmatprep.subr.mxu0 0.0
  %3736 = vmatpush1.msra.mxu0 %v3724
  %3737 = vmatprep.subr.mxu0 0.0
  %3738 = vmatpush1.msra.mxu0 %v3726
  %3739 = vmatprep.subr.mxu0 0.0
  %3740 = vmatpush1.msra.mxu0 0.0
  %3741 = vmatprep.subr.mxu0 0.0
  %3742 = vmatpush1.msra.mxu0 0.0
  %3743 = vmatprep.subr.mxu0 0.0
  %3744 = vmatpush1.msra.mxu0 0.0
  %3745 = vmatprep.subr.mxu0 0.0
  %3746 = vmatpush1.msra.mxu0 0.0
  %3747 = vmatprep.subr.mxu0 0.0
  %3748 = vmatpush1.msra.mxu0 0.0
  %3749 = vmatprep.subr.mxu0 0.0
  %3750 = vmatpush1.msra.mxu0 0.0
  %3751 = vmatprep.subr.mxu0 0.0
  %3752 = vmatpush1.msra.mxu0 0.0
  %3753 = vmatprep.subr.mxu0 0.0
  %3754 = vmatpush1.msra.mxu0 0.0
  %3755 = vmatprep.subr.mxu0 0.0
  %3756 = vmatpush1.msra.mxu0 0.0
  %3757 = vmatprep.subr.mxu0 0.0
  %3758 = vmatpush1.msra.mxu0 0.0
  %3759 = vmatprep.subr.mxu0 0.0
  %3760 = vmatpush1.msra.mxu0 0.0
  %3761 = vmatprep.subr.mxu0 0.0
  %3762 = vmatpush1.msra.mxu0 0.0
  %3763 = vmatprep.subr.mxu0 0.0
  %3764 = vmatpush1.msra.mxu0 0.0
  %3765 = vmatprep.subr.mxu0 0.0
  %3766 = vmatpush1.msra.mxu0 0.0
  %3767 = vmatprep.subr.mxu0 0.0
  %3768 = vmatpush1.msra.mxu0 0.0
  %3769 = vmatprep.subr.mxu0 0.0
  %3770 = vmatpush1.msra.mxu0 0.0
  %3771 = vmatprep.subr.mxu0 0.0
  %3772 = vmatpush1.msra.mxu0 0.0
  %3773 = vmatprep.subr.mxu0 0.0
  %3774 = vmatpush1.msra.mxu0 0.0
  %3775 = vmatprep.subr.mxu0 0.0
  %3776 = vmatpush1.msra.mxu0 0.0
  %3777 = vmatprep.subr.mxu0 0.0
  %3778 = vmatpush1.msra.mxu0 0.0
  %3779 = vmatprep.subr.mxu0 0.0
  %3780 = vmatpush1.msra.mxu0 0.0
  %3781 = vmatprep.subr.mxu0 0.0
  %3782 = vmatpush1.msra.mxu0 0.0
  %3783 = vmatprep.subr.mxu0 0.0
  %3784 = vmatpush1.msra.mxu0 0.0
  %3785 = vmatprep.subr.mxu0 0.0
  %3786 = vmatpush1.msra.mxu0 0.0
  %3787 = vmatprep.subr.mxu0 0.0
  %3788 = vmatpush1.msra.mxu0 0.0
  %3789 = vmatprep.subr.mxu0 0.0
  %3790 = vmatpush1.msra.mxu0 0.0
  %3791 = vmatprep.subr.mxu0 0.0
  %3792 = vmatpush1.msra.mxu0 0.0
  %3793 = vmatprep.subr.mxu0 0.0
  %3794 = vmatpush1.msra.mxu0 0.0
  %3795 = vmatprep.subr.mxu0 0.0
  %3796 = vmatpush1.msra.mxu0 0.0
  %3797 = vmatprep.subr.mxu0 0.0
  %3798 = vmatpush1.msra.mxu0 0.0
  %3799 = vmatprep.mubr.f32.mxu0 0.0
  %3800 = vmatmul.mubr.f32.gmra.mrb[0].mxu0 %v3730
  %v3801 = vpop.f32.mrb[0].mxu0
  %v3802 = vadd.f32 0.0, %v3801
  %v3803 = vpop.f32.mrb[0].mxu0
  %3804 = vmatprep.mubr.f32.mxu0 0.0
  %3805 = vmatmul.mubr.f32.gmra.mrb[0].mxu0 %v3733
  %v3806 = vpop.f32.mrb[0].mxu0
  %v3807 = vadd.f32 0.0, %v3806
  %v3808 = vpop.f32.mrb[0].mxu0
  %3809 = vdwg.mxu0
  %3810 = vrot.lane.b32.xlu0 %v2336, 104
  %v3811 = vpop.permute.xlu0 %3810
  %3812 = vrot.lane.b32.xlu0 %v2339, 104
  %v3813 = vpop.permute.xlu0 %3812
  %3814 = vrot.lane.b32.xlu0 %v2336, 72
  %v3815 = vpop.permute.xlu0 %3814
  %3816 = vrot.lane.b32.xlu0 %v2339, 72
  %v3817 = vpop.permute.xlu0 %3816
  %v3818 = vsel %vm127, %v3811, 0
  %v3820 = vsel %vm127, %v3813, 0
  %v3822 = vsel %vm127, %v3815, 0
  %v3824 = vsel %vm127, %v3817, 0
  %3826 = vmatprep.subr.mxu0 0.0
  %3827 = vmatpush1.xpose.msra.mxu0 %v3822
  %3828 = vmatprep.subr.mxu0 0.0
  %3829 = vmatpush1.xpose.msra.mxu0 %v3824
  %3830 = vmatprep.subr.mxu0 0.0
  %3831 = vmatpush1.xpose.msra.mxu0 0.0
  %3832 = vmatprep.subr.mxu0 0.0
  %3833 = vmatpush1.xpose.msra.mxu0 0.0
  %3834 = vmatprep.subr.mxu0 0.0
  %3835 = vmatpush1.xpose.msra.mxu0 0.0
  %3836 = vmatprep.subr.mxu0 0.0
  %3837 = vmatpush1.xpose.msra.mxu0 0.0
  %3838 = vmatprep.subr.mxu0 0.0
  %3839 = vmatpush1.xpose.msra.mxu0 0.0
  %3840 = vmatprep.subr.mxu0 0.0
  %3841 = vmatpush1.xpose.msra.mxu0 0.0
  %3842 = vmatprep.subr.mxu0 0.0
  %3843 = vmatpush1.xpose.msra.mxu0 0.0
  %3844 = vmatprep.subr.mxu0 0.0
  %3845 = vmatpush1.xpose.msra.mxu0 0.0
  %3846 = vmatprep.subr.mxu0 0.0
  %3847 = vmatpush1.xpose.msra.mxu0 0.0
  %3848 = vmatprep.subr.mxu0 0.0
  %3849 = vmatpush1.xpose.msra.mxu0 0.0
  %3850 = vmatprep.subr.mxu0 0.0
  %3851 = vmatpush1.xpose.msra.mxu0 0.0
  %3852 = vmatprep.subr.mxu0 0.0
  %3853 = vmatpush1.xpose.msra.mxu0 0.0
  %3854 = vmatprep.subr.mxu0 0.0
  %3855 = vmatpush1.xpose.msra.mxu0 0.0
  %3856 = vmatprep.subr.mxu0 0.0
  %3857 = vmatpush1.xpose.msra.mxu0 0.0
  %3858 = vmatprep.subr.mxu0 0.0
  %3859 = vmatpush1.xpose.msra.mxu0 0.0
  %3860 = vmatprep.subr.mxu0 0.0
  %3861 = vmatpush1.xpose.msra.mxu0 0.0
  %3862 = vmatprep.subr.mxu0 0.0
  %3863 = vmatpush1.xpose.msra.mxu0 0.0
  %3864 = vmatprep.subr.mxu0 0.0
  %3865 = vmatpush1.xpose.msra.mxu0 0.0
  %3866 = vmatprep.subr.mxu0 0.0
  %3867 = vmatpush1.xpose.msra.mxu0 0.0
  %3868 = vmatprep.subr.mxu0 0.0
  %3869 = vmatpush1.xpose.msra.mxu0 0.0
  %3870 = vmatprep.subr.mxu0 0.0
  %3871 = vmatpush1.xpose.msra.mxu0 0.0
  %3872 = vmatprep.subr.mxu0 0.0
  %3873 = vmatpush1.xpose.msra.mxu0 0.0
  %3874 = vmatprep.subr.mxu0 0.0
  %3875 = vmatpush1.xpose.msra.mxu0 0.0
  %3876 = vmatprep.subr.mxu0 0.0
  %3877 = vmatpush1.xpose.msra.mxu0 0.0
  %3878 = vmatprep.subr.mxu0 0.0
  %3879 = vmatpush1.xpose.msra.mxu0 0.0
  %3880 = vmatprep.subr.mxu0 0.0
  %3881 = vmatpush1.xpose.msra.mxu0 0.0
  %3882 = vmatprep.subr.mxu0 0.0
  %3883 = vmatpush1.xpose.msra.mxu0 0.0
  %3884 = vmatprep.subr.mxu0 0.0
  %3885 = vmatpush1.xpose.msra.mxu0 0.0
  %3886 = vmatprep.subr.mxu0 0.0
  %3887 = vmatpush1.xpose.msra.mxu0 0.0
  %3888 = vmatprep.subr.mxu0 0.0
  %3889 = vmatpush1.xpose.msra.mxu0 0.0
  %3890 = vmatprep.mubr.f32.mxu0 0.0
  %3891 = vmatmul.mubr.f32.gmra.mrb[0].mxu0 %v3818
  %v3892 = vpop.f32.mrb[0].mxu0
  %v3893 = vadd.f32 0.0, %v3892
  %v3894 = vpop.f32.mrb[0].mxu0
  %3895 = vmatprep.mubr.f32.mxu0 0.0
  %3896 = vmatmul.mubr.f32.gmra.mrb[0].mxu0 %v3820
  %v3897 = vpop.f32.mrb[0].mxu0
  %v3898 = vadd.f32 0.0, %v3897
  %v3899 = vpop.f32.mrb[0].mxu0
  %3900 = vdwg.mxu0
  %v3901 = vmul.f32 %v3893, 0.35355338
  %v3902 = vmul.f32 %v3898, 0.35355338
  %v3903 = vadd.f32 %v3901, %v1074
  %v3904 = vadd.f32 %v3902, %v1074
  %v3905 = vsel %vm219, %v3903, -inf
  %3906 = vmax.xlane.f32.xlu0 %v3905
  %v3907 = vpop.xlane.xlu0 %3906
  %v3908 = vsel %vm219, %v3904, -inf
  %3909 = vmax.xlane.f32.xlu0 %v3908
  %v3910 = vpop.xlane.xlu0 %3909
  %v3911 = vsub.f32 %v3903, %v3907
  %v3912 = vsub.f32 %v3904, %v3910
  %v3913 = vmul.f32 %v3911, 1.442695
  %v3914 = vpow.pop %v3913
  %v3915 = vmul.f32 %v3912, 1.442695
  %v3916 = vpow.pop %v3915
  %v3917 = vsel %vm219, %v3914, 0.0
  %3918 = vadd.xlane.f32.xlu0 %v3917
  %v3919 = vpop.xlane.xlu0 %3918
  %v3920 = vsel %vm219, %v3916, 0.0
  %3921 = vadd.xlane.f32.xlu0 %v3920
  %v3922 = vpop.xlane.xlu0 %3921
  %v3923 = vadd.f32 %v3919, 1e-20
  %v3924 = vadd.f32 %v3922, 1e-20
  %v3925 = vrcp.pop %v3923
  %v3926 = vrcp.pop %v3924
  %v3927 = vmul.f32 %v3914, %v3925
  %v3928 = vmul.f32 %v3916, %v3926
  %3929 = vrot.lane.b32.xlu0 %v2336, 40
  %v3930 = vpop.permute.xlu0 %3929
  %3931 = vrot.lane.b32.xlu0 %v2339, 40
  %v3932 = vpop.permute.xlu0 %3931
  %v3936 = vsel %vm219, %v3927, 0
  %v3939 = vsel %vm219, %v3928, 0
  %3941 = vmatprep.subr.mxu0 0.0
  %3942 = vmatpush1.msra.mxu0 %v3930
  %3943 = vmatprep.subr.mxu0 0.0
  %3944 = vmatpush1.msra.mxu0 %v3932
  %3945 = vmatprep.subr.mxu0 0.0
  %3946 = vmatpush1.msra.mxu0 0.0
  %3947 = vmatprep.subr.mxu0 0.0
  %3948 = vmatpush1.msra.mxu0 0.0
  %3949 = vmatprep.subr.mxu0 0.0
  %3950 = vmatpush1.msra.mxu0 0.0
  %3951 = vmatprep.subr.mxu0 0.0
  %3952 = vmatpush1.msra.mxu0 0.0
  %3953 = vmatprep.subr.mxu0 0.0
  %3954 = vmatpush1.msra.mxu0 0.0
  %3955 = vmatprep.subr.mxu0 0.0
  %3956 = vmatpush1.msra.mxu0 0.0
  %3957 = vmatprep.subr.mxu0 0.0
  %3958 = vmatpush1.msra.mxu0 0.0
  %3959 = vmatprep.subr.mxu0 0.0
  %3960 = vmatpush1.msra.mxu0 0.0
  %3961 = vmatprep.subr.mxu0 0.0
  %3962 = vmatpush1.msra.mxu0 0.0
  %3963 = vmatprep.subr.mxu0 0.0
  %3964 = vmatpush1.msra.mxu0 0.0
  %3965 = vmatprep.subr.mxu0 0.0
  %3966 = vmatpush1.msra.mxu0 0.0
  %3967 = vmatprep.subr.mxu0 0.0
  %3968 = vmatpush1.msra.mxu0 0.0
  %3969 = vmatprep.subr.mxu0 0.0
  %3970 = vmatpush1.msra.mxu0 0.0
  %3971 = vmatprep.subr.mxu0 0.0
  %3972 = vmatpush1.msra.mxu0 0.0
  %3973 = vmatprep.subr.mxu0 0.0
  %3974 = vmatpush1.msra.mxu0 0.0
  %3975 = vmatprep.subr.mxu0 0.0
  %3976 = vmatpush1.msra.mxu0 0.0
  %3977 = vmatprep.subr.mxu0 0.0
  %3978 = vmatpush1.msra.mxu0 0.0
  %3979 = vmatprep.subr.mxu0 0.0
  %3980 = vmatpush1.msra.mxu0 0.0
  %3981 = vmatprep.subr.mxu0 0.0
  %3982 = vmatpush1.msra.mxu0 0.0
  %3983 = vmatprep.subr.mxu0 0.0
  %3984 = vmatpush1.msra.mxu0 0.0
  %3985 = vmatprep.subr.mxu0 0.0
  %3986 = vmatpush1.msra.mxu0 0.0
  %3987 = vmatprep.subr.mxu0 0.0
  %3988 = vmatpush1.msra.mxu0 0.0
  %3989 = vmatprep.subr.mxu0 0.0
  %3990 = vmatpush1.msra.mxu0 0.0
  %3991 = vmatprep.subr.mxu0 0.0
  %3992 = vmatpush1.msra.mxu0 0.0
  %3993 = vmatprep.subr.mxu0 0.0
  %3994 = vmatpush1.msra.mxu0 0.0
  %3995 = vmatprep.subr.mxu0 0.0
  %3996 = vmatpush1.msra.mxu0 0.0
  %3997 = vmatprep.subr.mxu0 0.0
  %3998 = vmatpush1.msra.mxu0 0.0
  %3999 = vmatprep.subr.mxu0 0.0
  %4000 = vmatpush1.msra.mxu0 0.0
  %4001 = vmatprep.subr.mxu0 0.0
  %4002 = vmatpush1.msra.mxu0 0.0
  %4003 = vmatprep.subr.mxu0 0.0
  %4004 = vmatpush1.msra.mxu0 0.0
  %4005 = vmatprep.mubr.f32.mxu0 0.0
  %4006 = vmatmul.mubr.f32.gmra.mrb[0].mxu0 %v3936
  %v4007 = vpop.f32.mrb[0].mxu0
  %v4008 = vadd.f32 0.0, %v4007
  %v4009 = vpop.f32.mrb[0].mxu0
  %4010 = vmatprep.mubr.f32.mxu0 0.0
  %4011 = vmatmul.mubr.f32.gmra.mrb[0].mxu0 %v3939
  %v4012 = vpop.f32.mrb[0].mxu0
  %v4013 = vadd.f32 0.0, %v4012
  %v4014 = vpop.f32.mrb[0].mxu0
  %4015 = vdwg.mxu0
  %4018 = vrot.lane.b32.xlu0 %v3596, 8
  %v4019 = vpop.permute.xlu0 %4018
  %4020 = vrot.lane.b32.xlu0 %v3601, 8
  %v4021 = vpop.permute.xlu0 %4020
  %4026 = vrot.lane.b32.xlu0 %v3802, 16
  %v4027 = vpop.permute.xlu0 %4026
  %4028 = vrot.lane.b32.xlu0 %v3807, 16
  %v4029 = vpop.permute.xlu0 %4028
  %4034 = vrot.lane.b32.xlu0 %v4008, 24
  %v4035 = vpop.permute.xlu0 %4034
  %4036 = vrot.lane.b32.xlu0 %v4013, 24
  %v4037 = vpop.permute.xlu0 %4036
  %v4040 = vsel %vm127, %v3390, %v4019
  %v4041 = vsel %vm127, %v3395, %v4021
  %v4042 = vsel %vm219, %v4040, %v4027
  %v4043 = vsel %vm219, %v4041, %v4029
  %v4044 = vsel %vm977, %v4042, %v4035
  %v4045 = vsel %vm977, %v4043, %v4037
  %v4046 = vpack.c.bf16 %v3193, %v3192
  %v4047 = vpack.c.bf16 %v4045, %v4044
  %4048 = vrot.lane.b32.xlu0 %v2283, 32
  %v4049 = vpop.permute.xlu0 %4048
  %4050 = vrot.lane.b32.xlu0 %v2284, 32
  %v4051 = vpop.permute.xlu0 %4050
  %4054 = vrot.lane.b32.xlu0 %v2273, 32
  %v4055 = vpop.permute.xlu0 %4054
  %v4058 = vsel %vm65, %v4046, 0
  %v4061 = vsel %vm65, %v4047, 0
  %4063 = vmatprep.subr.bf16.mxu0 0
  %4064 = vmatpush1.bf16.msra.mxu0 %v4049
  %4065 = vmatprep.subr.bf16.mxu0 0
  %4066 = vmatpush1.bf16.msra.mxu0 %v4051
  %4067 = vmatprep.subr.bf16.mxu0 0
  %4068 = vmatpush1.bf16.msra.mxu0 0
  %4069 = vmatprep.subr.bf16.mxu0 0
  %4070 = vmatpush1.bf16.msra.mxu0 0
  %4071 = vmatprep.subr.bf16.mxu0 0
  %4072 = vmatpush1.bf16.msra.mxu0 0
  %4073 = vmatprep.subr.bf16.mxu0 0
  %4074 = vmatpush1.bf16.msra.mxu0 0
  %4075 = vmatprep.subr.bf16.mxu0 0
  %4076 = vmatpush1.bf16.msra.mxu0 0
  %4077 = vmatprep.subr.bf16.mxu0 0
  %4078 = vmatpush1.bf16.msra.mxu0 0
  %4079 = vmatprep.subr.bf16.mxu0 0
  %4080 = vmatpush1.bf16.msra.mxu0 0
  %4081 = vmatprep.subr.bf16.mxu0 0
  %4082 = vmatpush1.bf16.msra.mxu0 0
  %4083 = vmatprep.subr.bf16.mxu0 0
  %4084 = vmatpush1.bf16.msra.mxu0 0
  %4085 = vmatprep.subr.bf16.mxu0 0
  %4086 = vmatpush1.bf16.msra.mxu0 0
  %4087 = vmatprep.subr.bf16.mxu0 0
  %4088 = vmatpush1.bf16.msra.mxu0 0
  %4089 = vmatprep.subr.bf16.mxu0 0
  %4090 = vmatpush1.bf16.msra.mxu0 0
  %4091 = vmatprep.subr.bf16.mxu0 0
  %4092 = vmatpush1.bf16.msra.mxu0 0
  %4093 = vmatprep.subr.bf16.mxu0 0
  %4094 = vmatpush1.bf16.msra.mxu0 0
  %4095 = vmatprep.mubr.bf16.mxu0 0
  %4096 = vmatmul.mubr.bf16.gmra.mrb[0].mxu0 %v4058
  %v4097 = vpop.f32.mrb[0].mxu0
  %v4098 = vadd.f32 %v4055, %v4097
  %v4099 = vpop.f32.mrb[0].mxu0
  %v4100 = vpop.f32.mrb[0].mxu0
  %v4101 = vadd.f32 %v4055, %v4100
  %v4102 = vpop.f32.mrb[0].mxu0
  %4103 = vmatprep.mubr.bf16.mxu0 0
  %4104 = vmatmul.mubr.bf16.gmra.mrb[0].mxu0 %v4061
  %v4105 = vpop.f32.mrb[0].mxu0
  %v4106 = vadd.f32 %v4055, %v4105
  %v4107 = vpop.f32.mrb[0].mxu0
  %v4108 = vpop.f32.mrb[0].mxu0
  %v4109 = vadd.f32 %v4055, %v4108
  %v4110 = vpop.f32.mrb[0].mxu0
  %4111 = vdwg.mxu0
  %v4112 = vadd.f32 %v2256, %v4098
  %v4113 = vadd.f32 %v2257, %v4101
  %v4114 = vadd.f32 %v2258, %v4106
  %v4115 = vadd.f32 %v2259, %v4109
  %v4116 = vsel %vm65, %v4112, 0.0
  %4117 = vadd.xlane.f32.xlu0 %v4116
  %v4118 = vpop.xlane.xlu0 %4117
  %v4119 = vsel %vm65, %v4113, 0.0
  %4120 = vadd.xlane.f32.xlu0 %v4119
  %v4121 = vpop.xlane.xlu0 %4120
  %v4122 = vsel %vm65, %v4114, 0.0
  %4123 = vadd.xlane.f32.xlu0 %v4122
  %v4124 = vpop.xlane.xlu0 %4123
  %v4125 = vsel %vm65, %v4115, 0.0
  %4126 = vadd.xlane.f32.xlu0 %v4125
  %v4127 = vpop.xlane.xlu0 %4126
  %v4128 = vmul.f32 %v4118, %v1918
  %v4129 = vmul.f32 %v4121, %v1918
  %v4130 = vmul.f32 %v4124, %v1918
  %v4131 = vmul.f32 %v4127, %v1918
  %v4132 = vsub.f32 %v4112, %v4128
  %v4133 = vsub.f32 %v4113, %v4129
  %v4134 = vsub.f32 %v4114, %v4130
  %v4135 = vsub.f32 %v4115, %v4131
  %v4136 = vmul.f32 %v4132, %v4132
  %v4137 = vmul.f32 %v4133, %v4133
  %v4138 = vmul.f32 %v4134, %v4134
  %v4139 = vmul.f32 %v4135, %v4135
  %v4140 = vsel %vm65, %v4136, 0.0
  %4141 = vadd.xlane.f32.xlu0 %v4140
  %v4142 = vpop.xlane.xlu0 %4141
  %v4143 = vsel %vm65, %v4137, 0.0
  %4144 = vadd.xlane.f32.xlu0 %v4143
  %v4145 = vpop.xlane.xlu0 %4144
  %v4146 = vsel %vm65, %v4138, 0.0
  %4147 = vadd.xlane.f32.xlu0 %v4146
  %v4148 = vpop.xlane.xlu0 %4147
  %v4149 = vsel %vm65, %v4139, 0.0
  %4150 = vadd.xlane.f32.xlu0 %v4149
  %v4151 = vpop.xlane.xlu0 %4150
  %v4152 = vmul.f32 %v4142, %v1918
  %v4153 = vmul.f32 %v4145, %v1918
  %v4154 = vmul.f32 %v4148, %v1918
  %v4155 = vmul.f32 %v4151, %v1918
  %v4156 = vadd.f32 %v4152, 1e-05
  %v4157 = vadd.f32 %v4153, 1e-05
  %v4158 = vadd.f32 %v4154, 1e-05
  %v4159 = vadd.f32 %v4155, 1e-05
  %v4160 = vrsqrt.pop %v4156
  %v4161 = vrsqrt.pop %v4157
  %v4162 = vrsqrt.pop %v4158
  %v4163 = vrsqrt.pop %v4159
  %v4164 = vmul.f32 %v4132, %v4160
  %v4165 = vmul.f32 %v4133, %v4161
  %v4166 = vmul.f32 %v4134, %v4162
  %v4167 = vmul.f32 %v4135, %v4163
  %v4168 = vlaneseq
  %v4169 = vshrl.u32 %v4168, 7
  %v4170 = vsub.s32 4, %v4169
  %v4171 = vrot.slane %v38, %v4170
  %v4172 = vmul.f32 %v4164, %v4171
  %v4173 = vmul.f32 %v4165, %v4171
  %v4174 = vmul.f32 %v4166, %v4171
  %v4175 = vmul.f32 %v4167, %v4171
  %v4176 = vlaneseq
  %v4177 = vshrl.u32 %v4176, 7
  %v4178 = vsub.s32 5, %v4177
  %v4179 = vrot.slane %v38, %v4178
  %v4180 = vadd.f32 %v4172, %v4179
  %v4181 = vadd.f32 %v4173, %v4179
  %v4182 = vadd.f32 %v4174, %v4179
  %v4183 = vadd.f32 %v4175, %v4179
  %v4184 = vpack.c.bf16 %v4181, %v4180
  %v4185 = vpack.c.bf16 %v4183, %v4182
  %s4186 = scalar_lea.vmem %s4, 16
  %v4187 = vld [vmem:[%s4186] sm:$0xf]
  %v4188 = vld [vmem:[%s4186 + $0x4] sm:$0xf]
  %v4189 = vld [vmem:[%s4186 + $0x8] sm:$0xf]
  %v4190 = vld [vmem:[%s4186 + $0xc] sm:$0xf]
  %s4191 = scalar_lea.vmem %s5, 1
  %v4192 = vld [vmem:[%s4191] sm:$0x1]
  %v4194 = vlaneseq
  %v4195 = vshrl.u32 %v4194, 7
  %v4196 = vsub.s32 0, %v4195
  %v4197 = vrot.slane %v4192, %v4196
  %v4203 = vunpack.c.l.b16 %v4187
  %v4204 = vunpack.c.l.b16 %v4188
  %v4205 = vunpack.c.l.b16 %v4189
  %v4206 = vunpack.c.l.b16 %v4190
  %v4207 = vpack.c.b16 %v4204, %v4203
  %v4208 = vpack.c.b16 %v4206, %v4205
  %v4212 = vsel %vm65, %v4184, 0
  %v4215 = vsel %vm65, %v4185, 0
  %4217 = vmatprep.subr.bf16.mxu0 0
  %4218 = vmatpush1.bf16.msra.mxu0 %v4207
  %4219 = vmatprep.subr.bf16.mxu0 0
  %4220 = vmatpush1.bf16.msra.mxu0 %v4208
  %4221 = vmatprep.subr.bf16.mxu0 0
  %4222 = vmatpush1.bf16.msra.mxu0 0
  %4223 = vmatprep.subr.bf16.mxu0 0
  %4224 = vmatpush1.bf16.msra.mxu0 0
  %4225 = vmatprep.subr.bf16.mxu0 0
  %4226 = vmatpush1.bf16.msra.mxu0 0
  %4227 = vmatprep.subr.bf16.mxu0 0
  %4228 = vmatpush1.bf16.msra.mxu0 0
  %4229 = vmatprep.subr.bf16.mxu0 0
  %4230 = vmatpush1.bf16.msra.mxu0 0
  %4231 = vmatprep.subr.bf16.mxu0 0
  %4232 = vmatpush1.bf16.msra.mxu0 0
  %4233 = vmatprep.subr.bf16.mxu0 0
  %4234 = vmatpush1.bf16.msra.mxu0 0
  %4235 = vmatprep.subr.bf16.mxu0 0
  %4236 = vmatpush1.bf16.msra.mxu0 0
  %4237 = vmatprep.subr.bf16.mxu0 0
  %4238 = vmatpush1.bf16.msra.mxu0 0
  %4239 = vmatprep.subr.bf16.mxu0 0
  %4240 = vmatpush1.bf16.msra.mxu0 0
  %4241 = vmatprep.subr.bf16.mxu0 0
  %4242 = vmatpush1.bf16.msra.mxu0 0
  %4243 = vmatprep.subr.bf16.mxu0 0
  %4244 = vmatpush1.bf16.msra.mxu0 0
  %4245 = vmatprep.subr.bf16.mxu0 0
  %4246 = vmatpush1.bf16.msra.mxu0 0
  %4247 = vmatprep.subr.bf16.mxu0 0
  %4248 = vmatpush1.bf16.msra.mxu0 0
  %4249 = vmatprep.mubr.bf16.mxu0 0
  %4250 = vmatmul.mubr.bf16.gmra.mrb[0].mxu0 %v4212
  %v4251 = vpop.f32.mrb[0].mxu0
  %v4252 = vadd.f32 %v4197, %v4251
  %v4253 = vpop.f32.mrb[0].mxu0
  %v4254 = vpop.f32.mrb[0].mxu0
  %v4255 = vadd.f32 %v4197, %v4254
  %v4256 = vpop.f32.mrb[0].mxu0
  %4257 = vmatprep.mubr.bf16.mxu0 0
  %4258 = vmatmul.mubr.bf16.gmra.mrb[0].mxu0 %v4215
  %v4259 = vpop.f32.mrb[0].mxu0
  %v4260 = vadd.f32 %v4197, %v4259
  %v4261 = vpop.f32.mrb[0].mxu0
  %v4262 = vpop.f32.mrb[0].mxu0
  %v4263 = vadd.f32 %v4197, %v4262
  %v4264 = vpop.f32.mrb[0].mxu0
  %4265 = vdwg.mxu0
  %v4266 = vmul.f32 %v4252, %v4252
  %v4267 = vmul.f32 %v4255, %v4255
  %v4268 = vmul.f32 %v4260, %v4260
  %v4269 = vmul.f32 %v4263, %v4263
  %v4270 = vmul.f32 %v4252, %v4266
  %v4271 = vmul.f32 %v4255, %v4267
  %v4272 = vmul.f32 %v4260, %v4268
  %v4273 = vmul.f32 %v4263, %v4269
  %v4274 = vmul.f32 %v4270, 0.044715
  %v4275 = vmul.f32 %v4271, 0.044715
  %v4276 = vmul.f32 %v4272, 0.044715
  %v4277 = vmul.f32 %v4273, 0.044715
  %v4278 = vadd.f32 %v4252, %v4274
  %v4279 = vadd.f32 %v4255, %v4275
  %v4280 = vadd.f32 %v4260, %v4276
  %v4281 = vadd.f32 %v4263, %v4277
  %v4282 = vmul.f32 %v4278, 0.7978846
  %v4283 = vmul.f32 %v4279, 0.7978846
  %v4284 = vmul.f32 %v4280, 0.7978846
  %v4285 = vmul.f32 %v4281, 0.7978846
  %v4286 = vtanh.pop %v4282
  %v4287 = vtanh.pop %v4283
  %v4288 = vtanh.pop %v4284
  %v4289 = vtanh.pop %v4285
  %v4290 = vadd.f32 %v4286, 1.0
  %v4291 = vadd.f32 %v4287, 1.0
  %v4292 = vadd.f32 %v4288, 1.0
  %v4293 = vadd.f32 %v4289, 1.0
  %v4294 = vmul.f32 %v4290, 0.5
  %v4295 = vmul.f32 %v4291, 0.5
  %v4296 = vmul.f32 %v4292, 0.5
  %v4297 = vmul.f32 %v4293, 0.5
  %v4298 = vmul.f32 %v4252, %v4294
  %v4299 = vmul.f32 %v4255, %v4295
  %v4300 = vmul.f32 %v4260, %v4296
  %v4301 = vmul.f32 %v4263, %v4297
  %v4302 = vpack.c.bf16 %v4299, %v4298
  %v4303 = vpack.c.bf16 %v4301, %v4300
  %s4304 = scalar_lea.vmem %s6, 32
  %v4305 = vld [vmem:[%s4304] sm:$0xf]
  %v4306 = vld [vmem:[%s4304 + $0x4] sm:$0xf]
  %v4307 = vld [vmem:[%s4304 + $0x8] sm:$0xf]
  %v4308 = vld [vmem:[%s4304 + $0xc] sm:$0xf]
  %v4309 = vld [vmem:[%s4304 + $0x10] sm:$0xf]
  %v4310 = vld [vmem:[%s4304 + $0x14] sm:$0xf]
  %v4311 = vld [vmem:[%s4304 + $0x18] sm:$0xf]
  %v4312 = vld [vmem:[%s4304 + $0x1c] sm:$0xf]
  %s4313 = scalar_lea.vmem %s7, 1
  %v4314 = vld [vmem:[%s4313] sm:$0x1]
  %v4316 = vlaneseq
  %v4317 = vshrl.u32 %v4316, 7
  %v4318 = vsub.s32 0, %v4317
  %v4319 = vrot.slane %v4314, %v4318
  %v4329 = vunpack.c.l.b16 %v4305
  %v4330 = vunpack.c.l.b16 %v4306
  %v4331 = vunpack.c.l.b16 %v4307
  %v4332 = vunpack.c.l.b16 %v4308
  %v4333 = vunpack.c.l.b16 %v4309
  %v4334 = vunpack.c.l.b16 %v4310
  %v4335 = vunpack.c.l.b16 %v4311
  %v4336 = vunpack.c.l.b16 %v4312
  %v4337 = vpack.c.b16 %v4330, %v4329
  %v4338 = vpack.c.b16 %v4332, %v4331
  %v4339 = vpack.c.b16 %v4334, %v4333
  %v4340 = vpack.c.b16 %v4336, %v4335
  %v4346 = vsel %vm2132, %v4302, 0
  %v4349 = vsel %vm2132, %v4303, 0
  %4351 = vmatprep.subr.bf16.mxu0 0
  %4352 = vmatpush1.bf16.msra.mxu0 %v4337
  %4353 = vmatprep.subr.bf16.mxu0 0
  %4354 = vmatpush1.bf16.msra.mxu0 %v4338
  %4355 = vmatprep.subr.bf16.mxu0 0
  %4356 = vmatpush1.bf16.msra.mxu0 %v4339
  %4357 = vmatprep.subr.bf16.mxu0 0
  %4358 = vmatpush1.bf16.msra.mxu0 %v4340
  %4359 = vmatprep.subr.bf16.mxu0 0
  %4360 = vmatpush1.bf16.msra.mxu0 0
  %4361 = vmatprep.subr.bf16.mxu0 0
  %4362 = vmatpush1.bf16.msra.mxu0 0
  %4363 = vmatprep.subr.bf16.mxu0 0
  %4364 = vmatpush1.bf16.msra.mxu0 0
  %4365 = vmatprep.subr.bf16.mxu0 0
  %4366 = vmatpush1.bf16.msra.mxu0 0
  %4367 = vmatprep.subr.bf16.mxu0 0
  %4368 = vmatpush1.bf16.msra.mxu0 0
  %4369 = vmatprep.subr.bf16.mxu0 0
  %4370 = vmatpush1.bf16.msra.mxu0 0
  %4371 = vmatprep.subr.bf16.mxu0 0
  %4372 = vmatpush1.bf16.msra.mxu0 0
  %4373 = vmatprep.subr.bf16.mxu0 0
  %4374 = vmatpush1.bf16.msra.mxu0 0
  %4375 = vmatprep.subr.bf16.mxu0 0
  %4376 = vmatpush1.bf16.msra.mxu0 0
  %4377 = vmatprep.subr.bf16.mxu0 0
  %4378 = vmatpush1.bf16.msra.mxu0 0
  %4379 = vmatprep.subr.bf16.mxu0 0
  %4380 = vmatpush1.bf16.msra.mxu0 0
  %4381 = vmatprep.subr.bf16.mxu0 0
  %4382 = vmatpush1.bf16.msra.mxu0 0
  %4383 = vmatprep.mubr.bf16.mxu0 0
  %4384 = vmatmul.mubr.bf16.gmra.mrb[0].mxu0 %v4346
  %v4385 = vpop.f32.mrb[0].mxu0
  %v4386 = vadd.f32 %v4319, %v4385
  %v4387 = vpop.f32.mrb[0].mxu0
  %v4388 = vpop.f32.mrb[0].mxu0
  %v4389 = vadd.f32 %v4319, %v4388
  %v4390 = vpop.f32.mrb[0].mxu0
  %4391 = vmatprep.mubr.bf16.mxu0 0
  %4392 = vmatmul.mubr.bf16.gmra.mrb[0].mxu0 %v4349
  %v4393 = vpop.f32.mrb[0].mxu0
  %v4394 = vadd.f32 %v4319, %v4393
  %v4395 = vpop.f32.mrb[0].mxu0
  %v4396 = vpop.f32.mrb[0].mxu0
  %v4397 = vadd.f32 %v4319, %v4396
  %v4398 = vpop.f32.mrb[0].mxu0
  %4399 = vdwg.mxu0
  %v4400 = vadd.f32 %v4180, %v4386
  %v4401 = vadd.f32 %v4181, %v4389
  %v4402 = vadd.f32 %v4182, %v4394
  %v4403 = vadd.f32 %v4183, %v4397
  %v4404 = vsel %vm65, %v4400, 0.0
  %4405 = vadd.xlane.f32.xlu0 %v4404
  %v4406 = vpop.xlane.xlu0 %4405
  %v4407 = vsel %vm65, %v4401, 0.0
  %4408 = vadd.xlane.f32.xlu0 %v4407
  %v4409 = vpop.xlane.xlu0 %4408
  %v4410 = vsel %vm65, %v4402, 0.0
  %4411 = vadd.xlane.f32.xlu0 %v4410
  %v4412 = vpop.xlane.xlu0 %4411
  %v4413 = vsel %vm65, %v4403, 0.0
  %4414 = vadd.xlane.f32.xlu0 %v4413
  %v4415 = vpop.xlane.xlu0 %4414
  %v4416 = vmul.f32 %v4406, %v1918
  %v4417 = vmul.f32 %v4409, %v1918
  %v4418 = vmul.f32 %v4412, %v1918
  %v4419 = vmul.f32 %v4415, %v1918
  %v4420 = vsub.f32 %v4400, %v4416
  %v4421 = vsub.f32 %v4401, %v4417
  %v4422 = vsub.f32 %v4402, %v4418
  %v4423 = vsub.f32 %v4403, %v4419
  %v4424 = vmul.f32 %v4420, %v4420
  %v4425 = vmul.f32 %v4421, %v4421
  %v4426 = vmul.f32 %v4422, %v4422
  %v4427 = vmul.f32 %v4423, %v4423
  %v4428 = vsel %vm65, %v4424, 0.0
  %4429 = vadd.xlane.f32.xlu0 %v4428
  %v4430 = vpop.xlane.xlu0 %4429
  %v4431 = vsel %vm65, %v4425, 0.0
  %4432 = vadd.xlane.f32.xlu0 %v4431
  %v4433 = vpop.xlane.xlu0 %4432
  %v4434 = vsel %vm65, %v4426, 0.0
  %4435 = vadd.xlane.f32.xlu0 %v4434
  %v4436 = vpop.xlane.xlu0 %4435
  %v4437 = vsel %vm65, %v4427, 0.0
  %4438 = vadd.xlane.f32.xlu0 %v4437
  %v4439 = vpop.xlane.xlu0 %4438
  %v4440 = vmul.f32 %v4430, %v1918
  %v4441 = vmul.f32 %v4433, %v1918
  %v4442 = vmul.f32 %v4436, %v1918
  %v4443 = vmul.f32 %v4439, %v1918
  %v4444 = vadd.f32 %v4440, 1e-05
  %v4445 = vadd.f32 %v4441, 1e-05
  %v4446 = vadd.f32 %v4442, 1e-05
  %v4447 = vadd.f32 %v4443, 1e-05
  %v4448 = vrsqrt.pop %v4444
  %v4449 = vrsqrt.pop %v4445
  %v4450 = vrsqrt.pop %v4446
  %v4451 = vrsqrt.pop %v4447
  %v4452 = vmul.f32 %v4420, %v4448
  %v4453 = vmul.f32 %v4421, %v4449
  %v4454 = vmul.f32 %v4422, %v4450
  %v4455 = vmul.f32 %v4423, %v4451
  %v4456 = vlaneseq
  %v4457 = vshrl.u32 %v4456, 7
  %v4458 = vsub.s32 6, %v4457
  %v4459 = vrot.slane %v38, %v4458
  %v4460 = vmul.f32 %v4452, %v4459
  %v4461 = vmul.f32 %v4453, %v4459
  %v4462 = vmul.f32 %v4454, %v4459
  %v4463 = vmul.f32 %v4455, %v4459
  %v4464 = vlaneseq
  %v4465 = vshrl.u32 %v4464, 7
  %v4466 = vsub.s32 7, %v4465
  %v4467 = vrot.slane %v38, %v4466
  %v4468 = vadd.f32 %v4460, %v4467
  %v4469 = vadd.f32 %v4461, %v4467
  %v4470 = vadd.f32 %v4462, %v4467
  %v4471 = vadd.f32 %v4463, %v4467
  %v4472 = vsel %vm65, %v4468, 0.0
  %4473 = vadd.xlane.f32.xlu0 %v4472
  %v4474 = vpop.xlane.xlu0 %4473
  %v4475 = vsel %vm65, %v4469, 0.0
  %4476 = vadd.xlane.f32.xlu0 %v4475
  %v4477 = vpop.xlane.xlu0 %4476
  %v4478 = vsel %vm65, %v4470, 0.0
  %4479 = vadd.xlane.f32.xlu0 %v4478
  %v4480 = vpop.xlane.xlu0 %4479
  %v4481 = vsel %vm65, %v4471, 0.0
  %4482 = vadd.xlane.f32.xlu0 %v4481
  %v4483 = vpop.xlane.xlu0 %4482
  %v4484 = vmul.f32 %v4474, %v1918
  %v4485 = vmul.f32 %v4477, %v1918
  %v4486 = vmul.f32 %v4480, %v1918
  %v4487 = vmul.f32 %v4483, %v1918
  %v4488 = vsub.f32 %v4468, %v4484
  %v4489 = vsub.f32 %v4469, %v4485
  %v4490 = vsub.f32 %v4470, %v4486
  %v4491 = vsub.f32 %v4471, %v4487
  %v4492 = vmul.f32 %v4488, %v4488
  %v4493 = vmul.f32 %v4489, %v4489
  %v4494 = vmul.f32 %v4490, %v4490
  %v4495 = vmul.f32 %v4491, %v4491
  %v4496 = vsel %vm65, %v4492, 0.0
  %4497 = vadd.xlane.f32.xlu0 %v4496
  %v4498 = vpop.xlane.xlu0 %4497
  %v4499 = vsel %vm65, %v4493, 0.0
  %4500 = vadd.xlane.f32.xlu0 %v4499
  %v4501 = vpop.xlane.xlu0 %4500
  %v4502 = vsel %vm65, %v4494, 0.0
  %4503 = vadd.xlane.f32.xlu0 %v4502
  %v4504 = vpop.xlane.xlu0 %4503
  %v4505 = vsel %vm65, %v4495, 0.0
  %4506 = vadd.xlane.f32.xlu0 %v4505
  %v4507 = vpop.xlane.xlu0 %4506
  %v4508 = vmul.f32 %v4498, %v1918
  %v4509 = vmul.f32 %v4501, %v1918
  %v4510 = vmul.f32 %v4504, %v1918
  %v4511 = vmul.f32 %v4507, %v1918
  %v4512 = vadd.f32 %v4508, 1e-05
  %v4513 = vadd.f32 %v4509, 1e-05
  %v4514 = vadd.f32 %v4510, 1e-05
  %v4515 = vadd.f32 %v4511, 1e-05
  %v4516 = vrsqrt.pop %v4512
  %v4517 = vrsqrt.pop %v4513
  %v4518 = vrsqrt.pop %v4514
  %v4519 = vrsqrt.pop %v4515
  %v4520 = vmul.f32 %v4488, %v4516
  %v4521 = vmul.f32 %v4489, %v4517
  %v4522 = vmul.f32 %v4490, %v4518
  %v4523 = vmul.f32 %v4491, %v4519
  %v4524 = vlaneseq
  %v4525 = vshrl.u32 %v4524, 7
  %v4526 = vsub.s32 0, %v4525
  %v4527 = vrot.slane %v39, %v4526
  %v4528 = vmul.f32 %v4520, %v4527
  %v4529 = vmul.f32 %v4521, %v4527
  %v4530 = vmul.f32 %v4522, %v4527
  %v4531 = vmul.f32 %v4523, %v4527
  %v4532 = vlaneseq
  %v4533 = vshrl.u32 %v4532, 7
  %v4534 = vsub.s32 1, %v4533
  %v4535 = vrot.slane %v39, %v4534
  %v4536 = vadd.f32 %v4528, %v4535
  %v4537 = vadd.f32 %v4529, %v4535
  %v4538 = vadd.f32 %v4530, %v4535
  %v4539 = vadd.f32 %v4531, %v4535
  %4540 = vst.msk [vmem:[%s9] sm:$0xff] %vm65, %v4536
  %4541 = vst.msk [vmem:[%s9 + $0x8] sm:$0xff] %vm65, %v4537
  %4542 = vst.msk [vmem:[%s9 + $0x10] sm:$0xff] %vm65, %v4538
  %4543 = vst.msk [vmem:[%s9 + $0x18] sm:$0xff] %vm65, %v4539
  // Predicated region
  $region38: #{mm_encoder_forward.1} parent=0 // pred_check
    _
  $region39: #{mm_encoder_forward.1} parent=0 // pred_check_branch
    %4545 = sbr.rel (0) target = $region41
  $region40: #{mm_encoder_forward.1} parent=0 // pred_region
    _
  $region41: #{mm_encoder_forward.1} parent=0 // pred_fallthru
    _
  // Predicated region
  $region42: #{mm_encoder_forward.1} parent=0 // pred_check
    _
  $region43: #{mm_encoder_forward.1} parent=0 // pred_check_branch
    %4547 = sbr.rel (0) target = $region45
  $region44: #{mm_encoder_forward.1} parent=0 // pred_region
    _
  $region45: #{mm_encoder_forward.1} parent=0 // pred_fallthru
    _

</llo_original>
